<compile_context>
chip_gen: v6e
topology: v6e:2x2x1
jax: 0.10.0
libtpu: 0.0.40
codegen_flags: <defaults>
</compile_context>

<pallas_src>
import math

import jax
import jax.numpy as jnp
from jax.experimental import pallas as pl
from jax.experimental.pallas import tpu as pltpu

# ----------------------------- configuration --------------------------------
VOCAB = 16       # vocab_size
DIM = 32         # dim
HEADS = 2        # heads
HEAD_DIM = DIM // HEADS
DEPTH = 2        # depth
N_VEC = 8        # n_vec (sequence length)
N_CLASS = 4      # n_class
P_LEN = 8        # Luna projected ("packed") memory length
FFN_DIM = 4 * DIM
BATCH = 2
LN_EPS = 1e-5


# --------------------------- parameter slab layout ----------------------------
def _round8(n):
    return ((n + 7) // 8) * 8


class _Slab:
    """Row-packed f32 parameter slab with a fixed lane width.

    Offsets are Python ints shared by pack_params (host side) and the kernel
    (static slices), so the whole parameter set travels as one DMA per slab.
    Every entry starts on an 8-row (sublane-tile) boundary.
    """

    def __init__(self, width):
        self.width = width
        self.rows = 0
        self.slots = {}

    def add(self, name, nrows):
        self.slots[name] = (self.rows, nrows)
        self.rows += _round8(nrows)

    def get(self, ref, name):
        off, n = self.slots[name]
        return ref[off:off + n, :]          # static slice

    def build(self, arrays):
        slab = jnp.zeros((self.rows, self.width), jnp.float32)
        for name, (off, n) in self.slots.items():
            a = jnp.asarray(arrays[name], jnp.float32).reshape(n, -1)
            slab = slab.at[off:off + n, :a.shape[1]].set(a)
        return slab


W32 = _Slab(DIM)        # everything with a 32-wide lane footprint
W64 = _Slab(2 * DIM)    # fused K|V projections
W128 = _Slab(FFN_DIM)   # FFN up-projection

W32.add("emb", VOCAB)
W32.add("p_emb", P_LEN)
for _d in range(DEPTH):
    for _a in ("pack", "unpack"):
        W32.add(f"{_a}{_d}_wq", DIM)
        W32.add(f"{_a}{_d}_bq", 1)
        W32.add(f"{_a}{_d}_wo", DIM)
        W32.add(f"{_a}{_d}_bo", 1)
        W64.add(f"{_a}{_d}_wkv", DIM)
        W64.add(f"{_a}{_d}_bkv", 1)
    for _ln in ("ln_x_g", "ln_x_b", "ln_p_g", "ln_p_b", "ln_f_g", "ln_f_b"):
        W32.add(f"{_ln}{_d}", 1)
    W128.add(f"ffn_w1_{_d}", DIM)
    W128.add(f"ffn_b1_{_d}", 1)
    W32.add(f"ffn_w2_{_d}", FFN_DIM)
    W32.add(f"ffn_b2_{_d}", 1)
W32.add("final_w", DIM)   # (DIM, N_CLASS) zero-padded to (DIM, DIM); 1/N_VEC folded in
W32.add("final_b", 1)


# ------------------------------ fused Pallas kernel ---------------------------
def _luna_fused_kernel(tok_ref, w32_ref, w64_ref, w128_ref, out_ref):
    f32 = jnp.float32

    def g32(name):
        return W32.get(w32_ref, name)

    def g64(name):
        return W64.get(w64_ref, name)

    def g128(name):
        return W128.get(w128_ref, name)

    # ---- embedding lookup fused as a one-hot matmul on the MXU -------------
    tok = tok_ref[...]                                                # (B*L, 1) int32
    vocab_ids = jax.lax.broadcasted_iota(jnp.int32, (BATCH * N_VEC, VOCAB), 1)
    onehot = (tok == vocab_ids).astype(f32)                           # (B*L, V)
    x = jnp.dot(onehot, g32("emb"), preferred_element_type=f32)       # (B*L, D)

    # ---- packed ("projected") memory, broadcast across batch (no concat) ----
    pe = g32("p_emb")                                                 # (P, D)
    pmem = jnp.broadcast_to(pe[None], (BATCH, P_LEN, DIM)).reshape(BATCH * P_LEN, DIM)

    scale = 1.0 / math.sqrt(HEAD_DIM)

    def mha(q_in, kv_in, lq, lk, d, name):
        """Cross multi-head attention, batched over B; heads are 2 static lane
        slices; head outputs merged via summed per-head output projections."""
        wq, bq = g32(f"{name}{d}_wq"), g32(f"{name}{d}_bq")
        wkv, bkv = g64(f"{name}{d}_wkv"), g64(f"{name}{d}_bkv")
        wo, bo = g32(f"{name}{d}_wo"), g32(f"{name}{d}_bo")

        q = jnp.dot(q_in, wq, preferred_element_type=f32) + bq        # (B*lq, D)
        kv = jnp.dot(kv_in, wkv, preferred_element_type=f32) + bkv    # (B*lk, 2D)

        q3 = q.reshape(BATCH, lq, DIM)                                # leading-dim split only
        k3 = kv[:, :DIM].reshape(BATCH, lk, DIM)
        v3 = kv[:, DIM:].reshape(BATCH, lk, DIM)

        acc = None
        for h in range(HEADS):                                        # static unroll (2)
            sl = slice(h * HEAD_DIM, (h + 1) * HEAD_DIM)
            s = jnp.einsum('bqd,bkd->bqk', q3[:, :, sl] * scale, k3[:, :, sl],
                           preferred_element_type=f32)                # (B, lq, lk)
            s = s - jnp.max(s, axis=-1, keepdims=True)
            p = jnp.exp(s)
            p = p / jnp.sum(p, axis=-1, keepdims=True)                # exact softmax
            ctx = jnp.einsum('bqk,bkd->bqd', p, v3[:, :, sl],
                             preferred_element_type=f32)              # (B, lq, Dh)
            o_h = jnp.dot(ctx.reshape(BATCH * lq, HEAD_DIM), wo[sl, :],
                          preferred_element_type=f32)                 # (B*lq, D)
            acc = o_h if acc is None else acc + o_h
        return acc + bo

    def add_ln(a, r, g, b):
        s = a + r
        mu = jnp.mean(s, axis=-1, keepdims=True)
        var = jnp.mean(jnp.square(s - mu), axis=-1, keepdims=True)
        return (s - mu) * jax.lax.rsqrt(var + LN_EPS) * g + b

    # ---- Luna layers, fully unrolled (DEPTH=2); nothing leaves VMEM ----------
    for d in range(DEPTH):
        packed = mha(pmem, x, P_LEN, N_VEC, d, "pack")
        unpacked = mha(x, packed, N_VEC, P_LEN, d, "unpack")
        x = add_ln(x, unpacked, g32(f"ln_x_g{d}"), g32(f"ln_x_b{d}"))
        pmem = add_ln(pmem, packed, g32(f"ln_p_g{d}"), g32(f"ln_p_b{d}"))
        h = jax.nn.gelu(jnp.dot(x, g128(f"ffn_w1_{d}"), preferred_element_type=f32)
                        + g128(f"ffn_b1_{d}"))
        h = jnp.dot(h, g32(f"ffn_w2_{d}"), preferred_element_type=f32) + g32(f"ffn_b2_{d}")
        x = add_ln(x, h, g32(f"ln_f_g{d}"), g32(f"ln_f_b{d}"))

    # ---- avg pooling (reshape + sum; 1/N_VEC folded into final_w) + head -----
    pooled = jnp.sum(x.reshape(BATCH, N_VEC, DIM), axis=1)            # (B, D)
    logits = (jnp.dot(pooled, g32("final_w"), preferred_element_type=f32)
              + g32("final_b"))                                       # (B, D) padded
    out_ref[...] = logits[:, :N_CLASS].astype(out_ref.dtype)


# ------------------------------ wrapper ---------------------------------------
def luna_model_forward(tokens, slabs):
    """tokens: (B, n_vec) int32 -> logits (B, n_class). Single fused pallas_call."""
    tok2 = tokens.reshape(BATCH * N_VEC, 1).astype(jnp.int32)
    w32, w64, w128 = slabs
    vmem_spec = pl.BlockSpec(memory_space=pltpu.MemorySpace.VMEM)
    return pl.pallas_call(
        _luna_fused_kernel,
        out_shape=jax.ShapeDtypeStruct((BATCH, N_CLASS), jnp.float32),
        in_specs=[vmem_spec, vmem_spec, vmem_spec, vmem_spec],
        out_specs=vmem_spec,
        compiler_params=pltpu.CompilerParams(vmem_limit_bytes=2 * 1024 * 1024),
    )(tok2, w32, w64, w128)


# ------------------------------ parameter init --------------------------------
def _dense(key, fan_in, fan_out):
    kw, kb = jax.random.split(key)
    lim = 1.0 / math.sqrt(fan_in)
    w = jax.random.uniform(kw, (fan_in, fan_out), jnp.float32, -lim, lim)
    b = jax.random.uniform(kb, (fan_out,), jnp.float32, -lim, lim)
    return w, b


def init_params(key):
    keys = iter(jax.random.split(key, 8 + DEPTH * 16))
    params = {}
    emb = jax.random.normal(next(keys), (VOCAB, DIM), jnp.float32)
    params["emb"] = emb.at[0].set(0.0)                                # padding_idx=0
    params["p_emb"] = 0.02 * jax.random.normal(next(keys), (P_LEN, DIM), jnp.float32)

    layers = []
    for _ in range(DEPTH):
        lp = {}
        for name in ("pack", "unpack"):
            attn = {}
            for proj in ("q", "k", "v", "o"):
                w, b = _dense(next(keys), DIM, DIM)
                attn["w" + proj], attn["b" + proj] = w, b
            lp[name] = attn
        for ln in ("ln_x", "ln_p", "ln_f"):
            lp[ln + "_g"] = jnp.ones((DIM,), jnp.float32)
            lp[ln + "_b"] = jnp.zeros((DIM,), jnp.float32)
        lp["ffn_w1"], lp["ffn_b1"] = _dense(next(keys), DIM, FFN_DIM)
        lp["ffn_w2"], lp["ffn_b2"] = _dense(next(keys), FFN_DIM, DIM)
        layers.append(lp)
    params["layers"] = layers

    params["final_w"], params["final_b"] = _dense(next(keys), DIM, N_CLASS)
    return params


def pack_params(params):
    """Pack every weight/bias into three row-stacked f32 slabs (one DMA each)."""
    w32, w64, w128 = {}, {}, {}
    w32["emb"] = params["emb"]
    w32["p_emb"] = params["p_emb"]
    for d, lp in enumerate(params["layers"]):
        for a in ("pack", "unpack"):
            at = lp[a]
            w32[f"{a}{d}_wq"] = at["wq"]
            w32[f"{a}{d}_bq"] = at["bq"][None, :]
            w32[f"{a}{d}_wo"] = at["wo"]
            w32[f"{a}{d}_bo"] = at["bo"][None, :]
            w64[f"{a}{d}_wkv"] = jnp.concatenate([at["wk"], at["wv"]], axis=1)
            w64[f"{a}{d}_bkv"] = jnp.concatenate([at["bk"], at["bv"]])[None, :]
        for ln in ("ln_x_g", "ln_x_b", "ln_p_g", "ln_p_b", "ln_f_g", "ln_f_b"):
            w32[f"{ln}{d}"] = lp[ln][None, :]
        w128[f"ffn_w1_{d}"] = lp["ffn_w1"]
        w128[f"ffn_b1_{d}"] = lp["ffn_b1"][None, :]
        w32[f"ffn_w2_{d}"] = lp["ffn_w2"]
        w32[f"ffn_b2_{d}"] = lp["ffn_b2"][None, :]
    # classifier head: fold 1/N_VEC mean-pool scale into W; zero-pad to DIM lanes
    fw = jnp.zeros((DIM, DIM), jnp.float32).at[:, :N_CLASS].set(params["final_w"] / N_VEC)
    fb = jnp.zeros((1, DIM), jnp.float32).at[0, :N_CLASS].set(params["final_b"])
    w32["final_w"] = fw
    w32["final_b"] = fb
    return W32.build(w32), W64.build(w64), W128.build(w128)


# ------------------------------------ main ------------------------------------
if __name__ == "__main__":
    key = jax.random.PRNGKey(0)
    k_tok, k_par = jax.random.split(key)
    tokens = jax.random.randint(k_tok, (BATCH, N_VEC), 0, VOCAB)      # (B, n_vec) int32
    params = init_params(k_par)
    slabs = pack_params(params)                                       # packed once, outside jit

    fwd = jax.jit(luna_model_forward)
    logits = fwd(tokens, slabs)
    jax.block_until_ready(logits)
    assert logits.shape == (BATCH, N_CLASS)
    assert bool(jnp.all(jnp.isfinite(logits)))
    print("KERNEL_OK")
</pallas_src>

<mosaic_0001>
module attributes {stable_mosaic.version = 11 : i64} {
  func.func @_luna_fused_kernel(%arg0: memref<16x1xi32, #tpu.memory_space<vmem>>, %arg1: memref<752x32xf32, #tpu.memory_space<vmem>>, %arg2: memref<160x64xf32, #tpu.memory_space<vmem>>, %arg3: memref<80x128xf32, #tpu.memory_space<vmem>>, %arg4: memref<2x4xf32, #tpu.memory_space<vmem>>) attributes {dimension_semantics = [], scalar_prefetch = 0 : i64, scratch_operands = 0 : i64, tpu.core_type = #tpu.core_type<tc>} {
    %c0 = arith.constant 0 : index
    %c0_0 = arith.constant 0 : index
    %0 = vector.load %arg0[%c0, %c0_0] : memref<16x1xi32, #tpu.memory_space<vmem>>, vector<16x1xi32>
    %1 = tpu.iota {dimensions = array<i32: 1>} : vector<16x16xi32>
    %2 = vector.broadcast %0 : vector<16x1xi32> to vector<16x16xi32>
    %3 = arith.cmpi eq, %2, %1 : vector<16x16xi32>
    %4 = arith.extui %3 : vector<16x16xi1> to vector<16x16xi32>
    %5 = arith.sitofp %4 : vector<16x16xi32> to vector<16x16xf32>
    %c0_1 = arith.constant 0 : index
    %c0_2 = arith.constant 0 : index
    %6 = vector.load %arg1[%c0_1, %c0_2] : memref<752x32xf32, #tpu.memory_space<vmem>>, vector<16x32xf32>
    %cst = arith.constant dense<0.000000e+00> : vector<16x32xf32>
    %7 = tpu.matmul %5, %6, %cst {dimension_numbers = #tpu.dot_dimension_numbers<[1], [0], [0], [1], [0, 0, 1, 1], [], []>} : vector<16x16xf32>, vector<16x32xf32>, vector<16x32xf32> -> vector<16x32xf32>
    %c16 = arith.constant 16 : index
    %c0_3 = arith.constant 0 : index
    %8 = vector.load %arg1[%c16, %c0_3] : memref<752x32xf32, #tpu.memory_space<vmem>>, vector<8x32xf32>
    %9 = vector.shape_cast %8 : vector<8x32xf32> to vector<1x8x32xf32>
    %10 = vector.shape_cast %9 : vector<1x8x32xf32> to vector<1x8x32xf32>
    %11 = vector.broadcast %10 : vector<1x8x32xf32> to vector<2x8x32xf32>
    %12 = vector.shape_cast %11 : vector<2x8x32xf32> to vector<16x32xf32>
    %c24 = arith.constant 24 : index
    %c0_4 = arith.constant 0 : index
    %13 = vector.load %arg1[%c24, %c0_4] : memref<752x32xf32, #tpu.memory_space<vmem>>, vector<32x32xf32>
    %c56 = arith.constant 56 : index
    %c0_5 = arith.constant 0 : index
    %14 = vector.load %arg1[%c56, %c0_5] : memref<752x32xf32, #tpu.memory_space<vmem>>, vector<1x32xf32>
    %c0_6 = arith.constant 0 : index
    %c0_7 = arith.constant 0 : index
    %15 = vector.load %arg2[%c0_6, %c0_7] : memref<160x64xf32, #tpu.memory_space<vmem>>, vector<32x64xf32>
    %c32 = arith.constant 32 : index
    %c0_8 = arith.constant 0 : index
    %16 = vector.load %arg2[%c32, %c0_8] : memref<160x64xf32, #tpu.memory_space<vmem>>, vector<1x64xf32>
    %c64 = arith.constant 64 : index
    %c0_9 = arith.constant 0 : index
    %17 = vector.load %arg1[%c64, %c0_9] : memref<752x32xf32, #tpu.memory_space<vmem>>, vector<32x32xf32>
    %c96 = arith.constant 96 : index
    %c0_10 = arith.constant 0 : index
    %18 = vector.load %arg1[%c96, %c0_10] : memref<752x32xf32, #tpu.memory_space<vmem>>, vector<1x32xf32>
    %cst_11 = arith.constant dense<0.000000e+00> : vector<16x32xf32>
    %19 = tpu.matmul %12, %13, %cst_11 {dimension_numbers = #tpu.dot_dimension_numbers<[1], [0], [0], [1], [0, 0, 1, 1], [], []>} : vector<16x32xf32>, vector<32x32xf32>, vector<16x32xf32> -> vector<16x32xf32>
    %20 = vector.broadcast %14 : vector<1x32xf32> to vector<16x32xf32>
    %21 = arith.addf %19, %20 : vector<16x32xf32>
    %cst_12 = arith.constant dense<0.000000e+00> : vector<16x64xf32>
    %22 = tpu.matmul %7, %15, %cst_12 {dimension_numbers = #tpu.dot_dimension_numbers<[1], [0], [0], [1], [0, 0, 1, 1], [], []>} : vector<16x32xf32>, vector<32x64xf32>, vector<16x64xf32> -> vector<16x64xf32>
    %23 = vector.broadcast %16 : vector<1x64xf32> to vector<16x64xf32>
    %24 = arith.addf %22, %23 : vector<16x64xf32>
    %25 = vector.shape_cast %21 : vector<16x32xf32> to vector<2x8x32xf32>
    %26 = vector.extract_strided_slice %24 {offsets = [0, 0], sizes = [16, 32], strides = [1, 1]} : vector<16x64xf32> to vector<16x32xf32>
    %27 = vector.shape_cast %26 : vector<16x32xf32> to vector<2x8x32xf32>
    %28 = vector.extract_strided_slice %24 {offsets = [0, 32], sizes = [16, 32], strides = [1, 1]} : vector<16x64xf32> to vector<16x32xf32>
    %29 = vector.shape_cast %28 : vector<16x32xf32> to vector<2x8x32xf32>
    %30 = vector.extract_strided_slice %25 {offsets = [0, 0, 0], sizes = [2, 8, 16], strides = [1, 1, 1]} : vector<2x8x32xf32> to vector<2x8x16xf32>
    %cst_13 = arith.constant 2.500000e-01 : f32
    %31 = vector.broadcast %cst_13 : f32 to vector<2x8x16xf32>
    %32 = arith.mulf %30, %31 : vector<2x8x16xf32>
    %33 = vector.extract_strided_slice %27 {offsets = [0, 0, 0], sizes = [2, 8, 16], strides = [1, 1, 1]} : vector<2x8x32xf32> to vector<2x8x16xf32>
    "tpu.trace_start"() <{level = 10 : i32, message = "bqd,bkd->bqk"}> : () -> ()
    %cst_14 = arith.constant dense<0.000000e+00> : vector<2x8x8xf32>
    %34 = tpu.matmul %32, %33, %cst_14 {dimension_numbers = #tpu.dot_dimension_numbers<[2], [2], [1], [1], [0, 0, 0, 1, 1, 1], [0], [0]>} : vector<2x8x16xf32>, vector<2x8x16xf32>, vector<2x8x8xf32> -> vector<2x8x8xf32>
    "tpu.trace_stop"() : () -> ()
    %cst_15 = arith.constant dense<0xFF800000> : vector<2x8xf32>
    %35 = vector.multi_reduction <maximumf>, %34, %cst_15 [2] : vector<2x8x8xf32> to vector<2x8xf32>
    %36 = vector.shape_cast %35 : vector<2x8xf32> to vector<2x8x1xf32>
    %37 = vector.broadcast %36 : vector<2x8x1xf32> to vector<2x8x8xf32>
    %38 = arith.subf %34, %37 : vector<2x8x8xf32>
    %39 = math.exp %38 : vector<2x8x8xf32>
    %cst_16 = arith.constant dense<0.000000e+00> : vector<2x8xf32>
    %40 = vector.multi_reduction <add>, %39, %cst_16 [2] : vector<2x8x8xf32> to vector<2x8xf32>
    %41 = vector.shape_cast %40 : vector<2x8xf32> to vector<2x8x1xf32>
    %42 = vector.broadcast %41 : vector<2x8x1xf32> to vector<2x8x8xf32>
    %43 = arith.divf %39, %42 : vector<2x8x8xf32>
    %44 = vector.extract_strided_slice %29 {offsets = [0, 0, 0], sizes = [2, 8, 16], strides = [1, 1, 1]} : vector<2x8x32xf32> to vector<2x8x16xf32>
    "tpu.trace_start"() <{level = 10 : i32, message = "bqk,bkd->bqd"}> : () -> ()
    %cst_17 = arith.constant dense<0.000000e+00> : vector<2x8x16xf32>
    %45 = tpu.matmul %43, %44, %cst_17 {dimension_numbers = #tpu.dot_dimension_numbers<[2], [1], [1], [2], [0, 0, 0, 1, 1, 2], [0], [0]>} : vector<2x8x8xf32>, vector<2x8x16xf32>, vector<2x8x16xf32> -> vector<2x8x16xf32>
    "tpu.trace_stop"() : () -> ()
    %46 = vector.shape_cast %45 : vector<2x8x16xf32> to vector<16x16xf32>
    %47 = vector.extract_strided_slice %17 {offsets = [0, 0], sizes = [16, 32], strides = [1, 1]} : vector<32x32xf32> to vector<16x32xf32>
    %cst_18 = arith.constant dense<0.000000e+00> : vector<16x32xf32>
    %48 = tpu.matmul %46, %47, %cst_18 {dimension_numbers = #tpu.dot_dimension_numbers<[1], [0], [0], [1], [0, 0, 1, 1], [], []>} : vector<16x16xf32>, vector<16x32xf32>, vector<16x32xf32> -> vector<16x32xf32>
    %49 = vector.extract_strided_slice %25 {offsets = [0, 0, 16], sizes = [2, 8, 16], strides = [1, 1, 1]} : vector<2x8x32xf32> to vector<2x8x16xf32>
    %cst_19 = arith.constant 2.500000e-01 : f32
    %50 = vector.broadcast %cst_19 : f32 to vector<2x8x16xf32>
    %51 = arith.mulf %49, %50 : vector<2x8x16xf32>
    %52 = vector.extract_strided_slice %27 {offsets = [0, 0, 16], sizes = [2, 8, 16], strides = [1, 1, 1]} : vector<2x8x32xf32> to vector<2x8x16xf32>
    "tpu.trace_start"() <{level = 10 : i32, message = "bqd,bkd->bqk"}> : () -> ()
    %cst_20 = arith.constant dense<0.000000e+00> : vector<2x8x8xf32>
    %53 = tpu.matmul %51, %52, %cst_20 {dimension_numbers = #tpu.dot_dimension_numbers<[2], [2], [1], [1], [0, 0, 0, 1, 1, 1], [0], [0]>} : vector<2x8x16xf32>, vector<2x8x16xf32>, vector<2x8x8xf32> -> vector<2x8x8xf32>
    "tpu.trace_stop"() : () -> ()
    %cst_21 = arith.constant dense<0xFF800000> : vector<2x8xf32>
    %54 = vector.multi_reduction <maximumf>, %53, %cst_21 [2] : vector<2x8x8xf32> to vector<2x8xf32>
    %55 = vector.shape_cast %54 : vector<2x8xf32> to vector<2x8x1xf32>
    %56 = vector.broadcast %55 : vector<2x8x1xf32> to vector<2x8x8xf32>
    %57 = arith.subf %53, %56 : vector<2x8x8xf32>
    %58 = math.exp %57 : vector<2x8x8xf32>
    %cst_22 = arith.constant dense<0.000000e+00> : vector<2x8xf32>
    %59 = vector.multi_reduction <add>, %58, %cst_22 [2] : vector<2x8x8xf32> to vector<2x8xf32>
    %60 = vector.shape_cast %59 : vector<2x8xf32> to vector<2x8x1xf32>
    %61 = vector.broadcast %60 : vector<2x8x1xf32> to vector<2x8x8xf32>
    %62 = arith.divf %58, %61 : vector<2x8x8xf32>
    %63 = vector.extract_strided_slice %29 {offsets = [0, 0, 16], sizes = [2, 8, 16], strides = [1, 1, 1]} : vector<2x8x32xf32> to vector<2x8x16xf32>
    "tpu.trace_start"() <{level = 10 : i32, message = "bqk,bkd->bqd"}> : () -> ()
    %cst_23 = arith.constant dense<0.000000e+00> : vector<2x8x16xf32>
    %64 = tpu.matmul %62, %63, %cst_23 {dimension_numbers = #tpu.dot_dimension_numbers<[2], [1], [1], [2], [0, 0, 0, 1, 1, 2], [0], [0]>} : vector<2x8x8xf32>, vector<2x8x16xf32>, vector<2x8x16xf32> -> vector<2x8x16xf32>
    "tpu.trace_stop"() : () -> ()
    %65 = vector.shape_cast %64 : vector<2x8x16xf32> to vector<16x16xf32>
    %66 = vector.extract_strided_slice %17 {offsets = [16, 0], sizes = [16, 32], strides = [1, 1]} : vector<32x32xf32> to vector<16x32xf32>
    %cst_24 = arith.constant dense<0.000000e+00> : vector<16x32xf32>
    %67 = tpu.matmul %65, %66, %cst_24 {dimension_numbers = #tpu.dot_dimension_numbers<[1], [0], [0], [1], [0, 0, 1, 1], [], []>} : vector<16x16xf32>, vector<16x32xf32>, vector<16x32xf32> -> vector<16x32xf32>
    %68 = arith.addf %48, %67 : vector<16x32xf32>
    %69 = vector.broadcast %18 : vector<1x32xf32> to vector<16x32xf32>
    %70 = arith.addf %68, %69 : vector<16x32xf32>
    %c104 = arith.constant 104 : index
    %c0_25 = arith.constant 0 : index
    %71 = vector.load %arg1[%c104, %c0_25] : memref<752x32xf32, #tpu.memory_space<vmem>>, vector<32x32xf32>
    %c136 = arith.constant 136 : index
    %c0_26 = arith.constant 0 : index
    %72 = vector.load %arg1[%c136, %c0_26] : memref<752x32xf32, #tpu.memory_space<vmem>>, vector<1x32xf32>
    %c40 = arith.constant 40 : index
    %c0_27 = arith.constant 0 : index
    %73 = vector.load %arg2[%c40, %c0_27] : memref<160x64xf32, #tpu.memory_space<vmem>>, vector<32x64xf32>
    %c72 = arith.constant 72 : index
    %c0_28 = arith.constant 0 : index
    %74 = vector.load %arg2[%c72, %c0_28] : memref<160x64xf32, #tpu.memory_space<vmem>>, vector<1x64xf32>
    %c144 = arith.constant 144 : index
    %c0_29 = arith.constant 0 : index
    %75 = vector.load %arg1[%c144, %c0_29] : memref<752x32xf32, #tpu.memory_space<vmem>>, vector<32x32xf32>
    %c176 = arith.constant 176 : index
    %c0_30 = arith.constant 0 : index
    %76 = vector.load %arg1[%c176, %c0_30] : memref<752x32xf32, #tpu.memory_space<vmem>>, vector<1x32xf32>
    %cst_31 = arith.constant dense<0.000000e+00> : vector<16x32xf32>
    %77 = tpu.matmul %7, %71, %cst_31 {dimension_numbers = #tpu.dot_dimension_numbers<[1], [0], [0], [1], [0, 0, 1, 1], [], []>} : vector<16x32xf32>, vector<32x32xf32>, vector<16x32xf32> -> vector<16x32xf32>
    %78 = vector.broadcast %72 : vector<1x32xf32> to vector<16x32xf32>
    %79 = arith.addf %77, %78 : vector<16x32xf32>
    %cst_32 = arith.constant dense<0.000000e+00> : vector<16x64xf32>
    %80 = tpu.matmul %70, %73, %cst_32 {dimension_numbers = #tpu.dot_dimension_numbers<[1], [0], [0], [1], [0, 0, 1, 1], [], []>} : vector<16x32xf32>, vector<32x64xf32>, vector<16x64xf32> -> vector<16x64xf32>
    %81 = vector.broadcast %74 : vector<1x64xf32> to vector<16x64xf32>
    %82 = arith.addf %80, %81 : vector<16x64xf32>
    %83 = vector.shape_cast %79 : vector<16x32xf32> to vector<2x8x32xf32>
    %84 = vector.extract_strided_slice %82 {offsets = [0, 0], sizes = [16, 32], strides = [1, 1]} : vector<16x64xf32> to vector<16x32xf32>
    %85 = vector.shape_cast %84 : vector<16x32xf32> to vector<2x8x32xf32>
    %86 = vector.extract_strided_slice %82 {offsets = [0, 32], sizes = [16, 32], strides = [1, 1]} : vector<16x64xf32> to vector<16x32xf32>
    %87 = vector.shape_cast %86 : vector<16x32xf32> to vector<2x8x32xf32>
    %88 = vector.extract_strided_slice %83 {offsets = [0, 0, 0], sizes = [2, 8, 16], strides = [1, 1, 1]} : vector<2x8x32xf32> to vector<2x8x16xf32>
    %cst_33 = arith.constant 2.500000e-01 : f32
    %89 = vector.broadcast %cst_33 : f32 to vector<2x8x16xf32>
    %90 = arith.mulf %88, %89 : vector<2x8x16xf32>
    %91 = vector.extract_strided_slice %85 {offsets = [0, 0, 0], sizes = [2, 8, 16], strides = [1, 1, 1]} : vector<2x8x32xf32> to vector<2x8x16xf32>
    "tpu.trace_start"() <{level = 10 : i32, message = "bqd,bkd->bqk"}> : () -> ()
    %cst_34 = arith.constant dense<0.000000e+00> : vector<2x8x8xf32>
    %92 = tpu.matmul %90, %91, %cst_34 {dimension_numbers = #tpu.dot_dimension_numbers<[2], [2], [1], [1], [0, 0, 0, 1, 1, 1], [0], [0]>} : vector<2x8x16xf32>, vector<2x8x16xf32>, vector<2x8x8xf32> -> vector<2x8x8xf32>
    "tpu.trace_stop"() : () -> ()
    %cst_35 = arith.constant dense<0xFF800000> : vector<2x8xf32>
    %93 = vector.multi_reduction <maximumf>, %92, %cst_35 [2] : vector<2x8x8xf32> to vector<2x8xf32>
    %94 = vector.shape_cast %93 : vector<2x8xf32> to vector<2x8x1xf32>
    %95 = vector.broadcast %94 : vector<2x8x1xf32> to vector<2x8x8xf32>
    %96 = arith.subf %92, %95 : vector<2x8x8xf32>
    %97 = math.exp %96 : vector<2x8x8xf32>
    %cst_36 = arith.constant dense<0.000000e+00> : vector<2x8xf32>
    %98 = vector.multi_reduction <add>, %97, %cst_36 [2] : vector<2x8x8xf32> to vector<2x8xf32>
    %99 = vector.shape_cast %98 : vector<2x8xf32> to vector<2x8x1xf32>
    %100 = vector.broadcast %99 : vector<2x8x1xf32> to vector<2x8x8xf32>
    %101 = arith.divf %97, %100 : vector<2x8x8xf32>
    %102 = vector.extract_strided_slice %87 {offsets = [0, 0, 0], sizes = [2, 8, 16], strides = [1, 1, 1]} : vector<2x8x32xf32> to vector<2x8x16xf32>
    "tpu.trace_start"() <{level = 10 : i32, message = "bqk,bkd->bqd"}> : () -> ()
    %cst_37 = arith.constant dense<0.000000e+00> : vector<2x8x16xf32>
    %103 = tpu.matmul %101, %102, %cst_37 {dimension_numbers = #tpu.dot_dimension_numbers<[2], [1], [1], [2], [0, 0, 0, 1, 1, 2], [0], [0]>} : vector<2x8x8xf32>, vector<2x8x16xf32>, vector<2x8x16xf32> -> vector<2x8x16xf32>
    "tpu.trace_stop"() : () -> ()
    %104 = vector.shape_cast %103 : vector<2x8x16xf32> to vector<16x16xf32>
    %105 = vector.extract_strided_slice %75 {offsets = [0, 0], sizes = [16, 32], strides = [1, 1]} : vector<32x32xf32> to vector<16x32xf32>
    %cst_38 = arith.constant dense<0.000000e+00> : vector<16x32xf32>
    %106 = tpu.matmul %104, %105, %cst_38 {dimension_numbers = #tpu.dot_dimension_numbers<[1], [0], [0], [1], [0, 0, 1, 1], [], []>} : vector<16x16xf32>, vector<16x32xf32>, vector<16x32xf32> -> vector<16x32xf32>
    %107 = vector.extract_strided_slice %83 {offsets = [0, 0, 16], sizes = [2, 8, 16], strides = [1, 1, 1]} : vector<2x8x32xf32> to vector<2x8x16xf32>
    %cst_39 = arith.constant 2.500000e-01 : f32
    %108 = vector.broadcast %cst_39 : f32 to vector<2x8x16xf32>
    %109 = arith.mulf %107, %108 : vector<2x8x16xf32>
    %110 = vector.extract_strided_slice %85 {offsets = [0, 0, 16], sizes = [2, 8, 16], strides = [1, 1, 1]} : vector<2x8x32xf32> to vector<2x8x16xf32>
    "tpu.trace_start"() <{level = 10 : i32, message = "bqd,bkd->bqk"}> : () -> ()
    %cst_40 = arith.constant dense<0.000000e+00> : vector<2x8x8xf32>
    %111 = tpu.matmul %109, %110, %cst_40 {dimension_numbers = #tpu.dot_dimension_numbers<[2], [2], [1], [1], [0, 0, 0, 1, 1, 1], [0], [0]>} : vector<2x8x16xf32>, vector<2x8x16xf32>, vector<2x8x8xf32> -> vector<2x8x8xf32>
    "tpu.trace_stop"() : () -> ()
    %cst_41 = arith.constant dense<0xFF800000> : vector<2x8xf32>
    %112 = vector.multi_reduction <maximumf>, %111, %cst_41 [2] : vector<2x8x8xf32> to vector<2x8xf32>
    %113 = vector.shape_cast %112 : vector<2x8xf32> to vector<2x8x1xf32>
    %114 = vector.broadcast %113 : vector<2x8x1xf32> to vector<2x8x8xf32>
    %115 = arith.subf %111, %114 : vector<2x8x8xf32>
    %116 = math.exp %115 : vector<2x8x8xf32>
    %cst_42 = arith.constant dense<0.000000e+00> : vector<2x8xf32>
    %117 = vector.multi_reduction <add>, %116, %cst_42 [2] : vector<2x8x8xf32> to vector<2x8xf32>
    %118 = vector.shape_cast %117 : vector<2x8xf32> to vector<2x8x1xf32>
    %119 = vector.broadcast %118 : vector<2x8x1xf32> to vector<2x8x8xf32>
    %120 = arith.divf %116, %119 : vector<2x8x8xf32>
    %121 = vector.extract_strided_slice %87 {offsets = [0, 0, 16], sizes = [2, 8, 16], strides = [1, 1, 1]} : vector<2x8x32xf32> to vector<2x8x16xf32>
    "tpu.trace_start"() <{level = 10 : i32, message = "bqk,bkd->bqd"}> : () -> ()
    %cst_43 = arith.constant dense<0.000000e+00> : vector<2x8x16xf32>
    %122 = tpu.matmul %120, %121, %cst_43 {dimension_numbers = #tpu.dot_dimension_numbers<[2], [1], [1], [2], [0, 0, 0, 1, 1, 2], [0], [0]>} : vector<2x8x8xf32>, vector<2x8x16xf32>, vector<2x8x16xf32> -> vector<2x8x16xf32>
    "tpu.trace_stop"() : () -> ()
    %123 = vector.shape_cast %122 : vector<2x8x16xf32> to vector<16x16xf32>
    %124 = vector.extract_strided_slice %75 {offsets = [16, 0], sizes = [16, 32], strides = [1, 1]} : vector<32x32xf32> to vector<16x32xf32>
    %cst_44 = arith.constant dense<0.000000e+00> : vector<16x32xf32>
    %125 = tpu.matmul %123, %124, %cst_44 {dimension_numbers = #tpu.dot_dimension_numbers<[1], [0], [0], [1], [0, 0, 1, 1], [], []>} : vector<16x16xf32>, vector<16x32xf32>, vector<16x32xf32> -> vector<16x32xf32>
    %126 = arith.addf %106, %125 : vector<16x32xf32>
    %127 = vector.broadcast %76 : vector<1x32xf32> to vector<16x32xf32>
    %128 = arith.addf %126, %127 : vector<16x32xf32>
    %c184 = arith.constant 184 : index
    %c0_45 = arith.constant 0 : index
    %129 = vector.load %arg1[%c184, %c0_45] : memref<752x32xf32, #tpu.memory_space<vmem>>, vector<1x32xf32>
    %c192 = arith.constant 192 : index
    %c0_46 = arith.constant 0 : index
    %130 = vector.load %arg1[%c192, %c0_46] : memref<752x32xf32, #tpu.memory_space<vmem>>, vector<1x32xf32>
    %131 = arith.addf %7, %128 : vector<16x32xf32>
    %cst_47 = arith.constant dense<0.000000e+00> : vector<16xf32>
    %132 = vector.multi_reduction <add>, %131, %cst_47 [1] : vector<16x32xf32> to vector<16xf32>
    %133 = vector.shape_cast %132 : vector<16xf32> to vector<16x1xf32>
    %cst_48 = arith.constant 3.200000e+01 : f32
    %134 = vector.broadcast %cst_48 : f32 to vector<16x1xf32>
    %135 = arith.divf %133, %134 : vector<16x1xf32>
    %136 = vector.broadcast %135 : vector<16x1xf32> to vector<16x32xf32>
    %137 = arith.subf %131, %136 : vector<16x32xf32>
    %138 = arith.mulf %137, %137 : vector<16x32xf32>
    %cst_49 = arith.constant dense<0.000000e+00> : vector<16xf32>
    %139 = vector.multi_reduction <add>, %138, %cst_49 [1] : vector<16x32xf32> to vector<16xf32>
    %140 = vector.shape_cast %139 : vector<16xf32> to vector<16x1xf32>
    %cst_50 = arith.constant 3.200000e+01 : f32
    %141 = vector.broadcast %cst_50 : f32 to vector<16x1xf32>
    %142 = arith.divf %140, %141 : vector<16x1xf32>
    %143 = vector.broadcast %135 : vector<16x1xf32> to vector<16x32xf32>
    %144 = arith.subf %131, %143 : vector<16x32xf32>
    %cst_51 = arith.constant 9.99999974E-6 : f32
    %145 = vector.broadcast %cst_51 : f32 to vector<16x1xf32>
    %146 = arith.addf %142, %145 : vector<16x1xf32>
    %147 = math.rsqrt %146 : vector<16x1xf32>
    %148 = vector.broadcast %147 : vector<16x1xf32> to vector<16x32xf32>
    %149 = arith.mulf %144, %148 : vector<16x32xf32>
    %150 = vector.broadcast %129 : vector<1x32xf32> to vector<16x32xf32>
    %151 = arith.mulf %149, %150 : vector<16x32xf32>
    %152 = vector.broadcast %130 : vector<1x32xf32> to vector<16x32xf32>
    %153 = arith.addf %151, %152 : vector<16x32xf32>
    %c200 = arith.constant 200 : index
    %c0_52 = arith.constant 0 : index
    %154 = vector.load %arg1[%c200, %c0_52] : memref<752x32xf32, #tpu.memory_space<vmem>>, vector<1x32xf32>
    %c208 = arith.constant 208 : index
    %c0_53 = arith.constant 0 : index
    %155 = vector.load %arg1[%c208, %c0_53] : memref<752x32xf32, #tpu.memory_space<vmem>>, vector<1x32xf32>
    %156 = arith.addf %12, %70 : vector<16x32xf32>
    %cst_54 = arith.constant dense<0.000000e+00> : vector<16xf32>
    %157 = vector.multi_reduction <add>, %156, %cst_54 [1] : vector<16x32xf32> to vector<16xf32>
    %158 = vector.shape_cast %157 : vector<16xf32> to vector<16x1xf32>
    %cst_55 = arith.constant 3.200000e+01 : f32
    %159 = vector.broadcast %cst_55 : f32 to vector<16x1xf32>
    %160 = arith.divf %158, %159 : vector<16x1xf32>
    %161 = vector.broadcast %160 : vector<16x1xf32> to vector<16x32xf32>
    %162 = arith.subf %156, %161 : vector<16x32xf32>
    %163 = arith.mulf %162, %162 : vector<16x32xf32>
    %cst_56 = arith.constant dense<0.000000e+00> : vector<16xf32>
    %164 = vector.multi_reduction <add>, %163, %cst_56 [1] : vector<16x32xf32> to vector<16xf32>
    %165 = vector.shape_cast %164 : vector<16xf32> to vector<16x1xf32>
    %cst_57 = arith.constant 3.200000e+01 : f32
    %166 = vector.broadcast %cst_57 : f32 to vector<16x1xf32>
    %167 = arith.divf %165, %166 : vector<16x1xf32>
    %168 = vector.broadcast %160 : vector<16x1xf32> to vector<16x32xf32>
    %169 = arith.subf %156, %168 : vector<16x32xf32>
    %cst_58 = arith.constant 9.99999974E-6 : f32
    %170 = vector.broadcast %cst_58 : f32 to vector<16x1xf32>
    %171 = arith.addf %167, %170 : vector<16x1xf32>
    %172 = math.rsqrt %171 : vector<16x1xf32>
    %173 = vector.broadcast %172 : vector<16x1xf32> to vector<16x32xf32>
    %174 = arith.mulf %169, %173 : vector<16x32xf32>
    %175 = vector.broadcast %154 : vector<1x32xf32> to vector<16x32xf32>
    %176 = arith.mulf %174, %175 : vector<16x32xf32>
    %177 = vector.broadcast %155 : vector<1x32xf32> to vector<16x32xf32>
    %178 = arith.addf %176, %177 : vector<16x32xf32>
    %c0_59 = arith.constant 0 : index
    %c0_60 = arith.constant 0 : index
    %179 = vector.load %arg3[%c0_59, %c0_60] : memref<80x128xf32, #tpu.memory_space<vmem>>, vector<32x128xf32>
    %cst_61 = arith.constant dense<0.000000e+00> : vector<16x128xf32>
    %180 = tpu.matmul %153, %179, %cst_61 {dimension_numbers = #tpu.dot_dimension_numbers<[1], [0], [0], [1], [0, 0, 1, 1], [], []>} : vector<16x32xf32>, vector<32x128xf32>, vector<16x128xf32> -> vector<16x128xf32>
    %c32_62 = arith.constant 32 : index
    %c0_63 = arith.constant 0 : index
    %181 = vector.load %arg3[%c32_62, %c0_63] : memref<80x128xf32, #tpu.memory_space<vmem>>, vector<1x128xf32>
    %182 = vector.broadcast %181 : vector<1x128xf32> to vector<16x128xf32>
    %183 = arith.addf %180, %182 : vector<16x128xf32>
    %184 = arith.mulf %183, %183 : vector<16x128xf32>
    %185 = arith.mulf %183, %184 : vector<16x128xf32>
    %cst_64 = arith.constant 4.471500e-02 : f32
    %186 = vector.broadcast %cst_64 : f32 to vector<16x128xf32>
    %187 = arith.mulf %186, %185 : vector<16x128xf32>
    %188 = arith.addf %183, %187 : vector<16x128xf32>
    %cst_65 = arith.constant 0.797884583 : f32
    %189 = vector.broadcast %cst_65 : f32 to vector<16x128xf32>
    %190 = arith.mulf %189, %188 : vector<16x128xf32>
    %191 = math.tanh %190 : vector<16x128xf32>
    %cst_66 = arith.constant 1.000000e+00 : f32
    %192 = vector.broadcast %cst_66 : f32 to vector<16x128xf32>
    %193 = arith.addf %192, %191 : vector<16x128xf32>
    %cst_67 = arith.constant 5.000000e-01 : f32
    %194 = vector.broadcast %cst_67 : f32 to vector<16x128xf32>
    %195 = arith.mulf %194, %193 : vector<16x128xf32>
    %196 = arith.mulf %183, %195 : vector<16x128xf32>
    %c232 = arith.constant 232 : index
    %c0_68 = arith.constant 0 : index
    %197 = vector.load %arg1[%c232, %c0_68] : memref<752x32xf32, #tpu.memory_space<vmem>>, vector<128x32xf32>
    %cst_69 = arith.constant dense<0.000000e+00> : vector<16x32xf32>
    %198 = tpu.matmul %196, %197, %cst_69 {dimension_numbers = #tpu.dot_dimension_numbers<[1], [0], [0], [1], [0, 0, 1, 1], [], []>} : vector<16x128xf32>, vector<128x32xf32>, vector<16x32xf32> -> vector<16x32xf32>
    %c360 = arith.constant 360 : index
    %c0_70 = arith.constant 0 : index
    %199 = vector.load %arg1[%c360, %c0_70] : memref<752x32xf32, #tpu.memory_space<vmem>>, vector<1x32xf32>
    %200 = vector.broadcast %199 : vector<1x32xf32> to vector<16x32xf32>
    %201 = arith.addf %198, %200 : vector<16x32xf32>
    %c216 = arith.constant 216 : index
    %c0_71 = arith.constant 0 : index
    %202 = vector.load %arg1[%c216, %c0_71] : memref<752x32xf32, #tpu.memory_space<vmem>>, vector<1x32xf32>
    %c224 = arith.constant 224 : index
    %c0_72 = arith.constant 0 : index
    %203 = vector.load %arg1[%c224, %c0_72] : memref<752x32xf32, #tpu.memory_space<vmem>>, vector<1x32xf32>
    %204 = arith.addf %153, %201 : vector<16x32xf32>
    %cst_73 = arith.constant dense<0.000000e+00> : vector<16xf32>
    %205 = vector.multi_reduction <add>, %204, %cst_73 [1] : vector<16x32xf32> to vector<16xf32>
    %206 = vector.shape_cast %205 : vector<16xf32> to vector<16x1xf32>
    %cst_74 = arith.constant 3.200000e+01 : f32
    %207 = vector.broadcast %cst_74 : f32 to vector<16x1xf32>
    %208 = arith.divf %206, %207 : vector<16x1xf32>
    %209 = vector.broadcast %208 : vector<16x1xf32> to vector<16x32xf32>
    %210 = arith.subf %204, %209 : vector<16x32xf32>
    %211 = arith.mulf %210, %210 : vector<16x32xf32>
    %cst_75 = arith.constant dense<0.000000e+00> : vector<16xf32>
    %212 = vector.multi_reduction <add>, %211, %cst_75 [1] : vector<16x32xf32> to vector<16xf32>
    %213 = vector.shape_cast %212 : vector<16xf32> to vector<16x1xf32>
    %cst_76 = arith.constant 3.200000e+01 : f32
    %214 = vector.broadcast %cst_76 : f32 to vector<16x1xf32>
    %215 = arith.divf %213, %214 : vector<16x1xf32>
    %216 = vector.broadcast %208 : vector<16x1xf32> to vector<16x32xf32>
    %217 = arith.subf %204, %216 : vector<16x32xf32>
    %cst_77 = arith.constant 9.99999974E-6 : f32
    %218 = vector.broadcast %cst_77 : f32 to vector<16x1xf32>
    %219 = arith.addf %215, %218 : vector<16x1xf32>
    %220 = math.rsqrt %219 : vector<16x1xf32>
    %221 = vector.broadcast %220 : vector<16x1xf32> to vector<16x32xf32>
    %222 = arith.mulf %217, %221 : vector<16x32xf32>
    %223 = vector.broadcast %202 : vector<1x32xf32> to vector<16x32xf32>
    %224 = arith.mulf %222, %223 : vector<16x32xf32>
    %225 = vector.broadcast %203 : vector<1x32xf32> to vector<16x32xf32>
    %226 = arith.addf %224, %225 : vector<16x32xf32>
    %c368 = arith.constant 368 : index
    %c0_78 = arith.constant 0 : index
    %227 = vector.load %arg1[%c368, %c0_78] : memref<752x32xf32, #tpu.memory_space<vmem>>, vector<32x32xf32>
    %c400 = arith.constant 400 : index
    %c0_79 = arith.constant 0 : index
    %228 = vector.load %arg1[%c400, %c0_79] : memref<752x32xf32, #tpu.memory_space<vmem>>, vector<1x32xf32>
    %c80 = arith.constant 80 : index
    %c0_80 = arith.constant 0 : index
    %229 = vector.load %arg2[%c80, %c0_80] : memref<160x64xf32, #tpu.memory_space<vmem>>, vector<32x64xf32>
    %c112 = arith.constant 112 : index
    %c0_81 = arith.constant 0 : index
    %230 = vector.load %arg2[%c112, %c0_81] : memref<160x64xf32, #tpu.memory_space<vmem>>, vector<1x64xf32>
    %c408 = arith.constant 408 : index
    %c0_82 = arith.constant 0 : index
    %231 = vector.load %arg1[%c408, %c0_82] : memref<752x32xf32, #tpu.memory_space<vmem>>, vector<32x32xf32>
    %c440 = arith.constant 440 : index
    %c0_83 = arith.constant 0 : index
    %232 = vector.load %arg1[%c440, %c0_83] : memref<752x32xf32, #tpu.memory_space<vmem>>, vector<1x32xf32>
    %cst_84 = arith.constant dense<0.000000e+00> : vector<16x32xf32>
    %233 = tpu.matmul %178, %227, %cst_84 {dimension_numbers = #tpu.dot_dimension_numbers<[1], [0], [0], [1], [0, 0, 1, 1], [], []>} : vector<16x32xf32>, vector<32x32xf32>, vector<16x32xf32> -> vector<16x32xf32>
    %234 = vector.broadcast %228 : vector<1x32xf32> to vector<16x32xf32>
    %235 = arith.addf %233, %234 : vector<16x32xf32>
    %cst_85 = arith.constant dense<0.000000e+00> : vector<16x64xf32>
    %236 = tpu.matmul %226, %229, %cst_85 {dimension_numbers = #tpu.dot_dimension_numbers<[1], [0], [0], [1], [0, 0, 1, 1], [], []>} : vector<16x32xf32>, vector<32x64xf32>, vector<16x64xf32> -> vector<16x64xf32>
    %237 = vector.broadcast %230 : vector<1x64xf32> to vector<16x64xf32>
    %238 = arith.addf %236, %237 : vector<16x64xf32>
    %239 = vector.shape_cast %235 : vector<16x32xf32> to vector<2x8x32xf32>
    %240 = vector.extract_strided_slice %238 {offsets = [0, 0], sizes = [16, 32], strides = [1, 1]} : vector<16x64xf32> to vector<16x32xf32>
    %241 = vector.shape_cast %240 : vector<16x32xf32> to vector<2x8x32xf32>
    %242 = vector.extract_strided_slice %238 {offsets = [0, 32], sizes = [16, 32], strides = [1, 1]} : vector<16x64xf32> to vector<16x32xf32>
    %243 = vector.shape_cast %242 : vector<16x32xf32> to vector<2x8x32xf32>
    %244 = vector.extract_strided_slice %239 {offsets = [0, 0, 0], sizes = [2, 8, 16], strides = [1, 1, 1]} : vector<2x8x32xf32> to vector<2x8x16xf32>
    %cst_86 = arith.constant 2.500000e-01 : f32
    %245 = vector.broadcast %cst_86 : f32 to vector<2x8x16xf32>
    %246 = arith.mulf %244, %245 : vector<2x8x16xf32>
    %247 = vector.extract_strided_slice %241 {offsets = [0, 0, 0], sizes = [2, 8, 16], strides = [1, 1, 1]} : vector<2x8x32xf32> to vector<2x8x16xf32>
    "tpu.trace_start"() <{level = 10 : i32, message = "bqd,bkd->bqk"}> : () -> ()
    %cst_87 = arith.constant dense<0.000000e+00> : vector<2x8x8xf32>
    %248 = tpu.matmul %246, %247, %cst_87 {dimension_numbers = #tpu.dot_dimension_numbers<[2], [2], [1], [1], [0, 0, 0, 1, 1, 1], [0], [0]>} : vector<2x8x16xf32>, vector<2x8x16xf32>, vector<2x8x8xf32> -> vector<2x8x8xf32>
    "tpu.trace_stop"() : () -> ()
    %cst_88 = arith.constant dense<0xFF800000> : vector<2x8xf32>
    %249 = vector.multi_reduction <maximumf>, %248, %cst_88 [2] : vector<2x8x8xf32> to vector<2x8xf32>
    %250 = vector.shape_cast %249 : vector<2x8xf32> to vector<2x8x1xf32>
    %251 = vector.broadcast %250 : vector<2x8x1xf32> to vector<2x8x8xf32>
    %252 = arith.subf %248, %251 : vector<2x8x8xf32>
    %253 = math.exp %252 : vector<2x8x8xf32>
    %cst_89 = arith.constant dense<0.000000e+00> : vector<2x8xf32>
    %254 = vector.multi_reduction <add>, %253, %cst_89 [2] : vector<2x8x8xf32> to vector<2x8xf32>
    %255 = vector.shape_cast %254 : vector<2x8xf32> to vector<2x8x1xf32>
    %256 = vector.broadcast %255 : vector<2x8x1xf32> to vector<2x8x8xf32>
    %257 = arith.divf %253, %256 : vector<2x8x8xf32>
    %258 = vector.extract_strided_slice %243 {offsets = [0, 0, 0], sizes = [2, 8, 16], strides = [1, 1, 1]} : vector<2x8x32xf32> to vector<2x8x16xf32>
    "tpu.trace_start"() <{level = 10 : i32, message = "bqk,bkd->bqd"}> : () -> ()
    %cst_90 = arith.constant dense<0.000000e+00> : vector<2x8x16xf32>
    %259 = tpu.matmul %257, %258, %cst_90 {dimension_numbers = #tpu.dot_dimension_numbers<[2], [1], [1], [2], [0, 0, 0, 1, 1, 2], [0], [0]>} : vector<2x8x8xf32>, vector<2x8x16xf32>, vector<2x8x16xf32> -> vector<2x8x16xf32>
    "tpu.trace_stop"() : () -> ()
    %260 = vector.shape_cast %259 : vector<2x8x16xf32> to vector<16x16xf32>
    %261 = vector.extract_strided_slice %231 {offsets = [0, 0], sizes = [16, 32], strides = [1, 1]} : vector<32x32xf32> to vector<16x32xf32>
    %cst_91 = arith.constant dense<0.000000e+00> : vector<16x32xf32>
    %262 = tpu.matmul %260, %261, %cst_91 {dimension_numbers = #tpu.dot_dimension_numbers<[1], [0], [0], [1], [0, 0, 1, 1], [], []>} : vector<16x16xf32>, vector<16x32xf32>, vector<16x32xf32> -> vector<16x32xf32>
    %263 = vector.extract_strided_slice %239 {offsets = [0, 0, 16], sizes = [2, 8, 16], strides = [1, 1, 1]} : vector<2x8x32xf32> to vector<2x8x16xf32>
    %cst_92 = arith.constant 2.500000e-01 : f32
    %264 = vector.broadcast %cst_92 : f32 to vector<2x8x16xf32>
    %265 = arith.mulf %263, %264 : vector<2x8x16xf32>
    %266 = vector.extract_strided_slice %241 {offsets = [0, 0, 16], sizes = [2, 8, 16], strides = [1, 1, 1]} : vector<2x8x32xf32> to vector<2x8x16xf32>
    "tpu.trace_start"() <{level = 10 : i32, message = "bqd,bkd->bqk"}> : () -> ()
    %cst_93 = arith.constant dense<0.000000e+00> : vector<2x8x8xf32>
    %267 = tpu.matmul %265, %266, %cst_93 {dimension_numbers = #tpu.dot_dimension_numbers<[2], [2], [1], [1], [0, 0, 0, 1, 1, 1], [0], [0]>} : vector<2x8x16xf32>, vector<2x8x16xf32>, vector<2x8x8xf32> -> vector<2x8x8xf32>
    "tpu.trace_stop"() : () -> ()
    %cst_94 = arith.constant dense<0xFF800000> : vector<2x8xf32>
    %268 = vector.multi_reduction <maximumf>, %267, %cst_94 [2] : vector<2x8x8xf32> to vector<2x8xf32>
    %269 = vector.shape_cast %268 : vector<2x8xf32> to vector<2x8x1xf32>
    %270 = vector.broadcast %269 : vector<2x8x1xf32> to vector<2x8x8xf32>
    %271 = arith.subf %267, %270 : vector<2x8x8xf32>
    %272 = math.exp %271 : vector<2x8x8xf32>
    %cst_95 = arith.constant dense<0.000000e+00> : vector<2x8xf32>
    %273 = vector.multi_reduction <add>, %272, %cst_95 [2] : vector<2x8x8xf32> to vector<2x8xf32>
    %274 = vector.shape_cast %273 : vector<2x8xf32> to vector<2x8x1xf32>
    %275 = vector.broadcast %274 : vector<2x8x1xf32> to vector<2x8x8xf32>
    %276 = arith.divf %272, %275 : vector<2x8x8xf32>
    %277 = vector.extract_strided_slice %243 {offsets = [0, 0, 16], sizes = [2, 8, 16], strides = [1, 1, 1]} : vector<2x8x32xf32> to vector<2x8x16xf32>
    "tpu.trace_start"() <{level = 10 : i32, message = "bqk,bkd->bqd"}> : () -> ()
    %cst_96 = arith.constant dense<0.000000e+00> : vector<2x8x16xf32>
    %278 = tpu.matmul %276, %277, %cst_96 {dimension_numbers = #tpu.dot_dimension_numbers<[2], [1], [1], [2], [0, 0, 0, 1, 1, 2], [0], [0]>} : vector<2x8x8xf32>, vector<2x8x16xf32>, vector<2x8x16xf32> -> vector<2x8x16xf32>
    "tpu.trace_stop"() : () -> ()
    %279 = vector.shape_cast %278 : vector<2x8x16xf32> to vector<16x16xf32>
    %280 = vector.extract_strided_slice %231 {offsets = [16, 0], sizes = [16, 32], strides = [1, 1]} : vector<32x32xf32> to vector<16x32xf32>
    %cst_97 = arith.constant dense<0.000000e+00> : vector<16x32xf32>
    %281 = tpu.matmul %279, %280, %cst_97 {dimension_numbers = #tpu.dot_dimension_numbers<[1], [0], [0], [1], [0, 0, 1, 1], [], []>} : vector<16x16xf32>, vector<16x32xf32>, vector<16x32xf32> -> vector<16x32xf32>
    %282 = arith.addf %262, %281 : vector<16x32xf32>
    %283 = vector.broadcast %232 : vector<1x32xf32> to vector<16x32xf32>
    %284 = arith.addf %282, %283 : vector<16x32xf32>
    %c448 = arith.constant 448 : index
    %c0_98 = arith.constant 0 : index
    %285 = vector.load %arg1[%c448, %c0_98] : memref<752x32xf32, #tpu.memory_space<vmem>>, vector<32x32xf32>
    %c480 = arith.constant 480 : index
    %c0_99 = arith.constant 0 : index
    %286 = vector.load %arg1[%c480, %c0_99] : memref<752x32xf32, #tpu.memory_space<vmem>>, vector<1x32xf32>
    %c120 = arith.constant 120 : index
    %c0_100 = arith.constant 0 : index
    %287 = vector.load %arg2[%c120, %c0_100] : memref<160x64xf32, #tpu.memory_space<vmem>>, vector<32x64xf32>
    %c152 = arith.constant 152 : index
    %c0_101 = arith.constant 0 : index
    %288 = vector.load %arg2[%c152, %c0_101] : memref<160x64xf32, #tpu.memory_space<vmem>>, vector<1x64xf32>
    %c488 = arith.constant 488 : index
    %c0_102 = arith.constant 0 : index
    %289 = vector.load %arg1[%c488, %c0_102] : memref<752x32xf32, #tpu.memory_space<vmem>>, vector<32x32xf32>
    %c520 = arith.constant 520 : index
    %c0_103 = arith.constant 0 : index
    %290 = vector.load %arg1[%c520, %c0_103] : memref<752x32xf32, #tpu.memory_space<vmem>>, vector<1x32xf32>
    %cst_104 = arith.constant dense<0.000000e+00> : vector<16x32xf32>
    %291 = tpu.matmul %226, %285, %cst_104 {dimension_numbers = #tpu.dot_dimension_numbers<[1], [0], [0], [1], [0, 0, 1, 1], [], []>} : vector<16x32xf32>, vector<32x32xf32>, vector<16x32xf32> -> vector<16x32xf32>
    %292 = vector.broadcast %286 : vector<1x32xf32> to vector<16x32xf32>
    %293 = arith.addf %291, %292 : vector<16x32xf32>
    %cst_105 = arith.constant dense<0.000000e+00> : vector<16x64xf32>
    %294 = tpu.matmul %284, %287, %cst_105 {dimension_numbers = #tpu.dot_dimension_numbers<[1], [0], [0], [1], [0, 0, 1, 1], [], []>} : vector<16x32xf32>, vector<32x64xf32>, vector<16x64xf32> -> vector<16x64xf32>
    %295 = vector.broadcast %288 : vector<1x64xf32> to vector<16x64xf32>
    %296 = arith.addf %294, %295 : vector<16x64xf32>
    %297 = vector.shape_cast %293 : vector<16x32xf32> to vector<2x8x32xf32>
    %298 = vector.extract_strided_slice %296 {offsets = [0, 0], sizes = [16, 32], strides = [1, 1]} : vector<16x64xf32> to vector<16x32xf32>
    %299 = vector.shape_cast %298 : vector<16x32xf32> to vector<2x8x32xf32>
    %300 = vector.extract_strided_slice %296 {offsets = [0, 32], sizes = [16, 32], strides = [1, 1]} : vector<16x64xf32> to vector<16x32xf32>
    %301 = vector.shape_cast %300 : vector<16x32xf32> to vector<2x8x32xf32>
    %302 = vector.extract_strided_slice %297 {offsets = [0, 0, 0], sizes = [2, 8, 16], strides = [1, 1, 1]} : vector<2x8x32xf32> to vector<2x8x16xf32>
    %cst_106 = arith.constant 2.500000e-01 : f32
    %303 = vector.broadcast %cst_106 : f32 to vector<2x8x16xf32>
    %304 = arith.mulf %302, %303 : vector<2x8x16xf32>
    %305 = vector.extract_strided_slice %299 {offsets = [0, 0, 0], sizes = [2, 8, 16], strides = [1, 1, 1]} : vector<2x8x32xf32> to vector<2x8x16xf32>
    "tpu.trace_start"() <{level = 10 : i32, message = "bqd,bkd->bqk"}> : () -> ()
    %cst_107 = arith.constant dense<0.000000e+00> : vector<2x8x8xf32>
    %306 = tpu.matmul %304, %305, %cst_107 {dimension_numbers = #tpu.dot_dimension_numbers<[2], [2], [1], [1], [0, 0, 0, 1, 1, 1], [0], [0]>} : vector<2x8x16xf32>, vector<2x8x16xf32>, vector<2x8x8xf32> -> vector<2x8x8xf32>
    "tpu.trace_stop"() : () -> ()
    %cst_108 = arith.constant dense<0xFF800000> : vector<2x8xf32>
    %307 = vector.multi_reduction <maximumf>, %306, %cst_108 [2] : vector<2x8x8xf32> to vector<2x8xf32>
    %308 = vector.shape_cast %307 : vector<2x8xf32> to vector<2x8x1xf32>
    %309 = vector.broadcast %308 : vector<2x8x1xf32> to vector<2x8x8xf32>
    %310 = arith.subf %306, %309 : vector<2x8x8xf32>
    %311 = math.exp %310 : vector<2x8x8xf32>
    %cst_109 = arith.constant dense<0.000000e+00> : vector<2x8xf32>
    %312 = vector.multi_reduction <add>, %311, %cst_109 [2] : vector<2x8x8xf32> to vector<2x8xf32>
    %313 = vector.shape_cast %312 : vector<2x8xf32> to vector<2x8x1xf32>
    %314 = vector.broadcast %313 : vector<2x8x1xf32> to vector<2x8x8xf32>
    %315 = arith.divf %311, %314 : vector<2x8x8xf32>
    %316 = vector.extract_strided_slice %301 {offsets = [0, 0, 0], sizes = [2, 8, 16], strides = [1, 1, 1]} : vector<2x8x32xf32> to vector<2x8x16xf32>
    "tpu.trace_start"() <{level = 10 : i32, message = "bqk,bkd->bqd"}> : () -> ()
    %cst_110 = arith.constant dense<0.000000e+00> : vector<2x8x16xf32>
    %317 = tpu.matmul %315, %316, %cst_110 {dimension_numbers = #tpu.dot_dimension_numbers<[2], [1], [1], [2], [0, 0, 0, 1, 1, 2], [0], [0]>} : vector<2x8x8xf32>, vector<2x8x16xf32>, vector<2x8x16xf32> -> vector<2x8x16xf32>
    "tpu.trace_stop"() : () -> ()
    %318 = vector.shape_cast %317 : vector<2x8x16xf32> to vector<16x16xf32>
    %319 = vector.extract_strided_slice %289 {offsets = [0, 0], sizes = [16, 32], strides = [1, 1]} : vector<32x32xf32> to vector<16x32xf32>
    %cst_111 = arith.constant dense<0.000000e+00> : vector<16x32xf32>
    %320 = tpu.matmul %318, %319, %cst_111 {dimension_numbers = #tpu.dot_dimension_numbers<[1], [0], [0], [1], [0, 0, 1, 1], [], []>} : vector<16x16xf32>, vector<16x32xf32>, vector<16x32xf32> -> vector<16x32xf32>
    %321 = vector.extract_strided_slice %297 {offsets = [0, 0, 16], sizes = [2, 8, 16], strides = [1, 1, 1]} : vector<2x8x32xf32> to vector<2x8x16xf32>
    %cst_112 = arith.constant 2.500000e-01 : f32
    %322 = vector.broadcast %cst_112 : f32 to vector<2x8x16xf32>
    %323 = arith.mulf %321, %322 : vector<2x8x16xf32>
    %324 = vector.extract_strided_slice %299 {offsets = [0, 0, 16], sizes = [2, 8, 16], strides = [1, 1, 1]} : vector<2x8x32xf32> to vector<2x8x16xf32>
    "tpu.trace_start"() <{level = 10 : i32, message = "bqd,bkd->bqk"}> : () -> ()
    %cst_113 = arith.constant dense<0.000000e+00> : vector<2x8x8xf32>
    %325 = tpu.matmul %323, %324, %cst_113 {dimension_numbers = #tpu.dot_dimension_numbers<[2], [2], [1], [1], [0, 0, 0, 1, 1, 1], [0], [0]>} : vector<2x8x16xf32>, vector<2x8x16xf32>, vector<2x8x8xf32> -> vector<2x8x8xf32>
    "tpu.trace_stop"() : () -> ()
    %cst_114 = arith.constant dense<0xFF800000> : vector<2x8xf32>
    %326 = vector.multi_reduction <maximumf>, %325, %cst_114 [2] : vector<2x8x8xf32> to vector<2x8xf32>
    %327 = vector.shape_cast %326 : vector<2x8xf32> to vector<2x8x1xf32>
    %328 = vector.broadcast %327 : vector<2x8x1xf32> to vector<2x8x8xf32>
    %329 = arith.subf %325, %328 : vector<2x8x8xf32>
    %330 = math.exp %329 : vector<2x8x8xf32>
    %cst_115 = arith.constant dense<0.000000e+00> : vector<2x8xf32>
    %331 = vector.multi_reduction <add>, %330, %cst_115 [2] : vector<2x8x8xf32> to vector<2x8xf32>
    %332 = vector.shape_cast %331 : vector<2x8xf32> to vector<2x8x1xf32>
    %333 = vector.broadcast %332 : vector<2x8x1xf32> to vector<2x8x8xf32>
    %334 = arith.divf %330, %333 : vector<2x8x8xf32>
    %335 = vector.extract_strided_slice %301 {offsets = [0, 0, 16], sizes = [2, 8, 16], strides = [1, 1, 1]} : vector<2x8x32xf32> to vector<2x8x16xf32>
    "tpu.trace_start"() <{level = 10 : i32, message = "bqk,bkd->bqd"}> : () -> ()
    %cst_116 = arith.constant dense<0.000000e+00> : vector<2x8x16xf32>
    %336 = tpu.matmul %334, %335, %cst_116 {dimension_numbers = #tpu.dot_dimension_numbers<[2], [1], [1], [2], [0, 0, 0, 1, 1, 2], [0], [0]>} : vector<2x8x8xf32>, vector<2x8x16xf32>, vector<2x8x16xf32> -> vector<2x8x16xf32>
    "tpu.trace_stop"() : () -> ()
    %337 = vector.shape_cast %336 : vector<2x8x16xf32> to vector<16x16xf32>
    %338 = vector.extract_strided_slice %289 {offsets = [16, 0], sizes = [16, 32], strides = [1, 1]} : vector<32x32xf32> to vector<16x32xf32>
    %cst_117 = arith.constant dense<0.000000e+00> : vector<16x32xf32>
    %339 = tpu.matmul %337, %338, %cst_117 {dimension_numbers = #tpu.dot_dimension_numbers<[1], [0], [0], [1], [0, 0, 1, 1], [], []>} : vector<16x16xf32>, vector<16x32xf32>, vector<16x32xf32> -> vector<16x32xf32>
    %340 = arith.addf %320, %339 : vector<16x32xf32>
    %341 = vector.broadcast %290 : vector<1x32xf32> to vector<16x32xf32>
    %342 = arith.addf %340, %341 : vector<16x32xf32>
    %c528 = arith.constant 528 : index
    %c0_118 = arith.constant 0 : index
    %343 = vector.load %arg1[%c528, %c0_118] : memref<752x32xf32, #tpu.memory_space<vmem>>, vector<1x32xf32>
    %c536 = arith.constant 536 : index
    %c0_119 = arith.constant 0 : index
    %344 = vector.load %arg1[%c536, %c0_119] : memref<752x32xf32, #tpu.memory_space<vmem>>, vector<1x32xf32>
    %345 = arith.addf %226, %342 : vector<16x32xf32>
    %cst_120 = arith.constant dense<0.000000e+00> : vector<16xf32>
    %346 = vector.multi_reduction <add>, %345, %cst_120 [1] : vector<16x32xf32> to vector<16xf32>
    %347 = vector.shape_cast %346 : vector<16xf32> to vector<16x1xf32>
    %cst_121 = arith.constant 3.200000e+01 : f32
    %348 = vector.broadcast %cst_121 : f32 to vector<16x1xf32>
    %349 = arith.divf %347, %348 : vector<16x1xf32>
    %350 = vector.broadcast %349 : vector<16x1xf32> to vector<16x32xf32>
    %351 = arith.subf %345, %350 : vector<16x32xf32>
    %352 = arith.mulf %351, %351 : vector<16x32xf32>
    %cst_122 = arith.constant dense<0.000000e+00> : vector<16xf32>
    %353 = vector.multi_reduction <add>, %352, %cst_122 [1] : vector<16x32xf32> to vector<16xf32>
    %354 = vector.shape_cast %353 : vector<16xf32> to vector<16x1xf32>
    %cst_123 = arith.constant 3.200000e+01 : f32
    %355 = vector.broadcast %cst_123 : f32 to vector<16x1xf32>
    %356 = arith.divf %354, %355 : vector<16x1xf32>
    %357 = vector.broadcast %349 : vector<16x1xf32> to vector<16x32xf32>
    %358 = arith.subf %345, %357 : vector<16x32xf32>
    %cst_124 = arith.constant 9.99999974E-6 : f32
    %359 = vector.broadcast %cst_124 : f32 to vector<16x1xf32>
    %360 = arith.addf %356, %359 : vector<16x1xf32>
    %361 = math.rsqrt %360 : vector<16x1xf32>
    %362 = vector.broadcast %361 : vector<16x1xf32> to vector<16x32xf32>
    %363 = arith.mulf %358, %362 : vector<16x32xf32>
    %364 = vector.broadcast %343 : vector<1x32xf32> to vector<16x32xf32>
    %365 = arith.mulf %363, %364 : vector<16x32xf32>
    %366 = vector.broadcast %344 : vector<1x32xf32> to vector<16x32xf32>
    %367 = arith.addf %365, %366 : vector<16x32xf32>
    %c40_125 = arith.constant 40 : index
    %c0_126 = arith.constant 0 : index
    %368 = vector.load %arg3[%c40_125, %c0_126] : memref<80x128xf32, #tpu.memory_space<vmem>>, vector<32x128xf32>
    %cst_127 = arith.constant dense<0.000000e+00> : vector<16x128xf32>
    %369 = tpu.matmul %367, %368, %cst_127 {dimension_numbers = #tpu.dot_dimension_numbers<[1], [0], [0], [1], [0, 0, 1, 1], [], []>} : vector<16x32xf32>, vector<32x128xf32>, vector<16x128xf32> -> vector<16x128xf32>
    %c72_128 = arith.constant 72 : index
    %c0_129 = arith.constant 0 : index
    %370 = vector.load %arg3[%c72_128, %c0_129] : memref<80x128xf32, #tpu.memory_space<vmem>>, vector<1x128xf32>
    %371 = vector.broadcast %370 : vector<1x128xf32> to vector<16x128xf32>
    %372 = arith.addf %369, %371 : vector<16x128xf32>
    %373 = arith.mulf %372, %372 : vector<16x128xf32>
    %374 = arith.mulf %372, %373 : vector<16x128xf32>
    %cst_130 = arith.constant 4.471500e-02 : f32
    %375 = vector.broadcast %cst_130 : f32 to vector<16x128xf32>
    %376 = arith.mulf %375, %374 : vector<16x128xf32>
    %377 = arith.addf %372, %376 : vector<16x128xf32>
    %cst_131 = arith.constant 0.797884583 : f32
    %378 = vector.broadcast %cst_131 : f32 to vector<16x128xf32>
    %379 = arith.mulf %378, %377 : vector<16x128xf32>
    %380 = math.tanh %379 : vector<16x128xf32>
    %cst_132 = arith.constant 1.000000e+00 : f32
    %381 = vector.broadcast %cst_132 : f32 to vector<16x128xf32>
    %382 = arith.addf %381, %380 : vector<16x128xf32>
    %cst_133 = arith.constant 5.000000e-01 : f32
    %383 = vector.broadcast %cst_133 : f32 to vector<16x128xf32>
    %384 = arith.mulf %383, %382 : vector<16x128xf32>
    %385 = arith.mulf %372, %384 : vector<16x128xf32>
    %c576 = arith.constant 576 : index
    %c0_134 = arith.constant 0 : index
    %386 = vector.load %arg1[%c576, %c0_134] : memref<752x32xf32, #tpu.memory_space<vmem>>, vector<128x32xf32>
    %cst_135 = arith.constant dense<0.000000e+00> : vector<16x32xf32>
    %387 = tpu.matmul %385, %386, %cst_135 {dimension_numbers = #tpu.dot_dimension_numbers<[1], [0], [0], [1], [0, 0, 1, 1], [], []>} : vector<16x128xf32>, vector<128x32xf32>, vector<16x32xf32> -> vector<16x32xf32>
    %c704 = arith.constant 704 : index
    %c0_136 = arith.constant 0 : index
    %388 = vector.load %arg1[%c704, %c0_136] : memref<752x32xf32, #tpu.memory_space<vmem>>, vector<1x32xf32>
    %389 = vector.broadcast %388 : vector<1x32xf32> to vector<16x32xf32>
    %390 = arith.addf %387, %389 : vector<16x32xf32>
    %c560 = arith.constant 560 : index
    %c0_137 = arith.constant 0 : index
    %391 = vector.load %arg1[%c560, %c0_137] : memref<752x32xf32, #tpu.memory_space<vmem>>, vector<1x32xf32>
    %c568 = arith.constant 568 : index
    %c0_138 = arith.constant 0 : index
    %392 = vector.load %arg1[%c568, %c0_138] : memref<752x32xf32, #tpu.memory_space<vmem>>, vector<1x32xf32>
    %393 = arith.addf %367, %390 : vector<16x32xf32>
    %cst_139 = arith.constant dense<0.000000e+00> : vector<16xf32>
    %394 = vector.multi_reduction <add>, %393, %cst_139 [1] : vector<16x32xf32> to vector<16xf32>
    %395 = vector.shape_cast %394 : vector<16xf32> to vector<16x1xf32>
    %cst_140 = arith.constant 3.200000e+01 : f32
    %396 = vector.broadcast %cst_140 : f32 to vector<16x1xf32>
    %397 = arith.divf %395, %396 : vector<16x1xf32>
    %398 = vector.broadcast %397 : vector<16x1xf32> to vector<16x32xf32>
    %399 = arith.subf %393, %398 : vector<16x32xf32>
    %400 = arith.mulf %399, %399 : vector<16x32xf32>
    %cst_141 = arith.constant dense<0.000000e+00> : vector<16xf32>
    %401 = vector.multi_reduction <add>, %400, %cst_141 [1] : vector<16x32xf32> to vector<16xf32>
    %402 = vector.shape_cast %401 : vector<16xf32> to vector<16x1xf32>
    %cst_142 = arith.constant 3.200000e+01 : f32
    %403 = vector.broadcast %cst_142 : f32 to vector<16x1xf32>
    %404 = arith.divf %402, %403 : vector<16x1xf32>
    %405 = vector.broadcast %397 : vector<16x1xf32> to vector<16x32xf32>
    %406 = arith.subf %393, %405 : vector<16x32xf32>
    %cst_143 = arith.constant 9.99999974E-6 : f32
    %407 = vector.broadcast %cst_143 : f32 to vector<16x1xf32>
    %408 = arith.addf %404, %407 : vector<16x1xf32>
    %409 = math.rsqrt %408 : vector<16x1xf32>
    %410 = vector.broadcast %409 : vector<16x1xf32> to vector<16x32xf32>
    %411 = arith.mulf %406, %410 : vector<16x32xf32>
    %412 = vector.broadcast %391 : vector<1x32xf32> to vector<16x32xf32>
    %413 = arith.mulf %411, %412 : vector<16x32xf32>
    %414 = vector.broadcast %392 : vector<1x32xf32> to vector<16x32xf32>
    %415 = arith.addf %413, %414 : vector<16x32xf32>
    %416 = vector.shape_cast %415 : vector<16x32xf32> to vector<2x8x32xf32>
    %cst_144 = arith.constant dense<0.000000e+00> : vector<2x32xf32>
    %417 = vector.multi_reduction <add>, %416, %cst_144 [1] : vector<2x8x32xf32> to vector<2x32xf32>
    %c712 = arith.constant 712 : index
    %c0_145 = arith.constant 0 : index
    %418 = vector.load %arg1[%c712, %c0_145] : memref<752x32xf32, #tpu.memory_space<vmem>>, vector<32x32xf32>
    %cst_146 = arith.constant dense<0.000000e+00> : vector<2x32xf32>
    %419 = tpu.matmul %417, %418, %cst_146 {dimension_numbers = #tpu.dot_dimension_numbers<[1], [0], [0], [1], [0, 0, 1, 1], [], []>} : vector<2x32xf32>, vector<32x32xf32>, vector<2x32xf32> -> vector<2x32xf32>
    %c744 = arith.constant 744 : index
    %c0_147 = arith.constant 0 : index
    %420 = vector.load %arg1[%c744, %c0_147] : memref<752x32xf32, #tpu.memory_space<vmem>>, vector<1x32xf32>
    %421 = vector.broadcast %420 : vector<1x32xf32> to vector<2x32xf32>
    %422 = arith.addf %419, %421 : vector<2x32xf32>
    %423 = vector.extract_strided_slice %422 {offsets = [0, 0], sizes = [2, 4], strides = [1, 1]} : vector<2x32xf32> to vector<2x4xf32>
    %c0_148 = arith.constant 0 : index
    %c0_149 = arith.constant 0 : index
    %424 = vector.load %arg4[%c0_148, %c0_149] : memref<2x4xf32, #tpu.memory_space<vmem>>, vector<2x4xf32>
    tpu.vector_store %arg4[%c0_148, %c0_149], %423 {strides = array<i32>} : memref<2x4xf32, #tpu.memory_space<vmem>>, vector<2x4xf32>,
    return
  }
}

</mosaic_0001>

<llo_original>
// kernel: luna_model_forward.1
$region0: #{luna_model_forward.1}
  #allocation0 [shape = 'u32[]', space=smem, size = 0x4, offset = 0x4, fixed_abs, tag = 'smem constant byte address 0x4 - core index']
  #allocation1 [shape = 'u32[144,128]{1,0:T(1,128)}', space=vmem, size = 0x12000, scoped, tag = 'internal scratch']
  %s0 = inlined_call_operand.vmem [shape: s32[16,1], index: 0, kind: input, shape index: {}]
  %s1 = inlined_call_operand.vmem [shape: f32[752,32], index: 1, kind: input, shape index: {}]
  %s2 = inlined_call_operand.vmem [shape: f32[160,64], index: 2, kind: input, shape index: {}]
  %s3 = inlined_call_operand.vmem [shape: f32[80,128], index: 3, kind: input, shape index: {}]
  %s4 = inlined_call_operand.hbm [shape: f32[2,4], index: 4, kind: output, shape index: {}]
  %s5 = sld [smem:[#allocation0]]
  $region26: #{luna_model_forward.1} parent=0
    _
  %s7 = ssub.s32 1, %s5
  %s8 = scalar_select 0, %s7, %s5
  $region1: #{luna_model_forward.1} parent=0
    #allocation2 [shape = 'u8[1024]{0}', space=vmem, size = 0x400, scoped, tag = 'output window, operand 0, single buffered']
    #allocation3 [shape = 's32[1]{0}', space=sflag, size = 0x4, scoped, tag = 'scoped memory for luna_model_forward.1']
    %9 = vsyncpa [#allocation3], 0
    // Predicated region
    $region2: #{luna_model_forward.1} parent=1 // pred_check
      _
    $region3: #{luna_model_forward.1} parent=1 // pred_check_branch
      %11 = sbr.rel (0) target = $region5
    $region4: #{luna_model_forward.1} parent=1 // pred_region
      _
    $region5: #{luna_model_forward.1} parent=1 // pred_fallthru
      _
    // Predicated region
    $region6: #{luna_model_forward.1} parent=1 // pred_check
      _
    $region7: #{luna_model_forward.1} parent=1 // pred_check_branch
      %13 = sbr.rel (0) target = $region9
    $region8: #{luna_model_forward.1} parent=1 // pred_region
      _
    $region9: #{luna_model_forward.1} parent=1 // pred_fallthru
      _
    // Predicated region
    $region10: #{luna_model_forward.1} parent=1 // pred_check
      _
    $region11: #{luna_model_forward.1} parent=1 // pred_check_branch
      %15 = sbr.rel (0) target = $region13
    $region12: #{luna_model_forward.1} parent=1 // pred_region
      _
    $region13: #{luna_model_forward.1} parent=1 // pred_fallthru
      _
    // Predicated region
    $region14: #{luna_model_forward.1} parent=1 // pred_check
      _
    $region15: #{luna_model_forward.1} parent=1 // pred_check_branch
      %17 = sbr.rel (0) target = $region17
    $region16: #{luna_model_forward.1} parent=1 // pred_region
      _
    $region17: #{luna_model_forward.1} parent=1 // pred_fallthru
      _
    %v18 = vld [vmem:[%s0] sm:$0xff]
    %v19 = vld [vmem:[%s0 + $0x8] sm:$0xff]
    %v20 = vlaneseq
    %v21 = vand.u32 %v20, 127
    %22 = vset.pattern.permute.xlu0 0
    %23 = vperm.xlu0 %22, %v18
    %v24 = vpop.permute.xlu0 %23
    %25 = vset.pattern.permute.xlu0 0
    %26 = vperm.xlu0 %25, %v19
    %v27 = vpop.permute.xlu0 %26
    %vm28 = vcmp.eq.s32.totalorder %v24, %v21
    %vm29 = vcmp.eq.s32.totalorder %v27, %v21
    %v30 = vsel %vm28, 1, 0
    %v31 = vsel %vm29, 1, 0
    %v32 = vcvt.s32.f32 %v30
    %v33 = vcvt.s32.f32 %v31
    %v34 = vld [vmem:[%s1] sm:$0xff]
    %v35 = vld [vmem:[%s1 + $0x8] sm:$0xff]
    %vm36 = vcmask 130048
    %v38 = vsel %vm36, %v32, 0
    %v41 = vsel %vm36, %v33, 0
    %43 = vmatprep.subr.mxu0 0.0
    %44 = vmatpush1.msra.mxu0 0.0
    %45 = vmatprep.subr.mxu0 0.0
    %46 = vmatpush1.msra.mxu0 0.0
    %47 = vmatprep.subr.mxu0 0.0
    %48 = vmatpush1.msra.mxu0 0.0
    %49 = vmatprep.subr.mxu0 0.0
    %50 = vmatpush1.msra.mxu0 0.0
    %51 = vmatprep.subr.mxu0 0.0
    %52 = vmatpush1.msra.mxu0 0.0
    %53 = vmatprep.subr.mxu0 0.0
    %54 = vmatpush1.msra.mxu0 0.0
    %55 = vmatprep.subr.mxu0 0.0
    %56 = vmatpush1.msra.mxu0 0.0
    %57 = vmatprep.subr.mxu0 0.0
    %58 = vmatpush1.msra.mxu0 0.0
    %59 = vmatprep.subr.mxu0 0.0
    %60 = vmatpush1.msra.mxu0 0.0
    %61 = vmatprep.subr.mxu0 0.0
    %62 = vmatpush1.msra.mxu0 0.0
    %63 = vmatprep.subr.mxu0 0.0
    %64 = vmatpush1.msra.mxu0 0.0
    %65 = vmatprep.subr.mxu0 0.0
    %66 = vmatpush1.msra.mxu0 0.0
    %67 = vmatprep.subr.mxu0 0.0
    %68 = vmatpush1.msra.mxu0 0.0
    %69 = vmatprep.subr.mxu0 0.0
    %70 = vmatpush1.msra.mxu0 0.0
    %71 = vmatprep.subr.mxu0 0.0
    %72 = vmatpush1.msra.mxu0 %v35
    %73 = vmatprep.subr.mxu0 0.0
    %74 = vmatpush1.msra.mxu0 %v34
    %75 = vmatprep.subr.mxu0 0.0
    %76 = vmatpush2.msra.mxu0 0.0
    %77 = vmatprep.subr.mxu0 0.0
    %78 = vmatpush2.msra.mxu0 0.0
    %79 = vmatprep.subr.mxu0 0.0
    %80 = vmatpush2.msra.mxu0 0.0
    %81 = vmatprep.subr.mxu0 0.0
    %82 = vmatpush2.msra.mxu0 0.0
    %83 = vmatprep.subr.mxu0 0.0
    %84 = vmatpush2.msra.mxu0 0.0
    %85 = vmatprep.subr.mxu0 0.0
    %86 = vmatpush2.msra.mxu0 0.0
    %87 = vmatprep.subr.mxu0 0.0
    %88 = vmatpush2.msra.mxu0 0.0
    %89 = vmatprep.subr.mxu0 0.0
    %90 = vmatpush2.msra.mxu0 0.0
    %91 = vmatprep.subr.mxu0 0.0
    %92 = vmatpush2.msra.mxu0 0.0
    %93 = vmatprep.subr.mxu0 0.0
    %94 = vmatpush2.msra.mxu0 0.0
    %95 = vmatprep.subr.mxu0 0.0
    %96 = vmatpush2.msra.mxu0 0.0
    %97 = vmatprep.subr.mxu0 0.0
    %98 = vmatpush2.msra.mxu0 0.0
    %99 = vmatprep.subr.mxu0 0.0
    %100 = vmatpush2.msra.mxu0 0.0
    %101 = vmatprep.subr.mxu0 0.0
    %102 = vmatpush2.msra.mxu0 0.0
    %103 = vmatprep.subr.mxu0 0.0
    %104 = vmatpush2.msra.mxu0 0.0
    %105 = vmatprep.subr.mxu0 0.0
    %106 = vmatpush2.msra.mxu0 0.0
    %107 = vmatprep.mubr.f32.mxu0 0.0
    %108 = vmatmul.mubr.f32.gmra.mxu0 %v38
    %v109 = vpop.f32.mrf.mxu0
    %v110 = vadd.f32 0.0, %v109
    %v111 = vpop.f32.mrf.mxu0
    %112 = vmatprep.mubr.f32.mxu0 0.0
    %113 = vmatmul.mubr.f32.gmra.mxu0 %v41
    %v114 = vpop.f32.mrf.mxu0
    %v115 = vadd.f32 0.0, %v114
    %v116 = vpop.f32.mrf.mxu0
    %117 = vdwg.mxu0
    %v118 = vld [vmem:[%s1 + $0x10] sm:$0xff]
    %v119 = vld [vmem:[%s1 + $0x18] sm:$0xff]
    %v120 = vld [vmem:[%s1 + $0x20] sm:$0xff]
    %v121 = vld [vmem:[%s1 + $0x28] sm:$0xff]
    %v122 = vld [vmem:[%s1 + $0x30] sm:$0xff]
    %v123 = vld [vmem:[%s1 + $0x38] sm:$0x1]
    %v124 = vld [vmem:[%s2] sm:$0xff]
    %v125 = vld [vmem:[%s2 + $0x8] sm:$0xff]
    %v126 = vld [vmem:[%s2 + $0x10] sm:$0xff]
    %v127 = vld [vmem:[%s2 + $0x18] sm:$0xff]
    %v128 = vld [vmem:[%s2 + $0x20] sm:$0x1]
    %v129 = vld [vmem:[%s1 + $0x40] sm:$0xff]
    %v130 = vld [vmem:[%s1 + $0x48] sm:$0xff]
    %v131 = vld [vmem:[%s1 + $0x50] sm:$0xff]
    %v132 = vld [vmem:[%s1 + $0x58] sm:$0xff]
    %v133 = vld [vmem:[%s1 + $0x60] sm:$0x1]
    %v134 = vlaneseq
    %v135 = vshrl.u32 %v134, 7
    %v136 = vsub.s32 0, %v135
    %v137 = vrot.slane %v123, %v136
    %vm138 = vcmask 261120
    %v140 = vsel %vm138, %v118, 0
    %142 = vmatprep.subr.mxu0 0.0
    %143 = vmatpush1.msra.mxu0 0.0
    %144 = vmatprep.subr.mxu0 0.0
    %145 = vmatpush1.msra.mxu0 0.0
    %146 = vmatprep.subr.mxu0 0.0
    %147 = vmatpush1.msra.mxu0 0.0
    %148 = vmatprep.subr.mxu0 0.0
    %149 = vmatpush1.msra.mxu0 0.0
    %150 = vmatprep.subr.mxu0 0.0
    %151 = vmatpush1.msra.mxu0 0.0
    %152 = vmatprep.subr.mxu0 0.0
    %153 = vmatpush1.msra.mxu0 0.0
    %154 = vmatprep.subr.mxu0 0.0
    %155 = vmatpush1.msra.mxu0 0.0
    %156 = vmatprep.subr.mxu0 0.0
    %157 = vmatpush1.msra.mxu0 0.0
    %158 = vmatprep.subr.mxu0 0.0
    %159 = vmatpush1.msra.mxu0 0.0
    %160 = vmatprep.subr.mxu0 0.0
    %161 = vmatpush1.msra.mxu0 0.0
    %162 = vmatprep.subr.mxu0 0.0
    %163 = vmatpush1.msra.mxu0 0.0
    %164 = vmatprep.subr.mxu0 0.0
    %165 = vmatpush1.msra.mxu0 0.0
    %166 = vmatprep.subr.mxu0 0.0
    %167 = vmatpush1.msra.mxu0 %v122
    %168 = vmatprep.subr.mxu0 0.0
    %169 = vmatpush1.msra.mxu0 %v121
    %170 = vmatprep.subr.mxu0 0.0
    %171 = vmatpush1.msra.mxu0 %v120
    %172 = vmatprep.subr.mxu0 0.0
    %173 = vmatpush1.msra.mxu0 %v119
    %174 = vmatprep.subr.mxu0 0.0
    %175 = vmatpush2.msra.mxu0 0.0
    %176 = vmatprep.subr.mxu0 0.0
    %177 = vmatpush2.msra.mxu0 0.0
    %178 = vmatprep.subr.mxu0 0.0
    %179 = vmatpush2.msra.mxu0 0.0
    %180 = vmatprep.subr.mxu0 0.0
    %181 = vmatpush2.msra.mxu0 0.0
    %182 = vmatprep.subr.mxu0 0.0
    %183 = vmatpush2.msra.mxu0 0.0
    %184 = vmatprep.subr.mxu0 0.0
    %185 = vmatpush2.msra.mxu0 0.0
    %186 = vmatprep.subr.mxu0 0.0
    %187 = vmatpush2.msra.mxu0 0.0
    %188 = vmatprep.subr.mxu0 0.0
    %189 = vmatpush2.msra.mxu0 0.0
    %190 = vmatprep.subr.mxu0 0.0
    %191 = vmatpush2.msra.mxu0 0.0
    %192 = vmatprep.subr.mxu0 0.0
    %193 = vmatpush2.msra.mxu0 0.0
    %194 = vmatprep.subr.mxu0 0.0
    %195 = vmatpush2.msra.mxu0 0.0
    %196 = vmatprep.subr.mxu0 0.0
    %197 = vmatpush2.msra.mxu0 0.0
    %198 = vmatprep.subr.mxu0 0.0
    %199 = vmatpush2.msra.mxu0 0.0
    %200 = vmatprep.subr.mxu0 0.0
    %201 = vmatpush2.msra.mxu0 0.0
    %202 = vmatprep.subr.mxu0 0.0
    %203 = vmatpush2.msra.mxu0 0.0
    %204 = vmatprep.subr.mxu0 0.0
    %205 = vmatpush2.msra.mxu0 0.0
    %206 = vmatprep.mubr.f32.mxu0 0.0
    %207 = vmatmul.mubr.f32.gmra.mxu0 %v140
    %v208 = vpop.f32.mrf.mxu0
    %v209 = vadd.f32 %v137, %v208
    %v210 = vpop.f32.mrf.mxu0
    %211 = vmatprep.mubr.f32.mxu0 0.0
    %212 = vmatmul.mubr.f32.gmra.mxu0 %v140
    %v213 = vpop.f32.mrf.mxu0
    %v214 = vadd.f32 %v137, %v213
    %v215 = vpop.f32.mrf.mxu0
    %216 = vdwg.mxu0
    %v217 = vlaneseq
    %v218 = vshrl.u32 %v217, 7
    %v219 = vsub.s32 0, %v218
    %v220 = vrot.slane %v128, %v219
    %v222 = vsel %vm138, %v110, 0
    %v225 = vsel %vm138, %v115, 0
    %227 = vmatprep.subr.mxu0 0.0
    %228 = vmatpush1.msra.mxu0 0.0
    %229 = vmatprep.subr.mxu0 0.0
    %230 = vmatpush1.msra.mxu0 0.0
    %231 = vmatprep.subr.mxu0 0.0
    %232 = vmatpush1.msra.mxu0 0.0
    %233 = vmatprep.subr.mxu0 0.0
    %234 = vmatpush1.msra.mxu0 0.0
    %235 = vmatprep.subr.mxu0 0.0
    %236 = vmatpush1.msra.mxu0 0.0
    %237 = vmatprep.subr.mxu0 0.0
    %238 = vmatpush1.msra.mxu0 0.0
    %239 = vmatprep.subr.mxu0 0.0
    %240 = vmatpush1.msra.mxu0 0.0
    %241 = vmatprep.subr.mxu0 0.0
    %242 = vmatpush1.msra.mxu0 0.0
    %243 = vmatprep.subr.mxu0 0.0
    %244 = vmatpush1.msra.mxu0 0.0
    %245 = vmatprep.subr.mxu0 0.0
    %246 = vmatpush1.msra.mxu0 0.0
    %247 = vmatprep.subr.mxu0 0.0
    %248 = vmatpush1.msra.mxu0 0.0
    %249 = vmatprep.subr.mxu0 0.0
    %250 = vmatpush1.msra.mxu0 0.0
    %251 = vmatprep.subr.mxu0 0.0
    %252 = vmatpush1.msra.mxu0 %v127
    %253 = vmatprep.subr.mxu0 0.0
    %254 = vmatpush1.msra.mxu0 %v126
    %255 = vmatprep.subr.mxu0 0.0
    %256 = vmatpush1.msra.mxu0 %v125
    %257 = vmatprep.subr.mxu0 0.0
    %258 = vmatpush1.msra.mxu0 %v124
    %259 = vmatprep.subr.mxu0 0.0
    %260 = vmatpush2.msra.mxu0 0.0
    %261 = vmatprep.subr.mxu0 0.0
    %262 = vmatpush2.msra.mxu0 0.0
    %263 = vmatprep.subr.mxu0 0.0
    %264 = vmatpush2.msra.mxu0 0.0
    %265 = vmatprep.subr.mxu0 0.0
    %266 = vmatpush2.msra.mxu0 0.0
    %267 = vmatprep.subr.mxu0 0.0
    %268 = vmatpush2.msra.mxu0 0.0
    %269 = vmatprep.subr.mxu0 0.0
    %270 = vmatpush2.msra.mxu0 0.0
    %271 = vmatprep.subr.mxu0 0.0
    %272 = vmatpush2.msra.mxu0 0.0
    %273 = vmatprep.subr.mxu0 0.0
    %274 = vmatpush2.msra.mxu0 0.0
    %275 = vmatprep.subr.mxu0 0.0
    %276 = vmatpush2.msra.mxu0 0.0
    %277 = vmatprep.subr.mxu0 0.0
    %278 = vmatpush2.msra.mxu0 0.0
    %279 = vmatprep.subr.mxu0 0.0
    %280 = vmatpush2.msra.mxu0 0.0
    %281 = vmatprep.subr.mxu0 0.0
    %282 = vmatpush2.msra.mxu0 0.0
    %283 = vmatprep.subr.mxu0 0.0
    %284 = vmatpush2.msra.mxu0 0.0
    %285 = vmatprep.subr.mxu0 0.0
    %286 = vmatpush2.msra.mxu0 0.0
    %287 = vmatprep.subr.mxu0 0.0
    %288 = vmatpush2.msra.mxu0 0.0
    %289 = vmatprep.subr.mxu0 0.0
    %290 = vmatpush2.msra.mxu0 0.0
    %291 = vmatprep.mubr.f32.mxu0 0.0
    %292 = vmatmul.mubr.f32.gmra.mxu0 %v222
    %v293 = vpop.f32.mrf.mxu0
    %v294 = vadd.f32 %v220, %v293
    %v295 = vpop.f32.mrf.mxu0
    %296 = vmatprep.mubr.f32.mxu0 0.0
    %297 = vmatmul.mubr.f32.gmra.mxu0 %v225
    %v298 = vpop.f32.mrf.mxu0
    %v299 = vadd.f32 %v220, %v298
    %v300 = vpop.f32.mrf.mxu0
    %301 = vdwg.mxu0
    %v302 = vmul.f32 %v209, 0.25
    %v303 = vmul.f32 %v214, 0.25
    %v305 = vsel %vm36, %v302, 0
    %v308 = vsel %vm36, %v294, 0
    %310 = vmatprep.subr.mxu0 0.0
    %311 = vmatpush1.xpose.msra.mxu0 0.0
    %312 = vmatprep.subr.mxu0 0.0
    %313 = vmatpush1.xpose.msra.mxu0 0.0
    %314 = vmatprep.subr.mxu0 0.0
    %315 = vmatpush1.xpose.msra.mxu0 0.0
    %316 = vmatprep.subr.mxu0 0.0
    %317 = vmatpush1.xpose.msra.mxu0 0.0
    %318 = vmatprep.subr.mxu0 0.0
    %319 = vmatpush1.xpose.msra.mxu0 0.0
    %320 = vmatprep.subr.mxu0 0.0
    %321 = vmatpush1.xpose.msra.mxu0 0.0
    %322 = vmatprep.subr.mxu0 0.0
    %323 = vmatpush1.xpose.msra.mxu0 0.0
    %324 = vmatprep.subr.mxu0 0.0
    %325 = vmatpush1.xpose.msra.mxu0 0.0
    %326 = vmatprep.subr.mxu0 0.0
    %327 = vmatpush1.xpose.msra.mxu0 0.0
    %328 = vmatprep.subr.mxu0 0.0
    %329 = vmatpush1.xpose.msra.mxu0 0.0
    %330 = vmatprep.subr.mxu0 0.0
    %331 = vmatpush1.xpose.msra.mxu0 0.0
    %332 = vmatprep.subr.mxu0 0.0
    %333 = vmatpush1.xpose.msra.mxu0 0.0
    %334 = vmatprep.subr.mxu0 0.0
    %335 = vmatpush1.xpose.msra.mxu0 0.0
    %336 = vmatprep.subr.mxu0 0.0
    %337 = vmatpush1.xpose.msra.mxu0 0.0
    %338 = vmatprep.subr.mxu0 0.0
    %339 = vmatpush1.xpose.msra.mxu0 0.0
    %340 = vmatprep.subr.mxu0 0.0
    %341 = vmatpush1.xpose.msra.mxu0 %v308
    %342 = vmatprep.subr.mxu0 0.0
    %343 = vmatpush2.xpose.msra.mxu0 0.0
    %344 = vmatprep.subr.mxu0 0.0
    %345 = vmatpush2.xpose.msra.mxu0 0.0
    %346 = vmatprep.subr.mxu0 0.0
    %347 = vmatpush2.xpose.msra.mxu0 0.0
    %348 = vmatprep.subr.mxu0 0.0
    %349 = vmatpush2.xpose.msra.mxu0 0.0
    %350 = vmatprep.subr.mxu0 0.0
    %351 = vmatpush2.xpose.msra.mxu0 0.0
    %352 = vmatprep.subr.mxu0 0.0
    %353 = vmatpush2.xpose.msra.mxu0 0.0
    %354 = vmatprep.subr.mxu0 0.0
    %355 = vmatpush2.xpose.msra.mxu0 0.0
    %356 = vmatprep.subr.mxu0 0.0
    %357 = vmatpush2.xpose.msra.mxu0 0.0
    %358 = vmatprep.subr.mxu0 0.0
    %359 = vmatpush2.xpose.msra.mxu0 0.0
    %360 = vmatprep.subr.mxu0 0.0
    %361 = vmatpush2.xpose.msra.mxu0 0.0
    %362 = vmatprep.subr.mxu0 0.0
    %363 = vmatpush2.xpose.msra.mxu0 0.0
    %364 = vmatprep.subr.mxu0 0.0
    %365 = vmatpush2.xpose.msra.mxu0 0.0
    %366 = vmatprep.subr.mxu0 0.0
    %367 = vmatpush2.xpose.msra.mxu0 0.0
    %368 = vmatprep.subr.mxu0 0.0
    %369 = vmatpush2.xpose.msra.mxu0 0.0
    %370 = vmatprep.subr.mxu0 0.0
    %371 = vmatpush2.xpose.msra.mxu0 0.0
    %372 = vmatprep.subr.mxu0 0.0
    %373 = vmatpush2.xpose.msra.mxu0 0.0
    %374 = vmatprep.mubr.f32.mxu0 0.0
    %375 = vmatmul.mubr.f32.gmra.mxu0 %v305
    %v376 = vpop.f32.mrf.mxu0
    %v377 = vadd.f32 0.0, %v376
    %v378 = vpop.f32.mrf.mxu0
    %379 = vdwg.mxu0
    %v381 = vsel %vm36, %v303, 0
    %v384 = vsel %vm36, %v299, 0
    %386 = vmatprep.subr.mxu0 0.0
    %387 = vmatpush1.xpose.msra.mxu0 0.0
    %388 = vmatprep.subr.mxu0 0.0
    %389 = vmatpush1.xpose.msra.mxu0 0.0
    %390 = vmatprep.subr.mxu0 0.0
    %391 = vmatpush1.xpose.msra.mxu0 0.0
    %392 = vmatprep.subr.mxu0 0.0
    %393 = vmatpush1.xpose.msra.mxu0 0.0
    %394 = vmatprep.subr.mxu0 0.0
    %395 = vmatpush1.xpose.msra.mxu0 0.0
    %396 = vmatprep.subr.mxu0 0.0
    %397 = vmatpush1.xpose.msra.mxu0 0.0
    %398 = vmatprep.subr.mxu0 0.0
    %399 = vmatpush1.xpose.msra.mxu0 0.0
    %400 = vmatprep.subr.mxu0 0.0
    %401 = vmatpush1.xpose.msra.mxu0 0.0
    %402 = vmatprep.subr.mxu0 0.0
    %403 = vmatpush1.xpose.msra.mxu0 0.0
    %404 = vmatprep.subr.mxu0 0.0
    %405 = vmatpush1.xpose.msra.mxu0 0.0
    %406 = vmatprep.subr.mxu0 0.0
    %407 = vmatpush1.xpose.msra.mxu0 0.0
    %408 = vmatprep.subr.mxu0 0.0
    %409 = vmatpush1.xpose.msra.mxu0 0.0
    %410 = vmatprep.subr.mxu0 0.0
    %411 = vmatpush1.xpose.msra.mxu0 0.0
    %412 = vmatprep.subr.mxu0 0.0
    %413 = vmatpush1.xpose.msra.mxu0 0.0
    %414 = vmatprep.subr.mxu0 0.0
    %415 = vmatpush1.xpose.msra.mxu0 0.0
    %416 = vmatprep.subr.mxu0 0.0
    %417 = vmatpush1.xpose.msra.mxu0 %v384
    %418 = vmatprep.subr.mxu0 0.0
    %419 = vmatpush2.xpose.msra.mxu0 0.0
    %420 = vmatprep.subr.mxu0 0.0
    %421 = vmatpush2.xpose.msra.mxu0 0.0
    %422 = vmatprep.subr.mxu0 0.0
    %423 = vmatpush2.xpose.msra.mxu0 0.0
    %424 = vmatprep.subr.mxu0 0.0
    %425 = vmatpush2.xpose.msra.mxu0 0.0
    %426 = vmatprep.subr.mxu0 0.0
    %427 = vmatpush2.xpose.msra.mxu0 0.0
    %428 = vmatprep.subr.mxu0 0.0
    %429 = vmatpush2.xpose.msra.mxu0 0.0
    %430 = vmatprep.subr.mxu0 0.0
    %431 = vmatpush2.xpose.msra.mxu0 0.0
    %432 = vmatprep.subr.mxu0 0.0
    %433 = vmatpush2.xpose.msra.mxu0 0.0
    %434 = vmatprep.subr.mxu0 0.0
    %435 = vmatpush2.xpose.msra.mxu0 0.0
    %436 = vmatprep.subr.mxu0 0.0
    %437 = vmatpush2.xpose.msra.mxu0 0.0
    %438 = vmatprep.subr.mxu0 0.0
    %439 = vmatpush2.xpose.msra.mxu0 0.0
    %440 = vmatprep.subr.mxu0 0.0
    %441 = vmatpush2.xpose.msra.mxu0 0.0
    %442 = vmatprep.subr.mxu0 0.0
    %443 = vmatpush2.xpose.msra.mxu0 0.0
    %444 = vmatprep.subr.mxu0 0.0
    %445 = vmatpush2.xpose.msra.mxu0 0.0
    %446 = vmatprep.subr.mxu0 0.0
    %447 = vmatpush2.xpose.msra.mxu0 0.0
    %448 = vmatprep.subr.mxu0 0.0
    %449 = vmatpush2.xpose.msra.mxu0 0.0
    %450 = vmatprep.mubr.f32.mxu0 0.0
    %451 = vmatmul.mubr.f32.gmra.mxu0 %v381
    %v452 = vpop.f32.mrf.mxu0
    %v453 = vadd.f32 0.0, %v452
    %v454 = vpop.f32.mrf.mxu0
    %455 = vdwg.mxu0
    %vm456 = vcmask 64512
    %v457 = vsel %vm456, %v377, -inf
    %458 = vmax.xlane.f32.xlu0 %v457
    %v459 = vpop.xlane.xlu0 %458
    %v460 = vsel %vm456, %v453, -inf
    %461 = vmax.xlane.f32.xlu0 %v460
    %v462 = vpop.xlane.xlu0 %461
    %v463 = vsub.f32 %v377, %v459
    %v464 = vsub.f32 %v453, %v462
    %v465 = vmul.f32 %v463, 1.442695
    %v466 = vpow.pop %v465
    %v467 = vmul.f32 %v464, 1.442695
    %v468 = vpow.pop %v467
    %v469 = vsel %vm456, %v466, 0.0
    %470 = vadd.xlane.f32.xlu0 %v469
    %v471 = vpop.xlane.xlu0 %470
    %v472 = vsel %vm456, %v468, 0.0
    %473 = vadd.xlane.f32.xlu0 %v472
    %v474 = vpop.xlane.xlu0 %473
    %v475 = vrcp.pop %v471
    %v476 = vmul.f32 %v466, %v475
    %v477 = vrcp.pop %v474
    %v478 = vmul.f32 %v468, %v477
    %479 = vrot.lane.b32.xlu0 %v294, 96
    %v480 = vpop.permute.xlu0 %479
    %v483 = vsel %vm456, %v476, 0
    %485 = vmatprep.subr.mxu0 0.0
    %486 = vmatpush1.msra.mxu0 0.0
    %487 = vmatprep.subr.mxu0 0.0
    %488 = vmatpush1.msra.mxu0 0.0
    %489 = vmatprep.subr.mxu0 0.0
    %490 = vmatpush1.msra.mxu0 0.0
    %491 = vmatprep.subr.mxu0 0.0
    %492 = vmatpush1.msra.mxu0 0.0
    %493 = vmatprep.subr.mxu0 0.0
    %494 = vmatpush1.msra.mxu0 0.0
    %495 = vmatprep.subr.mxu0 0.0
    %496 = vmatpush1.msra.mxu0 0.0
    %497 = vmatprep.subr.mxu0 0.0
    %498 = vmatpush1.msra.mxu0 0.0
    %499 = vmatprep.subr.mxu0 0.0
    %500 = vmatpush1.msra.mxu0 0.0
    %501 = vmatprep.subr.mxu0 0.0
    %502 = vmatpush1.msra.mxu0 0.0
    %503 = vmatprep.subr.mxu0 0.0
    %504 = vmatpush1.msra.mxu0 0.0
    %505 = vmatprep.subr.mxu0 0.0
    %506 = vmatpush1.msra.mxu0 0.0
    %507 = vmatprep.subr.mxu0 0.0
    %508 = vmatpush1.msra.mxu0 0.0
    %509 = vmatprep.subr.mxu0 0.0
    %510 = vmatpush1.msra.mxu0 0.0
    %511 = vmatprep.subr.mxu0 0.0
    %512 = vmatpush1.msra.mxu0 0.0
    %513 = vmatprep.subr.mxu0 0.0
    %514 = vmatpush1.msra.mxu0 0.0
    %515 = vmatprep.subr.mxu0 0.0
    %516 = vmatpush1.msra.mxu0 %v480
    %517 = vmatprep.subr.mxu0 0.0
    %518 = vmatpush2.msra.mxu0 0.0
    %519 = vmatprep.subr.mxu0 0.0
    %520 = vmatpush2.msra.mxu0 0.0
    %521 = vmatprep.subr.mxu0 0.0
    %522 = vmatpush2.msra.mxu0 0.0
    %523 = vmatprep.subr.mxu0 0.0
    %524 = vmatpush2.msra.mxu0 0.0
    %525 = vmatprep.subr.mxu0 0.0
    %526 = vmatpush2.msra.mxu0 0.0
    %527 = vmatprep.subr.mxu0 0.0
    %528 = vmatpush2.msra.mxu0 0.0
    %529 = vmatprep.subr.mxu0 0.0
    %530 = vmatpush2.msra.mxu0 0.0
    %531 = vmatprep.subr.mxu0 0.0
    %532 = vmatpush2.msra.mxu0 0.0
    %533 = vmatprep.subr.mxu0 0.0
    %534 = vmatpush2.msra.mxu0 0.0
    %535 = vmatprep.subr.mxu0 0.0
    %536 = vmatpush2.msra.mxu0 0.0
    %537 = vmatprep.subr.mxu0 0.0
    %538 = vmatpush2.msra.mxu0 0.0
    %539 = vmatprep.subr.mxu0 0.0
    %540 = vmatpush2.msra.mxu0 0.0
    %541 = vmatprep.subr.mxu0 0.0
    %542 = vmatpush2.msra.mxu0 0.0
    %543 = vmatprep.subr.mxu0 0.0
    %544 = vmatpush2.msra.mxu0 0.0
    %545 = vmatprep.subr.mxu0 0.0
    %546 = vmatpush2.msra.mxu0 0.0
    %547 = vmatprep.subr.mxu0 0.0
    %548 = vmatpush2.msra.mxu0 0.0
    %549 = vmatprep.mubr.f32.mxu0 0.0
    %550 = vmatmul.mubr.f32.gmra.mxu0 %v483
    %v551 = vpop.f32.mrf.mxu0
    %v552 = vadd.f32 0.0, %v551
    %v553 = vpop.f32.mrf.mxu0
    %554 = vdwg.mxu0
    %555 = vrot.lane.b32.xlu0 %v299, 96
    %v556 = vpop.permute.xlu0 %555
    %v559 = vsel %vm456, %v478, 0
    %561 = vmatprep.subr.mxu0 0.0
    %562 = vmatpush1.msra.mxu0 0.0
    %563 = vmatprep.subr.mxu0 0.0
    %564 = vmatpush1.msra.mxu0 0.0
    %565 = vmatprep.subr.mxu0 0.0
    %566 = vmatpush1.msra.mxu0 0.0
    %567 = vmatprep.subr.mxu0 0.0
    %568 = vmatpush1.msra.mxu0 0.0
    %569 = vmatprep.subr.mxu0 0.0
    %570 = vmatpush1.msra.mxu0 0.0
    %571 = vmatprep.subr.mxu0 0.0
    %572 = vmatpush1.msra.mxu0 0.0
    %573 = vmatprep.subr.mxu0 0.0
    %574 = vmatpush1.msra.mxu0 0.0
    %575 = vmatprep.subr.mxu0 0.0
    %576 = vmatpush1.msra.mxu0 0.0
    %577 = vmatprep.subr.mxu0 0.0
    %578 = vmatpush1.msra.mxu0 0.0
    %579 = vmatprep.subr.mxu0 0.0
    %580 = vmatpush1.msra.mxu0 0.0
    %581 = vmatprep.subr.mxu0 0.0
    %582 = vmatpush1.msra.mxu0 0.0
    %583 = vmatprep.subr.mxu0 0.0
    %584 = vmatpush1.msra.mxu0 0.0
    %585 = vmatprep.subr.mxu0 0.0
    %586 = vmatpush1.msra.mxu0 0.0
    %587 = vmatprep.subr.mxu0 0.0
    %588 = vmatpush1.msra.mxu0 0.0
    %589 = vmatprep.subr.mxu0 0.0
    %590 = vmatpush1.msra.mxu0 0.0
    %591 = vmatprep.subr.mxu0 0.0
    %592 = vmatpush1.msra.mxu0 %v556
    %593 = vmatprep.subr.mxu0 0.0
    %594 = vmatpush2.msra.mxu0 0.0
    %595 = vmatprep.subr.mxu0 0.0
    %596 = vmatpush2.msra.mxu0 0.0
    %597 = vmatprep.subr.mxu0 0.0
    %598 = vmatpush2.msra.mxu0 0.0
    %599 = vmatprep.subr.mxu0 0.0
    %600 = vmatpush2.msra.mxu0 0.0
    %601 = vmatprep.subr.mxu0 0.0
    %602 = vmatpush2.msra.mxu0 0.0
    %603 = vmatprep.subr.mxu0 0.0
    %604 = vmatpush2.msra.mxu0 0.0
    %605 = vmatprep.subr.mxu0 0.0
    %606 = vmatpush2.msra.mxu0 0.0
    %607 = vmatprep.subr.mxu0 0.0
    %608 = vmatpush2.msra.mxu0 0.0
    %609 = vmatprep.subr.mxu0 0.0
    %610 = vmatpush2.msra.mxu0 0.0
    %611 = vmatprep.subr.mxu0 0.0
    %612 = vmatpush2.msra.mxu0 0.0
    %613 = vmatprep.subr.mxu0 0.0
    %614 = vmatpush2.msra.mxu0 0.0
    %615 = vmatprep.subr.mxu0 0.0
    %616 = vmatpush2.msra.mxu0 0.0
    %617 = vmatprep.subr.mxu0 0.0
    %618 = vmatpush2.msra.mxu0 0.0
    %619 = vmatprep.subr.mxu0 0.0
    %620 = vmatpush2.msra.mxu0 0.0
    %621 = vmatprep.subr.mxu0 0.0
    %622 = vmatpush2.msra.mxu0 0.0
    %623 = vmatprep.subr.mxu0 0.0
    %624 = vmatpush2.msra.mxu0 0.0
    %625 = vmatprep.mubr.f32.mxu0 0.0
    %626 = vmatmul.mubr.f32.gmra.mxu0 %v559
    %v627 = vpop.f32.mrf.mxu0
    %v628 = vadd.f32 0.0, %v627
    %v629 = vpop.f32.mrf.mxu0
    %630 = vdwg.mxu0
    %631 = vrot.lane.b32.xlu0 %v302, 112
    %v632 = vpop.permute.xlu0 %631
    %633 = vrot.lane.b32.xlu0 %v294, 112
    %v634 = vpop.permute.xlu0 %633
    %v635 = vsel %vm36, %v632, 0
    %v637 = vsel %vm36, %v634, 0
    %639 = vmatprep.subr.mxu0 0.0
    %640 = vmatpush1.xpose.msra.mxu0 0.0
    %641 = vmatprep.subr.mxu0 0.0
    %642 = vmatpush1.xpose.msra.mxu0 0.0
    %643 = vmatprep.subr.mxu0 0.0
    %644 = vmatpush1.xpose.msra.mxu0 0.0
    %645 = vmatprep.subr.mxu0 0.0
    %646 = vmatpush1.xpose.msra.mxu0 0.0
    %647 = vmatprep.subr.mxu0 0.0
    %648 = vmatpush1.xpose.msra.mxu0 0.0
    %649 = vmatprep.subr.mxu0 0.0
    %650 = vmatpush1.xpose.msra.mxu0 0.0
    %651 = vmatprep.subr.mxu0 0.0
    %652 = vmatpush1.xpose.msra.mxu0 0.0
    %653 = vmatprep.subr.mxu0 0.0
    %654 = vmatpush1.xpose.msra.mxu0 0.0
    %655 = vmatprep.subr.mxu0 0.0
    %656 = vmatpush1.xpose.msra.mxu0 0.0
    %657 = vmatprep.subr.mxu0 0.0
    %658 = vmatpush1.xpose.msra.mxu0 0.0
    %659 = vmatprep.subr.mxu0 0.0
    %660 = vmatpush1.xpose.msra.mxu0 0.0
    %661 = vmatprep.subr.mxu0 0.0
    %662 = vmatpush1.xpose.msra.mxu0 0.0
    %663 = vmatprep.subr.mxu0 0.0
    %664 = vmatpush1.xpose.msra.mxu0 0.0
    %665 = vmatprep.subr.mxu0 0.0
    %666 = vmatpush1.xpose.msra.mxu0 0.0
    %667 = vmatprep.subr.mxu0 0.0
    %668 = vmatpush1.xpose.msra.mxu0 0.0
    %669 = vmatprep.subr.mxu0 0.0
    %670 = vmatpush1.xpose.msra.mxu0 %v637
    %671 = vmatprep.subr.mxu0 0.0
    %672 = vmatpush2.xpose.msra.mxu0 0.0
    %673 = vmatprep.subr.mxu0 0.0
    %674 = vmatpush2.xpose.msra.mxu0 0.0
    %675 = vmatprep.subr.mxu0 0.0
    %676 = vmatpush2.xpose.msra.mxu0 0.0
    %677 = vmatprep.subr.mxu0 0.0
    %678 = vmatpush2.xpose.msra.mxu0 0.0
    %679 = vmatprep.subr.mxu0 0.0
    %680 = vmatpush2.xpose.msra.mxu0 0.0
    %681 = vmatprep.subr.mxu0 0.0
    %682 = vmatpush2.xpose.msra.mxu0 0.0
    %683 = vmatprep.subr.mxu0 0.0
    %684 = vmatpush2.xpose.msra.mxu0 0.0
    %685 = vmatprep.subr.mxu0 0.0
    %686 = vmatpush2.xpose.msra.mxu0 0.0
    %687 = vmatprep.subr.mxu0 0.0
    %688 = vmatpush2.xpose.msra.mxu0 0.0
    %689 = vmatprep.subr.mxu0 0.0
    %690 = vmatpush2.xpose.msra.mxu0 0.0
    %691 = vmatprep.subr.mxu0 0.0
    %692 = vmatpush2.xpose.msra.mxu0 0.0
    %693 = vmatprep.subr.mxu0 0.0
    %694 = vmatpush2.xpose.msra.mxu0 0.0
    %695 = vmatprep.subr.mxu0 0.0
    %696 = vmatpush2.xpose.msra.mxu0 0.0
    %697 = vmatprep.subr.mxu0 0.0
    %698 = vmatpush2.xpose.msra.mxu0 0.0
    %699 = vmatprep.subr.mxu0 0.0
    %700 = vmatpush2.xpose.msra.mxu0 0.0
    %701 = vmatprep.subr.mxu0 0.0
    %702 = vmatpush2.xpose.msra.mxu0 0.0
    %703 = vmatprep.mubr.f32.mxu0 0.0
    %704 = vmatmul.mubr.f32.gmra.mxu0 %v635
    %v705 = vpop.f32.mrf.mxu0
    %v706 = vadd.f32 0.0, %v705
    %v707 = vpop.f32.mrf.mxu0
    %708 = vdwg.mxu0
    %709 = vrot.lane.b32.xlu0 %v303, 112
    %v710 = vpop.permute.xlu0 %709
    %711 = vrot.lane.b32.xlu0 %v299, 112
    %v712 = vpop.permute.xlu0 %711
    %v713 = vsel %vm36, %v710, 0
    %v715 = vsel %vm36, %v712, 0
    %717 = vmatprep.subr.mxu0 0.0
    %718 = vmatpush1.xpose.msra.mxu0 0.0
    %719 = vmatprep.subr.mxu0 0.0
    %720 = vmatpush1.xpose.msra.mxu0 0.0
    %721 = vmatprep.subr.mxu0 0.0
    %722 = vmatpush1.xpose.msra.mxu0 0.0
    %723 = vmatprep.subr.mxu0 0.0
    %724 = vmatpush1.xpose.msra.mxu0 0.0
    %725 = vmatprep.subr.mxu0 0.0
    %726 = vmatpush1.xpose.msra.mxu0 0.0
    %727 = vmatprep.subr.mxu0 0.0
    %728 = vmatpush1.xpose.msra.mxu0 0.0
    %729 = vmatprep.subr.mxu0 0.0
    %730 = vmatpush1.xpose.msra.mxu0 0.0
    %731 = vmatprep.subr.mxu0 0.0
    %732 = vmatpush1.xpose.msra.mxu0 0.0
    %733 = vmatprep.subr.mxu0 0.0
    %734 = vmatpush1.xpose.msra.mxu0 0.0
    %735 = vmatprep.subr.mxu0 0.0
    %736 = vmatpush1.xpose.msra.mxu0 0.0
    %737 = vmatprep.subr.mxu0 0.0
    %738 = vmatpush1.xpose.msra.mxu0 0.0
    %739 = vmatprep.subr.mxu0 0.0
    %740 = vmatpush1.xpose.msra.mxu0 0.0
    %741 = vmatprep.subr.mxu0 0.0
    %742 = vmatpush1.xpose.msra.mxu0 0.0
    %743 = vmatprep.subr.mxu0 0.0
    %744 = vmatpush1.xpose.msra.mxu0 0.0
    %745 = vmatprep.subr.mxu0 0.0
    %746 = vmatpush1.xpose.msra.mxu0 0.0
    %747 = vmatprep.subr.mxu0 0.0
    %748 = vmatpush1.xpose.msra.mxu0 %v715
    %749 = vmatprep.subr.mxu0 0.0
    %750 = vmatpush2.xpose.msra.mxu0 0.0
    %751 = vmatprep.subr.mxu0 0.0
    %752 = vmatpush2.xpose.msra.mxu0 0.0
    %753 = vmatprep.subr.mxu0 0.0
    %754 = vmatpush2.xpose.msra.mxu0 0.0
    %755 = vmatprep.subr.mxu0 0.0
    %756 = vmatpush2.xpose.msra.mxu0 0.0
    %757 = vmatprep.subr.mxu0 0.0
    %758 = vmatpush2.xpose.msra.mxu0 0.0
    %759 = vmatprep.subr.mxu0 0.0
    %760 = vmatpush2.xpose.msra.mxu0 0.0
    %761 = vmatprep.subr.mxu0 0.0
    %762 = vmatpush2.xpose.msra.mxu0 0.0
    %763 = vmatprep.subr.mxu0 0.0
    %764 = vmatpush2.xpose.msra.mxu0 0.0
    %765 = vmatprep.subr.mxu0 0.0
    %766 = vmatpush2.xpose.msra.mxu0 0.0
    %767 = vmatprep.subr.mxu0 0.0
    %768 = vmatpush2.xpose.msra.mxu0 0.0
    %769 = vmatprep.subr.mxu0 0.0
    %770 = vmatpush2.xpose.msra.mxu0 0.0
    %771 = vmatprep.subr.mxu0 0.0
    %772 = vmatpush2.xpose.msra.mxu0 0.0
    %773 = vmatprep.subr.mxu0 0.0
    %774 = vmatpush2.xpose.msra.mxu0 0.0
    %775 = vmatprep.subr.mxu0 0.0
    %776 = vmatpush2.xpose.msra.mxu0 0.0
    %777 = vmatprep.subr.mxu0 0.0
    %778 = vmatpush2.xpose.msra.mxu0 0.0
    %779 = vmatprep.subr.mxu0 0.0
    %780 = vmatpush2.xpose.msra.mxu0 0.0
    %781 = vmatprep.mubr.f32.mxu0 0.0
    %782 = vmatmul.mubr.f32.gmra.mxu0 %v713
    %v783 = vpop.f32.mrf.mxu0
    %v784 = vadd.f32 0.0, %v783
    %v785 = vpop.f32.mrf.mxu0
    %786 = vdwg.mxu0
    %v787 = vsel %vm456, %v706, -inf
    %788 = vmax.xlane.f32.xlu0 %v787
    %v789 = vpop.xlane.xlu0 %788
    %v790 = vsel %vm456, %v784, -inf
    %791 = vmax.xlane.f32.xlu0 %v790
    %v792 = vpop.xlane.xlu0 %791
    %v793 = vsub.f32 %v706, %v789
    %v794 = vsub.f32 %v784, %v792
    %v795 = vmul.f32 %v793, 1.442695
    %v796 = vpow.pop %v795
    %v797 = vmul.f32 %v794, 1.442695
    %v798 = vpow.pop %v797
    %v799 = vsel %vm456, %v796, 0.0
    %800 = vadd.xlane.f32.xlu0 %v799
    %v801 = vpop.xlane.xlu0 %800
    %v802 = vsel %vm456, %v798, 0.0
    %803 = vadd.xlane.f32.xlu0 %v802
    %v804 = vpop.xlane.xlu0 %803
    %v805 = vrcp.pop %v801
    %v806 = vmul.f32 %v796, %v805
    %v807 = vrcp.pop %v804
    %v808 = vmul.f32 %v798, %v807
    %809 = vrot.lane.b32.xlu0 %v294, 80
    %v810 = vpop.permute.xlu0 %809
    %v813 = vsel %vm456, %v806, 0
    %815 = vmatprep.subr.mxu0 0.0
    %816 = vmatpush1.msra.mxu0 0.0
    %817 = vmatprep.subr.mxu0 0.0
    %818 = vmatpush1.msra.mxu0 0.0
    %819 = vmatprep.subr.mxu0 0.0
    %820 = vmatpush1.msra.mxu0 0.0
    %821 = vmatprep.subr.mxu0 0.0
    %822 = vmatpush1.msra.mxu0 0.0
    %823 = vmatprep.subr.mxu0 0.0
    %824 = vmatpush1.msra.mxu0 0.0
    %825 = vmatprep.subr.mxu0 0.0
    %826 = vmatpush1.msra.mxu0 0.0
    %827 = vmatprep.subr.mxu0 0.0
    %828 = vmatpush1.msra.mxu0 0.0
    %829 = vmatprep.subr.mxu0 0.0
    %830 = vmatpush1.msra.mxu0 0.0
    %831 = vmatprep.subr.mxu0 0.0
    %832 = vmatpush1.msra.mxu0 0.0
    %833 = vmatprep.subr.mxu0 0.0
    %834 = vmatpush1.msra.mxu0 0.0
    %835 = vmatprep.subr.mxu0 0.0
    %836 = vmatpush1.msra.mxu0 0.0
    %837 = vmatprep.subr.mxu0 0.0
    %838 = vmatpush1.msra.mxu0 0.0
    %839 = vmatprep.subr.mxu0 0.0
    %840 = vmatpush1.msra.mxu0 0.0
    %841 = vmatprep.subr.mxu0 0.0
    %842 = vmatpush1.msra.mxu0 0.0
    %843 = vmatprep.subr.mxu0 0.0
    %844 = vmatpush1.msra.mxu0 0.0
    %845 = vmatprep.subr.mxu0 0.0
    %846 = vmatpush1.msra.mxu0 %v810
    %847 = vmatprep.subr.mxu0 0.0
    %848 = vmatpush2.msra.mxu0 0.0
    %849 = vmatprep.subr.mxu0 0.0
    %850 = vmatpush2.msra.mxu0 0.0
    %851 = vmatprep.subr.mxu0 0.0
    %852 = vmatpush2.msra.mxu0 0.0
    %853 = vmatprep.subr.mxu0 0.0
    %854 = vmatpush2.msra.mxu0 0.0
    %855 = vmatprep.subr.mxu0 0.0
    %856 = vmatpush2.msra.mxu0 0.0
    %857 = vmatprep.subr.mxu0 0.0
    %858 = vmatpush2.msra.mxu0 0.0
    %859 = vmatprep.subr.mxu0 0.0
    %860 = vmatpush2.msra.mxu0 0.0
    %861 = vmatprep.subr.mxu0 0.0
    %862 = vmatpush2.msra.mxu0 0.0
    %863 = vmatprep.subr.mxu0 0.0
    %864 = vmatpush2.msra.mxu0 0.0
    %865 = vmatprep.subr.mxu0 0.0
    %866 = vmatpush2.msra.mxu0 0.0
    %867 = vmatprep.subr.mxu0 0.0
    %868 = vmatpush2.msra.mxu0 0.0
    %869 = vmatprep.subr.mxu0 0.0
    %870 = vmatpush2.msra.mxu0 0.0
    %871 = vmatprep.subr.mxu0 0.0
    %872 = vmatpush2.msra.mxu0 0.0
    %873 = vmatprep.subr.mxu0 0.0
    %874 = vmatpush2.msra.mxu0 0.0
    %875 = vmatprep.subr.mxu0 0.0
    %876 = vmatpush2.msra.mxu0 0.0
    %877 = vmatprep.subr.mxu0 0.0
    %878 = vmatpush2.msra.mxu0 0.0
    %879 = vmatprep.mubr.f32.mxu0 0.0
    %880 = vmatmul.mubr.f32.gmra.mxu0 %v813
    %v881 = vpop.f32.mrf.mxu0
    %v882 = vadd.f32 0.0, %v881
    %v883 = vpop.f32.mrf.mxu0
    %884 = vdwg.mxu0
    %885 = vrot.lane.b32.xlu0 %v299, 80
    %v886 = vpop.permute.xlu0 %885
    %v889 = vsel %vm456, %v808, 0
    %891 = vmatprep.subr.mxu0 0.0
    %892 = vmatpush1.msra.mxu0 0.0
    %893 = vmatprep.subr.mxu0 0.0
    %894 = vmatpush1.msra.mxu0 0.0
    %895 = vmatprep.subr.mxu0 0.0
    %896 = vmatpush1.msra.mxu0 0.0
    %897 = vmatprep.subr.mxu0 0.0
    %898 = vmatpush1.msra.mxu0 0.0
    %899 = vmatprep.subr.mxu0 0.0
    %900 = vmatpush1.msra.mxu0 0.0
    %901 = vmatprep.subr.mxu0 0.0
    %902 = vmatpush1.msra.mxu0 0.0
    %903 = vmatprep.subr.mxu0 0.0
    %904 = vmatpush1.msra.mxu0 0.0
    %905 = vmatprep.subr.mxu0 0.0
    %906 = vmatpush1.msra.mxu0 0.0
    %907 = vmatprep.subr.mxu0 0.0
    %908 = vmatpush1.msra.mxu0 0.0
    %909 = vmatprep.subr.mxu0 0.0
    %910 = vmatpush1.msra.mxu0 0.0
    %911 = vmatprep.subr.mxu0 0.0
    %912 = vmatpush1.msra.mxu0 0.0
    %913 = vmatprep.subr.mxu0 0.0
    %914 = vmatpush1.msra.mxu0 0.0
    %915 = vmatprep.subr.mxu0 0.0
    %916 = vmatpush1.msra.mxu0 0.0
    %917 = vmatprep.subr.mxu0 0.0
    %918 = vmatpush1.msra.mxu0 0.0
    %919 = vmatprep.subr.mxu0 0.0
    %920 = vmatpush1.msra.mxu0 0.0
    %921 = vmatprep.subr.mxu0 0.0
    %922 = vmatpush1.msra.mxu0 %v886
    %923 = vmatprep.subr.mxu0 0.0
    %924 = vmatpush2.msra.mxu0 0.0
    %925 = vmatprep.subr.mxu0 0.0
    %926 = vmatpush2.msra.mxu0 0.0
    %927 = vmatprep.subr.mxu0 0.0
    %928 = vmatpush2.msra.mxu0 0.0
    %929 = vmatprep.subr.mxu0 0.0
    %930 = vmatpush2.msra.mxu0 0.0
    %931 = vmatprep.subr.mxu0 0.0
    %932 = vmatpush2.msra.mxu0 0.0
    %933 = vmatprep.subr.mxu0 0.0
    %934 = vmatpush2.msra.mxu0 0.0
    %935 = vmatprep.subr.mxu0 0.0
    %936 = vmatpush2.msra.mxu0 0.0
    %937 = vmatprep.subr.mxu0 0.0
    %938 = vmatpush2.msra.mxu0 0.0
    %939 = vmatprep.subr.mxu0 0.0
    %940 = vmatpush2.msra.mxu0 0.0
    %941 = vmatprep.subr.mxu0 0.0
    %942 = vmatpush2.msra.mxu0 0.0
    %943 = vmatprep.subr.mxu0 0.0
    %944 = vmatpush2.msra.mxu0 0.0
    %945 = vmatprep.subr.mxu0 0.0
    %946 = vmatpush2.msra.mxu0 0.0
    %947 = vmatprep.subr.mxu0 0.0
    %948 = vmatpush2.msra.mxu0 0.0
    %949 = vmatprep.subr.mxu0 0.0
    %950 = vmatpush2.msra.mxu0 0.0
    %951 = vmatprep.subr.mxu0 0.0
    %952 = vmatpush2.msra.mxu0 0.0
    %953 = vmatprep.subr.mxu0 0.0
    %954 = vmatpush2.msra.mxu0 0.0
    %955 = vmatprep.mubr.f32.mxu0 0.0
    %956 = vmatmul.mubr.f32.gmra.mxu0 %v889
    %v957 = vpop.f32.mrf.mxu0
    %v958 = vadd.f32 0.0, %v957
    %v959 = vpop.f32.mrf.mxu0
    %960 = vdwg.mxu0
    %v962 = vsel %vm36, %v882, 0
    %v965 = vsel %vm36, %v958, 0
    %967 = vmatprep.subr.mxu0 0.0
    %968 = vmatpush1.msra.mxu0 0.0
    %969 = vmatprep.subr.mxu0 0.0
    %970 = vmatpush1.msra.mxu0 0.0
    %971 = vmatprep.subr.mxu0 0.0
    %972 = vmatpush1.msra.mxu0 0.0
    %973 = vmatprep.subr.mxu0 0.0
    %974 = vmatpush1.msra.mxu0 0.0
    %975 = vmatprep.subr.mxu0 0.0
    %976 = vmatpush1.msra.mxu0 0.0
    %977 = vmatprep.subr.mxu0 0.0
    %978 = vmatpush1.msra.mxu0 0.0
    %979 = vmatprep.subr.mxu0 0.0
    %980 = vmatpush1.msra.mxu0 0.0
    %981 = vmatprep.subr.mxu0 0.0
    %982 = vmatpush1.msra.mxu0 0.0
    %983 = vmatprep.subr.mxu0 0.0
    %984 = vmatpush1.msra.mxu0 0.0
    %985 = vmatprep.subr.mxu0 0.0
    %986 = vmatpush1.msra.mxu0 0.0
    %987 = vmatprep.subr.mxu0 0.0
    %988 = vmatpush1.msra.mxu0 0.0
    %989 = vmatprep.subr.mxu0 0.0
    %990 = vmatpush1.msra.mxu0 0.0
    %991 = vmatprep.subr.mxu0 0.0
    %992 = vmatpush1.msra.mxu0 0.0
    %993 = vmatprep.subr.mxu0 0.0
    %994 = vmatpush1.msra.mxu0 0.0
    %995 = vmatprep.subr.mxu0 0.0
    %996 = vmatpush1.msra.mxu0 %v132
    %997 = vmatprep.subr.mxu0 0.0
    %998 = vmatpush1.msra.mxu0 %v131
    %999 = vmatprep.subr.mxu0 0.0
    %1000 = vmatpush2.msra.mxu0 0.0
    %1001 = vmatprep.subr.mxu0 0.0
    %1002 = vmatpush2.msra.mxu0 0.0
    %1003 = vmatprep.subr.mxu0 0.0
    %1004 = vmatpush2.msra.mxu0 0.0
    %1005 = vmatprep.subr.mxu0 0.0
    %1006 = vmatpush2.msra.mxu0 0.0
    %1007 = vmatprep.subr.mxu0 0.0
    %1008 = vmatpush2.msra.mxu0 0.0
    %1009 = vmatprep.subr.mxu0 0.0
    %1010 = vmatpush2.msra.mxu0 0.0
    %1011 = vmatprep.subr.mxu0 0.0
    %1012 = vmatpush2.msra.mxu0 0.0
    %1013 = vmatprep.subr.mxu0 0.0
    %1014 = vmatpush2.msra.mxu0 0.0
    %1015 = vmatprep.subr.mxu0 0.0
    %1016 = vmatpush2.msra.mxu0 0.0
    %1017 = vmatprep.subr.mxu0 0.0
    %1018 = vmatpush2.msra.mxu0 0.0
    %1019 = vmatprep.subr.mxu0 0.0
    %1020 = vmatpush2.msra.mxu0 0.0
    %1021 = vmatprep.subr.mxu0 0.0
    %1022 = vmatpush2.msra.mxu0 0.0
    %1023 = vmatprep.subr.mxu0 0.0
    %1024 = vmatpush2.msra.mxu0 0.0
    %1025 = vmatprep.subr.mxu0 0.0
    %1026 = vmatpush2.msra.mxu0 0.0
    %1027 = vmatprep.subr.mxu0 0.0
    %1028 = vmatpush2.msra.mxu0 0.0
    %1029 = vmatprep.subr.mxu0 0.0
    %1030 = vmatpush2.msra.mxu0 0.0
    %1031 = vmatprep.mubr.f32.mxu0 0.0
    %1032 = vmatmul.mubr.f32.gmra.mxu0 %v962
    %v1033 = vpop.f32.mrf.mxu0
    %v1034 = vadd.f32 0.0, %v1033
    %v1035 = vpop.f32.mrf.mxu0
    %1036 = vmatprep.mubr.f32.mxu0 0.0
    %1037 = vmatmul.mubr.f32.gmra.mxu0 %v965
    %v1038 = vpop.f32.mrf.mxu0
    %v1039 = vadd.f32 0.0, %v1038
    %v1040 = vpop.f32.mrf.mxu0
    %1041 = vdwg.mxu0
    %v1043 = vsel %vm36, %v552, 0
    %v1046 = vsel %vm36, %v628, 0
    %1048 = vmatprep.subr.mxu0 0.0
    %1049 = vmatpush1.msra.mxu0 0.0
    %1050 = vmatprep.subr.mxu0 0.0
    %1051 = vmatpush1.msra.mxu0 0.0
    %1052 = vmatprep.subr.mxu0 0.0
    %1053 = vmatpush1.msra.mxu0 0.0
    %1054 = vmatprep.subr.mxu0 0.0
    %1055 = vmatpush1.msra.mxu0 0.0
    %1056 = vmatprep.subr.mxu0 0.0
    %1057 = vmatpush1.msra.mxu0 0.0
    %1058 = vmatprep.subr.mxu0 0.0
    %1059 = vmatpush1.msra.mxu0 0.0
    %1060 = vmatprep.subr.mxu0 0.0
    %1061 = vmatpush1.msra.mxu0 0.0
    %1062 = vmatprep.subr.mxu0 0.0
    %1063 = vmatpush1.msra.mxu0 0.0
    %1064 = vmatprep.subr.mxu0 0.0
    %1065 = vmatpush1.msra.mxu0 0.0
    %1066 = vmatprep.subr.mxu0 0.0
    %1067 = vmatpush1.msra.mxu0 0.0
    %1068 = vmatprep.subr.mxu0 0.0
    %1069 = vmatpush1.msra.mxu0 0.0
    %1070 = vmatprep.subr.mxu0 0.0
    %1071 = vmatpush1.msra.mxu0 0.0
    %1072 = vmatprep.subr.mxu0 0.0
    %1073 = vmatpush1.msra.mxu0 0.0
    %1074 = vmatprep.subr.mxu0 0.0
    %1075 = vmatpush1.msra.mxu0 0.0
    %1076 = vmatprep.subr.mxu0 0.0
    %1077 = vmatpush1.msra.mxu0 %v130
    %1078 = vmatprep.subr.mxu0 0.0
    %1079 = vmatpush1.msra.mxu0 %v129
    %1080 = vmatprep.subr.mxu0 0.0
    %1081 = vmatpush2.msra.mxu0 0.0
    %1082 = vmatprep.subr.mxu0 0.0
    %1083 = vmatpush2.msra.mxu0 0.0
    %1084 = vmatprep.subr.mxu0 0.0
    %1085 = vmatpush2.msra.mxu0 0.0
    %1086 = vmatprep.subr.mxu0 0.0
    %1087 = vmatpush2.msra.mxu0 0.0
    %1088 = vmatprep.subr.mxu0 0.0
    %1089 = vmatpush2.msra.mxu0 0.0
    %1090 = vmatprep.subr.mxu0 0.0
    %1091 = vmatpush2.msra.mxu0 0.0
    %1092 = vmatprep.subr.mxu0 0.0
    %1093 = vmatpush2.msra.mxu0 0.0
    %1094 = vmatprep.subr.mxu0 0.0
    %1095 = vmatpush2.msra.mxu0 0.0
    %1096 = vmatprep.subr.mxu0 0.0
    %1097 = vmatpush2.msra.mxu0 0.0
    %1098 = vmatprep.subr.mxu0 0.0
    %1099 = vmatpush2.msra.mxu0 0.0
    %1100 = vmatprep.subr.mxu0 0.0
    %1101 = vmatpush2.msra.mxu0 0.0
    %1102 = vmatprep.subr.mxu0 0.0
    %1103 = vmatpush2.msra.mxu0 0.0
    %1104 = vmatprep.subr.mxu0 0.0
    %1105 = vmatpush2.msra.mxu0 0.0
    %1106 = vmatprep.subr.mxu0 0.0
    %1107 = vmatpush2.msra.mxu0 0.0
    %1108 = vmatprep.subr.mxu0 0.0
    %1109 = vmatpush2.msra.mxu0 0.0
    %1110 = vmatprep.subr.mxu0 0.0
    %1111 = vmatpush2.msra.mxu0 0.0
    %1112 = vmatprep.mubr.f32.mxu0 0.0
    %1113 = vmatmul.mubr.f32.gmra.mxu0 %v1043
    %v1114 = vpop.f32.mrf.mxu0
    %v1115 = vadd.f32 %v1034, %v1114
    %v1116 = vpop.f32.mrf.mxu0
    %1117 = vmatprep.mubr.f32.mxu0 0.0
    %1118 = vmatmul.mubr.f32.gmra.mxu0 %v1046
    %v1119 = vpop.f32.mrf.mxu0
    %v1120 = vadd.f32 %v1039, %v1119
    %v1121 = vpop.f32.mrf.mxu0
    %1122 = vdwg.mxu0
    %v1123 = vlaneseq
    %v1124 = vshrl.u32 %v1123, 7
    %v1125 = vsub.s32 0, %v1124
    %v1126 = vrot.slane %v133, %v1125
    %v1127 = vadd.f32 %v1115, %v1126
    %v1128 = vadd.f32 %v1120, %v1126
    %v1129 = vld [vmem:[%s1 + $0x68] sm:$0xff]
    %v1130 = vld [vmem:[%s1 + $0x70] sm:$0xff]
    %v1131 = vld [vmem:[%s1 + $0x78] sm:$0xff]
    %v1132 = vld [vmem:[%s1 + $0x80] sm:$0xff]
    %v1133 = vld [vmem:[%s1 + $0x88] sm:$0x1]
    %v1134 = vld [vmem:[%s2 + $0x28] sm:$0xff]
    %v1135 = vld [vmem:[%s2 + $0x30] sm:$0xff]
    %v1136 = vld [vmem:[%s2 + $0x38] sm:$0xff]
    %v1137 = vld [vmem:[%s2 + $0x40] sm:$0xff]
    %v1138 = vld [vmem:[%s2 + $0x48] sm:$0x1]
    %v1139 = vld [vmem:[%s1 + $0x90] sm:$0xff]
    %v1140 = vld [vmem:[%s1 + $0x98] sm:$0xff]
    %v1141 = vld [vmem:[%s1 + $0xa0] sm:$0xff]
    %v1142 = vld [vmem:[%s1 + $0xa8] sm:$0xff]
    %v1143 = vld [vmem:[%s1 + $0xb0] sm:$0x1]
    %v1144 = vlaneseq
    %v1145 = vshrl.u32 %v1144, 7
    %v1146 = vsub.s32 0, %v1145
    %v1147 = vrot.slane %v1133, %v1146
    %1148 = vmatprep.subr.mxu0 0.0
    %1149 = vmatpush1.msra.mxu0 0.0
    %1150 = vmatprep.subr.mxu0 0.0
    %1151 = vmatpush1.msra.mxu0 0.0
    %1152 = vmatprep.subr.mxu0 0.0
    %1153 = vmatpush1.msra.mxu0 0.0
    %1154 = vmatprep.subr.mxu0 0.0
    %1155 = vmatpush1.msra.mxu0 0.0
    %1156 = vmatprep.subr.mxu0 0.0
    %1157 = vmatpush1.msra.mxu0 0.0
    %1158 = vmatprep.subr.mxu0 0.0
    %1159 = vmatpush1.msra.mxu0 0.0
    %1160 = vmatprep.subr.mxu0 0.0
    %1161 = vmatpush1.msra.mxu0 0.0
    %1162 = vmatprep.subr.mxu0 0.0
    %1163 = vmatpush1.msra.mxu0 0.0
    %1164 = vmatprep.subr.mxu0 0.0
    %1165 = vmatpush1.msra.mxu0 0.0
    %1166 = vmatprep.subr.mxu0 0.0
    %1167 = vmatpush1.msra.mxu0 0.0
    %1168 = vmatprep.subr.mxu0 0.0
    %1169 = vmatpush1.msra.mxu0 0.0
    %1170 = vmatprep.subr.mxu0 0.0
    %1171 = vmatpush1.msra.mxu0 0.0
    %1172 = vmatprep.subr.mxu0 0.0
    %1173 = vmatpush1.msra.mxu0 %v1132
    %1174 = vmatprep.subr.mxu0 0.0
    %1175 = vmatpush1.msra.mxu0 %v1131
    %1176 = vmatprep.subr.mxu0 0.0
    %1177 = vmatpush1.msra.mxu0 %v1130
    %1178 = vmatprep.subr.mxu0 0.0
    %1179 = vmatpush1.msra.mxu0 %v1129
    %1180 = vmatprep.subr.mxu0 0.0
    %1181 = vmatpush2.msra.mxu0 0.0
    %1182 = vmatprep.subr.mxu0 0.0
    %1183 = vmatpush2.msra.mxu0 0.0
    %1184 = vmatprep.subr.mxu0 0.0
    %1185 = vmatpush2.msra.mxu0 0.0
    %1186 = vmatprep.subr.mxu0 0.0
    %1187 = vmatpush2.msra.mxu0 0.0
    %1188 = vmatprep.subr.mxu0 0.0
    %1189 = vmatpush2.msra.mxu0 0.0
    %1190 = vmatprep.subr.mxu0 0.0
    %1191 = vmatpush2.msra.mxu0 0.0
    %1192 = vmatprep.subr.mxu0 0.0
    %1193 = vmatpush2.msra.mxu0 0.0
    %1194 = vmatprep.subr.mxu0 0.0
    %1195 = vmatpush2.msra.mxu0 0.0
    %1196 = vmatprep.subr.mxu0 0.0
    %1197 = vmatpush2.msra.mxu0 0.0
    %1198 = vmatprep.subr.mxu0 0.0
    %1199 = vmatpush2.msra.mxu0 0.0
    %1200 = vmatprep.subr.mxu0 0.0
    %1201 = vmatpush2.msra.mxu0 0.0
    %1202 = vmatprep.subr.mxu0 0.0
    %1203 = vmatpush2.msra.mxu0 0.0
    %1204 = vmatprep.subr.mxu0 0.0
    %1205 = vmatpush2.msra.mxu0 0.0
    %1206 = vmatprep.subr.mxu0 0.0
    %1207 = vmatpush2.msra.mxu0 0.0
    %1208 = vmatprep.subr.mxu0 0.0
    %1209 = vmatpush2.msra.mxu0 0.0
    %1210 = vmatprep.subr.mxu0 0.0
    %1211 = vmatpush2.msra.mxu0 0.0
    %1212 = vmatprep.mubr.f32.mxu0 0.0
    %1213 = vmatmul.mubr.f32.gmra.mxu0 %v222
    %v1214 = vpop.f32.mrf.mxu0
    %v1215 = vadd.f32 %v1147, %v1214
    %v1216 = vpop.f32.mrf.mxu0
    %1217 = vmatprep.mubr.f32.mxu0 0.0
    %1218 = vmatmul.mubr.f32.gmra.mxu0 %v225
    %v1219 = vpop.f32.mrf.mxu0
    %v1220 = vadd.f32 %v1147, %v1219
    %v1221 = vpop.f32.mrf.mxu0
    %1222 = vdwg.mxu0
    %v1223 = vlaneseq
    %v1224 = vshrl.u32 %v1223, 7
    %v1225 = vsub.s32 0, %v1224
    %v1226 = vrot.slane %v1138, %v1225
    %v1228 = vsel %vm138, %v1127, 0
    %v1231 = vsel %vm138, %v1128, 0
    %1233 = vmatprep.subr.mxu0 0.0
    %1234 = vmatpush1.msra.mxu0 0.0
    %1235 = vmatprep.subr.mxu0 0.0
    %1236 = vmatpush1.msra.mxu0 0.0
    %1237 = vmatprep.subr.mxu0 0.0
    %1238 = vmatpush1.msra.mxu0 0.0
    %1239 = vmatprep.subr.mxu0 0.0
    %1240 = vmatpush1.msra.mxu0 0.0
    %1241 = vmatprep.subr.mxu0 0.0
    %1242 = vmatpush1.msra.mxu0 0.0
    %1243 = vmatprep.subr.mxu0 0.0
    %1244 = vmatpush1.msra.mxu0 0.0
    %1245 = vmatprep.subr.mxu0 0.0
    %1246 = vmatpush1.msra.mxu0 0.0
    %1247 = vmatprep.subr.mxu0 0.0
    %1248 = vmatpush1.msra.mxu0 0.0
    %1249 = vmatprep.subr.mxu0 0.0
    %1250 = vmatpush1.msra.mxu0 0.0
    %1251 = vmatprep.subr.mxu0 0.0
    %1252 = vmatpush1.msra.mxu0 0.0
    %1253 = vmatprep.subr.mxu0 0.0
    %1254 = vmatpush1.msra.mxu0 0.0
    %1255 = vmatprep.subr.mxu0 0.0
    %1256 = vmatpush1.msra.mxu0 0.0
    %1257 = vmatprep.subr.mxu0 0.0
    %1258 = vmatpush1.msra.mxu0 %v1137
    %1259 = vmatprep.subr.mxu0 0.0
    %1260 = vmatpush1.msra.mxu0 %v1136
    %1261 = vmatprep.subr.mxu0 0.0
    %1262 = vmatpush1.msra.mxu0 %v1135
    %1263 = vmatprep.subr.mxu0 0.0
    %1264 = vmatpush1.msra.mxu0 %v1134
    %1265 = vmatprep.subr.mxu0 0.0
    %1266 = vmatpush2.msra.mxu0 0.0
    %1267 = vmatprep.subr.mxu0 0.0
    %1268 = vmatpush2.msra.mxu0 0.0
    %1269 = vmatprep.subr.mxu0 0.0
    %1270 = vmatpush2.msra.mxu0 0.0
    %1271 = vmatprep.subr.mxu0 0.0
    %1272 = vmatpush2.msra.mxu0 0.0
    %1273 = vmatprep.subr.mxu0 0.0
    %1274 = vmatpush2.msra.mxu0 0.0
    %1275 = vmatprep.subr.mxu0 0.0
    %1276 = vmatpush2.msra.mxu0 0.0
    %1277 = vmatprep.subr.mxu0 0.0
    %1278 = vmatpush2.msra.mxu0 0.0
    %1279 = vmatprep.subr.mxu0 0.0
    %1280 = vmatpush2.msra.mxu0 0.0
    %1281 = vmatprep.subr.mxu0 0.0
    %1282 = vmatpush2.msra.mxu0 0.0
    %1283 = vmatprep.subr.mxu0 0.0
    %1284 = vmatpush2.msra.mxu0 0.0
    %1285 = vmatprep.subr.mxu0 0.0
    %1286 = vmatpush2.msra.mxu0 0.0
    %1287 = vmatprep.subr.mxu0 0.0
    %1288 = vmatpush2.msra.mxu0 0.0
    %1289 = vmatprep.subr.mxu0 0.0
    %1290 = vmatpush2.msra.mxu0 0.0
    %1291 = vmatprep.subr.mxu0 0.0
    %1292 = vmatpush2.msra.mxu0 0.0
    %1293 = vmatprep.subr.mxu0 0.0
    %1294 = vmatpush2.msra.mxu0 0.0
    %1295 = vmatprep.subr.mxu0 0.0
    %1296 = vmatpush2.msra.mxu0 0.0
    %1297 = vmatprep.mubr.f32.mxu0 0.0
    %1298 = vmatmul.mubr.f32.gmra.mxu0 %v1228
    %v1299 = vpop.f32.mrf.mxu0
    %v1300 = vadd.f32 %v1226, %v1299
    %v1301 = vpop.f32.mrf.mxu0
    %1302 = vmatprep.mubr.f32.mxu0 0.0
    %1303 = vmatmul.mubr.f32.gmra.mxu0 %v1231
    %v1304 = vpop.f32.mrf.mxu0
    %v1305 = vadd.f32 %v1226, %v1304
    %v1306 = vpop.f32.mrf.mxu0
    %1307 = vdwg.mxu0
    %v1308 = vmul.f32 %v1215, 0.25
    %v1309 = vmul.f32 %v1220, 0.25
    %v1311 = vsel %vm36, %v1308, 0
    %v1314 = vsel %vm36, %v1300, 0
    %1316 = vmatprep.subr.mxu0 0.0
    %1317 = vmatpush1.xpose.msra.mxu0 0.0
    %1318 = vmatprep.subr.mxu0 0.0
    %1319 = vmatpush1.xpose.msra.mxu0 0.0
    %1320 = vmatprep.subr.mxu0 0.0
    %1321 = vmatpush1.xpose.msra.mxu0 0.0
    %1322 = vmatprep.subr.mxu0 0.0
    %1323 = vmatpush1.xpose.msra.mxu0 0.0
    %1324 = vmatprep.subr.mxu0 0.0
    %1325 = vmatpush1.xpose.msra.mxu0 0.0
    %1326 = vmatprep.subr.mxu0 0.0
    %1327 = vmatpush1.xpose.msra.mxu0 0.0
    %1328 = vmatprep.subr.mxu0 0.0
    %1329 = vmatpush1.xpose.msra.mxu0 0.0
    %1330 = vmatprep.subr.mxu0 0.0
    %1331 = vmatpush1.xpose.msra.mxu0 0.0
    %1332 = vmatprep.subr.mxu0 0.0
    %1333 = vmatpush1.xpose.msra.mxu0 0.0
    %1334 = vmatprep.subr.mxu0 0.0
    %1335 = vmatpush1.xpose.msra.mxu0 0.0
    %1336 = vmatprep.subr.mxu0 0.0
    %1337 = vmatpush1.xpose.msra.mxu0 0.0
    %1338 = vmatprep.subr.mxu0 0.0
    %1339 = vmatpush1.xpose.msra.mxu0 0.0
    %1340 = vmatprep.subr.mxu0 0.0
    %1341 = vmatpush1.xpose.msra.mxu0 0.0
    %1342 = vmatprep.subr.mxu0 0.0
    %1343 = vmatpush1.xpose.msra.mxu0 0.0
    %1344 = vmatprep.subr.mxu0 0.0
    %1345 = vmatpush1.xpose.msra.mxu0 0.0
    %1346 = vmatprep.subr.mxu0 0.0
    %1347 = vmatpush1.xpose.msra.mxu0 %v1314
    %1348 = vmatprep.subr.mxu0 0.0
    %1349 = vmatpush2.xpose.msra.mxu0 0.0
    %1350 = vmatprep.subr.mxu0 0.0
    %1351 = vmatpush2.xpose.msra.mxu0 0.0
    %1352 = vmatprep.subr.mxu0 0.0
    %1353 = vmatpush2.xpose.msra.mxu0 0.0
    %1354 = vmatprep.subr.mxu0 0.0
    %1355 = vmatpush2.xpose.msra.mxu0 0.0
    %1356 = vmatprep.subr.mxu0 0.0
    %1357 = vmatpush2.xpose.msra.mxu0 0.0
    %1358 = vmatprep.subr.mxu0 0.0
    %1359 = vmatpush2.xpose.msra.mxu0 0.0
    %1360 = vmatprep.subr.mxu0 0.0
    %1361 = vmatpush2.xpose.msra.mxu0 0.0
    %1362 = vmatprep.subr.mxu0 0.0
    %1363 = vmatpush2.xpose.msra.mxu0 0.0
    %1364 = vmatprep.subr.mxu0 0.0
    %1365 = vmatpush2.xpose.msra.mxu0 0.0
    %1366 = vmatprep.subr.mxu0 0.0
    %1367 = vmatpush2.xpose.msra.mxu0 0.0
    %1368 = vmatprep.subr.mxu0 0.0
    %1369 = vmatpush2.xpose.msra.mxu0 0.0
    %1370 = vmatprep.subr.mxu0 0.0
    %1371 = vmatpush2.xpose.msra.mxu0 0.0
    %1372 = vmatprep.subr.mxu0 0.0
    %1373 = vmatpush2.xpose.msra.mxu0 0.0
    %1374 = vmatprep.subr.mxu0 0.0
    %1375 = vmatpush2.xpose.msra.mxu0 0.0
    %1376 = vmatprep.subr.mxu0 0.0
    %1377 = vmatpush2.xpose.msra.mxu0 0.0
    %1378 = vmatprep.subr.mxu0 0.0
    %1379 = vmatpush2.xpose.msra.mxu0 0.0
    %1380 = vmatprep.mubr.f32.mxu0 0.0
    %1381 = vmatmul.mubr.f32.gmra.mxu0 %v1311
    %v1382 = vpop.f32.mrf.mxu0
    %v1383 = vadd.f32 0.0, %v1382
    %v1384 = vpop.f32.mrf.mxu0
    %1385 = vdwg.mxu0
    %v1387 = vsel %vm36, %v1309, 0
    %v1390 = vsel %vm36, %v1305, 0
    %1392 = vmatprep.subr.mxu0 0.0
    %1393 = vmatpush1.xpose.msra.mxu0 0.0
    %1394 = vmatprep.subr.mxu0 0.0
    %1395 = vmatpush1.xpose.msra.mxu0 0.0
    %1396 = vmatprep.subr.mxu0 0.0
    %1397 = vmatpush1.xpose.msra.mxu0 0.0
    %1398 = vmatprep.subr.mxu0 0.0
    %1399 = vmatpush1.xpose.msra.mxu0 0.0
    %1400 = vmatprep.subr.mxu0 0.0
    %1401 = vmatpush1.xpose.msra.mxu0 0.0
    %1402 = vmatprep.subr.mxu0 0.0
    %1403 = vmatpush1.xpose.msra.mxu0 0.0
    %1404 = vmatprep.subr.mxu0 0.0
    %1405 = vmatpush1.xpose.msra.mxu0 0.0
    %1406 = vmatprep.subr.mxu0 0.0
    %1407 = vmatpush1.xpose.msra.mxu0 0.0
    %1408 = vmatprep.subr.mxu0 0.0
    %1409 = vmatpush1.xpose.msra.mxu0 0.0
    %1410 = vmatprep.subr.mxu0 0.0
    %1411 = vmatpush1.xpose.msra.mxu0 0.0
    %1412 = vmatprep.subr.mxu0 0.0
    %1413 = vmatpush1.xpose.msra.mxu0 0.0
    %1414 = vmatprep.subr.mxu0 0.0
    %1415 = vmatpush1.xpose.msra.mxu0 0.0
    %1416 = vmatprep.subr.mxu0 0.0
    %1417 = vmatpush1.xpose.msra.mxu0 0.0
    %1418 = vmatprep.subr.mxu0 0.0
    %1419 = vmatpush1.xpose.msra.mxu0 0.0
    %1420 = vmatprep.subr.mxu0 0.0
    %1421 = vmatpush1.xpose.msra.mxu0 0.0
    %1422 = vmatprep.subr.mxu0 0.0
    %1423 = vmatpush1.xpose.msra.mxu0 %v1390
    %1424 = vmatprep.subr.mxu0 0.0
    %1425 = vmatpush2.xpose.msra.mxu0 0.0
    %1426 = vmatprep.subr.mxu0 0.0
    %1427 = vmatpush2.xpose.msra.mxu0 0.0
    %1428 = vmatprep.subr.mxu0 0.0
    %1429 = vmatpush2.xpose.msra.mxu0 0.0
    %1430 = vmatprep.subr.mxu0 0.0
    %1431 = vmatpush2.xpose.msra.mxu0 0.0
    %1432 = vmatprep.subr.mxu0 0.0
    %1433 = vmatpush2.xpose.msra.mxu0 0.0
    %1434 = vmatprep.subr.mxu0 0.0
    %1435 = vmatpush2.xpose.msra.mxu0 0.0
    %1436 = vmatprep.subr.mxu0 0.0
    %1437 = vmatpush2.xpose.msra.mxu0 0.0
    %1438 = vmatprep.subr.mxu0 0.0
    %1439 = vmatpush2.xpose.msra.mxu0 0.0
    %1440 = vmatprep.subr.mxu0 0.0
    %1441 = vmatpush2.xpose.msra.mxu0 0.0
    %1442 = vmatprep.subr.mxu0 0.0
    %1443 = vmatpush2.xpose.msra.mxu0 0.0
    %1444 = vmatprep.subr.mxu0 0.0
    %1445 = vmatpush2.xpose.msra.mxu0 0.0
    %1446 = vmatprep.subr.mxu0 0.0
    %1447 = vmatpush2.xpose.msra.mxu0 0.0
    %1448 = vmatprep.subr.mxu0 0.0
    %1449 = vmatpush2.xpose.msra.mxu0 0.0
    %1450 = vmatprep.subr.mxu0 0.0
    %1451 = vmatpush2.xpose.msra.mxu0 0.0
    %1452 = vmatprep.subr.mxu0 0.0
    %1453 = vmatpush2.xpose.msra.mxu0 0.0
    %1454 = vmatprep.subr.mxu0 0.0
    %1455 = vmatpush2.xpose.msra.mxu0 0.0
    %1456 = vmatprep.mubr.f32.mxu0 0.0
    %1457 = vmatmul.mubr.f32.gmra.mxu0 %v1387
    %v1458 = vpop.f32.mrf.mxu0
    %v1459 = vadd.f32 0.0, %v1458
    %v1460 = vpop.f32.mrf.mxu0
    %1461 = vdwg.mxu0
    %v1462 = vsel %vm456, %v1383, -inf
    %1463 = vmax.xlane.f32.xlu0 %v1462
    %v1464 = vpop.xlane.xlu0 %1463
    %v1465 = vsel %vm456, %v1459, -inf
    %1466 = vmax.xlane.f32.xlu0 %v1465
    %v1467 = vpop.xlane.xlu0 %1466
    %v1468 = vsub.f32 %v1383, %v1464
    %v1469 = vsub.f32 %v1459, %v1467
    %v1470 = vmul.f32 %v1468, 1.442695
    %v1471 = vpow.pop %v1470
    %v1472 = vmul.f32 %v1469, 1.442695
    %v1473 = vpow.pop %v1472
    %v1474 = vsel %vm456, %v1471, 0.0
    %1475 = vadd.xlane.f32.xlu0 %v1474
    %v1476 = vpop.xlane.xlu0 %1475
    %v1477 = vsel %vm456, %v1473, 0.0
    %1478 = vadd.xlane.f32.xlu0 %v1477
    %v1479 = vpop.xlane.xlu0 %1478
    %v1480 = vrcp.pop %v1476
    %v1481 = vmul.f32 %v1471, %v1480
    %v1482 = vrcp.pop %v1479
    %v1483 = vmul.f32 %v1473, %v1482
    %1484 = vrot.lane.b32.xlu0 %v1300, 96
    %v1485 = vpop.permute.xlu0 %1484
    %v1488 = vsel %vm456, %v1481, 0
    %1490 = vmatprep.subr.mxu0 0.0
    %1491 = vmatpush1.msra.mxu0 0.0
    %1492 = vmatprep.subr.mxu0 0.0
    %1493 = vmatpush1.msra.mxu0 0.0
    %1494 = vmatprep.subr.mxu0 0.0
    %1495 = vmatpush1.msra.mxu0 0.0
    %1496 = vmatprep.subr.mxu0 0.0
    %1497 = vmatpush1.msra.mxu0 0.0
    %1498 = vmatprep.subr.mxu0 0.0
    %1499 = vmatpush1.msra.mxu0 0.0
    %1500 = vmatprep.subr.mxu0 0.0
    %1501 = vmatpush1.msra.mxu0 0.0
    %1502 = vmatprep.subr.mxu0 0.0
    %1503 = vmatpush1.msra.mxu0 0.0
    %1504 = vmatprep.subr.mxu0 0.0
    %1505 = vmatpush1.msra.mxu0 0.0
    %1506 = vmatprep.subr.mxu0 0.0
    %1507 = vmatpush1.msra.mxu0 0.0
    %1508 = vmatprep.subr.mxu0 0.0
    %1509 = vmatpush1.msra.mxu0 0.0
    %1510 = vmatprep.subr.mxu0 0.0
    %1511 = vmatpush1.msra.mxu0 0.0
    %1512 = vmatprep.subr.mxu0 0.0
    %1513 = vmatpush1.msra.mxu0 0.0
    %1514 = vmatprep.subr.mxu0 0.0
    %1515 = vmatpush1.msra.mxu0 0.0
    %1516 = vmatprep.subr.mxu0 0.0
    %1517 = vmatpush1.msra.mxu0 0.0
    %1518 = vmatprep.subr.mxu0 0.0
    %1519 = vmatpush1.msra.mxu0 0.0
    %1520 = vmatprep.subr.mxu0 0.0
    %1521 = vmatpush1.msra.mxu0 %v1485
    %1522 = vmatprep.subr.mxu0 0.0
    %1523 = vmatpush2.msra.mxu0 0.0
    %1524 = vmatprep.subr.mxu0 0.0
    %1525 = vmatpush2.msra.mxu0 0.0
    %1526 = vmatprep.subr.mxu0 0.0
    %1527 = vmatpush2.msra.mxu0 0.0
    %1528 = vmatprep.subr.mxu0 0.0
    %1529 = vmatpush2.msra.mxu0 0.0
    %1530 = vmatprep.subr.mxu0 0.0
    %1531 = vmatpush2.msra.mxu0 0.0
    %1532 = vmatprep.subr.mxu0 0.0
    %1533 = vmatpush2.msra.mxu0 0.0
    %1534 = vmatprep.subr.mxu0 0.0
    %1535 = vmatpush2.msra.mxu0 0.0
    %1536 = vmatprep.subr.mxu0 0.0
    %1537 = vmatpush2.msra.mxu0 0.0
    %1538 = vmatprep.subr.mxu0 0.0
    %1539 = vmatpush2.msra.mxu0 0.0
    %1540 = vmatprep.subr.mxu0 0.0
    %1541 = vmatpush2.msra.mxu0 0.0
    %1542 = vmatprep.subr.mxu0 0.0
    %1543 = vmatpush2.msra.mxu0 0.0
    %1544 = vmatprep.subr.mxu0 0.0
    %1545 = vmatpush2.msra.mxu0 0.0
    %1546 = vmatprep.subr.mxu0 0.0
    %1547 = vmatpush2.msra.mxu0 0.0
    %1548 = vmatprep.subr.mxu0 0.0
    %1549 = vmatpush2.msra.mxu0 0.0
    %1550 = vmatprep.subr.mxu0 0.0
    %1551 = vmatpush2.msra.mxu0 0.0
    %1552 = vmatprep.subr.mxu0 0.0
    %1553 = vmatpush2.msra.mxu0 0.0
    %1554 = vmatprep.mubr.f32.mxu0 0.0
    %1555 = vmatmul.mubr.f32.gmra.mxu0 %v1488
    %v1556 = vpop.f32.mrf.mxu0
    %v1557 = vadd.f32 0.0, %v1556
    %v1558 = vpop.f32.mrf.mxu0
    %1559 = vdwg.mxu0
    %1560 = vrot.lane.b32.xlu0 %v1305, 96
    %v1561 = vpop.permute.xlu0 %1560
    %v1564 = vsel %vm456, %v1483, 0
    %1566 = vmatprep.subr.mxu0 0.0
    %1567 = vmatpush1.msra.mxu0 0.0
    %1568 = vmatprep.subr.mxu0 0.0
    %1569 = vmatpush1.msra.mxu0 0.0
    %1570 = vmatprep.subr.mxu0 0.0
    %1571 = vmatpush1.msra.mxu0 0.0
    %1572 = vmatprep.subr.mxu0 0.0
    %1573 = vmatpush1.msra.mxu0 0.0
    %1574 = vmatprep.subr.mxu0 0.0
    %1575 = vmatpush1.msra.mxu0 0.0
    %1576 = vmatprep.subr.mxu0 0.0
    %1577 = vmatpush1.msra.mxu0 0.0
    %1578 = vmatprep.subr.mxu0 0.0
    %1579 = vmatpush1.msra.mxu0 0.0
    %1580 = vmatprep.subr.mxu0 0.0
    %1581 = vmatpush1.msra.mxu0 0.0
    %1582 = vmatprep.subr.mxu0 0.0
    %1583 = vmatpush1.msra.mxu0 0.0
    %1584 = vmatprep.subr.mxu0 0.0
    %1585 = vmatpush1.msra.mxu0 0.0
    %1586 = vmatprep.subr.mxu0 0.0
    %1587 = vmatpush1.msra.mxu0 0.0
    %1588 = vmatprep.subr.mxu0 0.0
    %1589 = vmatpush1.msra.mxu0 0.0
    %1590 = vmatprep.subr.mxu0 0.0
    %1591 = vmatpush1.msra.mxu0 0.0
    %1592 = vmatprep.subr.mxu0 0.0
    %1593 = vmatpush1.msra.mxu0 0.0
    %1594 = vmatprep.subr.mxu0 0.0
    %1595 = vmatpush1.msra.mxu0 0.0
    %1596 = vmatprep.subr.mxu0 0.0
    %1597 = vmatpush1.msra.mxu0 %v1561
    %1598 = vmatprep.subr.mxu0 0.0
    %1599 = vmatpush2.msra.mxu0 0.0
    %1600 = vmatprep.subr.mxu0 0.0
    %1601 = vmatpush2.msra.mxu0 0.0
    %1602 = vmatprep.subr.mxu0 0.0
    %1603 = vmatpush2.msra.mxu0 0.0
    %1604 = vmatprep.subr.mxu0 0.0
    %1605 = vmatpush2.msra.mxu0 0.0
    %1606 = vmatprep.subr.mxu0 0.0
    %1607 = vmatpush2.msra.mxu0 0.0
    %1608 = vmatprep.subr.mxu0 0.0
    %1609 = vmatpush2.msra.mxu0 0.0
    %1610 = vmatprep.subr.mxu0 0.0
    %1611 = vmatpush2.msra.mxu0 0.0
    %1612 = vmatprep.subr.mxu0 0.0
    %1613 = vmatpush2.msra.mxu0 0.0
    %1614 = vmatprep.subr.mxu0 0.0
    %1615 = vmatpush2.msra.mxu0 0.0
    %1616 = vmatprep.subr.mxu0 0.0
    %1617 = vmatpush2.msra.mxu0 0.0
    %1618 = vmatprep.subr.mxu0 0.0
    %1619 = vmatpush2.msra.mxu0 0.0
    %1620 = vmatprep.subr.mxu0 0.0
    %1621 = vmatpush2.msra.mxu0 0.0
    %1622 = vmatprep.subr.mxu0 0.0
    %1623 = vmatpush2.msra.mxu0 0.0
    %1624 = vmatprep.subr.mxu0 0.0
    %1625 = vmatpush2.msra.mxu0 0.0
    %1626 = vmatprep.subr.mxu0 0.0
    %1627 = vmatpush2.msra.mxu0 0.0
    %1628 = vmatprep.subr.mxu0 0.0
    %1629 = vmatpush2.msra.mxu0 0.0
    %1630 = vmatprep.mubr.f32.mxu0 0.0
    %1631 = vmatmul.mubr.f32.gmra.mxu0 %v1564
    %v1632 = vpop.f32.mrf.mxu0
    %v1633 = vadd.f32 0.0, %v1632
    %v1634 = vpop.f32.mrf.mxu0
    %1635 = vdwg.mxu0
    %1636 = vrot.lane.b32.xlu0 %v1308, 112
    %v1637 = vpop.permute.xlu0 %1636
    %1638 = vrot.lane.b32.xlu0 %v1300, 112
    %v1639 = vpop.permute.xlu0 %1638
    %v1640 = vsel %vm36, %v1637, 0
    %v1642 = vsel %vm36, %v1639, 0
    %1644 = vmatprep.subr.mxu0 0.0
    %1645 = vmatpush1.xpose.msra.mxu0 0.0
    %1646 = vmatprep.subr.mxu0 0.0
    %1647 = vmatpush1.xpose.msra.mxu0 0.0
    %1648 = vmatprep.subr.mxu0 0.0
    %1649 = vmatpush1.xpose.msra.mxu0 0.0
    %1650 = vmatprep.subr.mxu0 0.0
    %1651 = vmatpush1.xpose.msra.mxu0 0.0
    %1652 = vmatprep.subr.mxu0 0.0
    %1653 = vmatpush1.xpose.msra.mxu0 0.0
    %1654 = vmatprep.subr.mxu0 0.0
    %1655 = vmatpush1.xpose.msra.mxu0 0.0
    %1656 = vmatprep.subr.mxu0 0.0
    %1657 = vmatpush1.xpose.msra.mxu0 0.0
    %1658 = vmatprep.subr.mxu0 0.0
    %1659 = vmatpush1.xpose.msra.mxu0 0.0
    %1660 = vmatprep.subr.mxu0 0.0
    %1661 = vmatpush1.xpose.msra.mxu0 0.0
    %1662 = vmatprep.subr.mxu0 0.0
    %1663 = vmatpush1.xpose.msra.mxu0 0.0
    %1664 = vmatprep.subr.mxu0 0.0
    %1665 = vmatpush1.xpose.msra.mxu0 0.0
    %1666 = vmatprep.subr.mxu0 0.0
    %1667 = vmatpush1.xpose.msra.mxu0 0.0
    %1668 = vmatprep.subr.mxu0 0.0
    %1669 = vmatpush1.xpose.msra.mxu0 0.0
    %1670 = vmatprep.subr.mxu0 0.0
    %1671 = vmatpush1.xpose.msra.mxu0 0.0
    %1672 = vmatprep.subr.mxu0 0.0
    %1673 = vmatpush1.xpose.msra.mxu0 0.0
    %1674 = vmatprep.subr.mxu0 0.0
    %1675 = vmatpush1.xpose.msra.mxu0 %v1642
    %1676 = vmatprep.subr.mxu0 0.0
    %1677 = vmatpush2.xpose.msra.mxu0 0.0
    %1678 = vmatprep.subr.mxu0 0.0
    %1679 = vmatpush2.xpose.msra.mxu0 0.0
    %1680 = vmatprep.subr.mxu0 0.0
    %1681 = vmatpush2.xpose.msra.mxu0 0.0
    %1682 = vmatprep.subr.mxu0 0.0
    %1683 = vmatpush2.xpose.msra.mxu0 0.0
    %1684 = vmatprep.subr.mxu0 0.0
    %1685 = vmatpush2.xpose.msra.mxu0 0.0
    %1686 = vmatprep.subr.mxu0 0.0
    %1687 = vmatpush2.xpose.msra.mxu0 0.0
    %1688 = vmatprep.subr.mxu0 0.0
    %1689 = vmatpush2.xpose.msra.mxu0 0.0
    %1690 = vmatprep.subr.mxu0 0.0
    %1691 = vmatpush2.xpose.msra.mxu0 0.0
    %1692 = vmatprep.subr.mxu0 0.0
    %1693 = vmatpush2.xpose.msra.mxu0 0.0
    %1694 = vmatprep.subr.mxu0 0.0
    %1695 = vmatpush2.xpose.msra.mxu0 0.0
    %1696 = vmatprep.subr.mxu0 0.0
    %1697 = vmatpush2.xpose.msra.mxu0 0.0
    %1698 = vmatprep.subr.mxu0 0.0
    %1699 = vmatpush2.xpose.msra.mxu0 0.0
    %1700 = vmatprep.subr.mxu0 0.0
    %1701 = vmatpush2.xpose.msra.mxu0 0.0
    %1702 = vmatprep.subr.mxu0 0.0
    %1703 = vmatpush2.xpose.msra.mxu0 0.0
    %1704 = vmatprep.subr.mxu0 0.0
    %1705 = vmatpush2.xpose.msra.mxu0 0.0
    %1706 = vmatprep.subr.mxu0 0.0
    %1707 = vmatpush2.xpose.msra.mxu0 0.0
    %1708 = vmatprep.mubr.f32.mxu0 0.0
    %1709 = vmatmul.mubr.f32.gmra.mxu0 %v1640
    %v1710 = vpop.f32.mrf.mxu0
    %v1711 = vadd.f32 0.0, %v1710
    %v1712 = vpop.f32.mrf.mxu0
    %1713 = vdwg.mxu0
    %1714 = vrot.lane.b32.xlu0 %v1309, 112
    %v1715 = vpop.permute.xlu0 %1714
    %1716 = vrot.lane.b32.xlu0 %v1305, 112
    %v1717 = vpop.permute.xlu0 %1716
    %v1718 = vsel %vm36, %v1715, 0
    %v1720 = vsel %vm36, %v1717, 0
    %1722 = vmatprep.subr.mxu0 0.0
    %1723 = vmatpush1.xpose.msra.mxu0 0.0
    %1724 = vmatprep.subr.mxu0 0.0
    %1725 = vmatpush1.xpose.msra.mxu0 0.0
    %1726 = vmatprep.subr.mxu0 0.0
    %1727 = vmatpush1.xpose.msra.mxu0 0.0
    %1728 = vmatprep.subr.mxu0 0.0
    %1729 = vmatpush1.xpose.msra.mxu0 0.0
    %1730 = vmatprep.subr.mxu0 0.0
    %1731 = vmatpush1.xpose.msra.mxu0 0.0
    %1732 = vmatprep.subr.mxu0 0.0
    %1733 = vmatpush1.xpose.msra.mxu0 0.0
    %1734 = vmatprep.subr.mxu0 0.0
    %1735 = vmatpush1.xpose.msra.mxu0 0.0
    %1736 = vmatprep.subr.mxu0 0.0
    %1737 = vmatpush1.xpose.msra.mxu0 0.0
    %1738 = vmatprep.subr.mxu0 0.0
    %1739 = vmatpush1.xpose.msra.mxu0 0.0
    %1740 = vmatprep.subr.mxu0 0.0
    %1741 = vmatpush1.xpose.msra.mxu0 0.0
    %1742 = vmatprep.subr.mxu0 0.0
    %1743 = vmatpush1.xpose.msra.mxu0 0.0
    %1744 = vmatprep.subr.mxu0 0.0
    %1745 = vmatpush1.xpose.msra.mxu0 0.0
    %1746 = vmatprep.subr.mxu0 0.0
    %1747 = vmatpush1.xpose.msra.mxu0 0.0
    %1748 = vmatprep.subr.mxu0 0.0
    %1749 = vmatpush1.xpose.msra.mxu0 0.0
    %1750 = vmatprep.subr.mxu0 0.0
    %1751 = vmatpush1.xpose.msra.mxu0 0.0
    %1752 = vmatprep.subr.mxu0 0.0
    %1753 = vmatpush1.xpose.msra.mxu0 %v1720
    %1754 = vmatprep.subr.mxu0 0.0
    %1755 = vmatpush2.xpose.msra.mxu0 0.0
    %1756 = vmatprep.subr.mxu0 0.0
    %1757 = vmatpush2.xpose.msra.mxu0 0.0
    %1758 = vmatprep.subr.mxu0 0.0
    %1759 = vmatpush2.xpose.msra.mxu0 0.0
    %1760 = vmatprep.subr.mxu0 0.0
    %1761 = vmatpush2.xpose.msra.mxu0 0.0
    %1762 = vmatprep.subr.mxu0 0.0
    %1763 = vmatpush2.xpose.msra.mxu0 0.0
    %1764 = vmatprep.subr.mxu0 0.0
    %1765 = vmatpush2.xpose.msra.mxu0 0.0
    %1766 = vmatprep.subr.mxu0 0.0
    %1767 = vmatpush2.xpose.msra.mxu0 0.0
    %1768 = vmatprep.subr.mxu0 0.0
    %1769 = vmatpush2.xpose.msra.mxu0 0.0
    %1770 = vmatprep.subr.mxu0 0.0
    %1771 = vmatpush2.xpose.msra.mxu0 0.0
    %1772 = vmatprep.subr.mxu0 0.0
    %1773 = vmatpush2.xpose.msra.mxu0 0.0
    %1774 = vmatprep.subr.mxu0 0.0
    %1775 = vmatpush2.xpose.msra.mxu0 0.0
    %1776 = vmatprep.subr.mxu0 0.0
    %1777 = vmatpush2.xpose.msra.mxu0 0.0
    %1778 = vmatprep.subr.mxu0 0.0
    %1779 = vmatpush2.xpose.msra.mxu0 0.0
    %1780 = vmatprep.subr.mxu0 0.0
    %1781 = vmatpush2.xpose.msra.mxu0 0.0
    %1782 = vmatprep.subr.mxu0 0.0
    %1783 = vmatpush2.xpose.msra.mxu0 0.0
    %1784 = vmatprep.subr.mxu0 0.0
    %1785 = vmatpush2.xpose.msra.mxu0 0.0
    %1786 = vmatprep.mubr.f32.mxu0 0.0
    %1787 = vmatmul.mubr.f32.gmra.mxu0 %v1718
    %v1788 = vpop.f32.mrf.mxu0
    %v1789 = vadd.f32 0.0, %v1788
    %v1790 = vpop.f32.mrf.mxu0
    %1791 = vdwg.mxu0
    %v1792 = vsel %vm456, %v1711, -inf
    %1793 = vmax.xlane.f32.xlu0 %v1792
    %v1794 = vpop.xlane.xlu0 %1793
    %v1795 = vsel %vm456, %v1789, -inf
    %1796 = vmax.xlane.f32.xlu0 %v1795
    %v1797 = vpop.xlane.xlu0 %1796
    %v1798 = vsub.f32 %v1711, %v1794
    %v1799 = vsub.f32 %v1789, %v1797
    %v1800 = vmul.f32 %v1798, 1.442695
    %v1801 = vpow.pop %v1800
    %v1802 = vmul.f32 %v1799, 1.442695
    %v1803 = vpow.pop %v1802
    %v1804 = vsel %vm456, %v1801, 0.0
    %1805 = vadd.xlane.f32.xlu0 %v1804
    %v1806 = vpop.xlane.xlu0 %1805
    %v1807 = vsel %vm456, %v1803, 0.0
    %1808 = vadd.xlane.f32.xlu0 %v1807
    %v1809 = vpop.xlane.xlu0 %1808
    %v1810 = vrcp.pop %v1806
    %v1811 = vmul.f32 %v1801, %v1810
    %v1812 = vrcp.pop %v1809
    %v1813 = vmul.f32 %v1803, %v1812
    %1814 = vrot.lane.b32.xlu0 %v1300, 80
    %v1815 = vpop.permute.xlu0 %1814
    %v1818 = vsel %vm456, %v1811, 0
    %1820 = vmatprep.subr.mxu0 0.0
    %1821 = vmatpush1.msra.mxu0 0.0
    %1822 = vmatprep.subr.mxu0 0.0
    %1823 = vmatpush1.msra.mxu0 0.0
    %1824 = vmatprep.subr.mxu0 0.0
    %1825 = vmatpush1.msra.mxu0 0.0
    %1826 = vmatprep.subr.mxu0 0.0
    %1827 = vmatpush1.msra.mxu0 0.0
    %1828 = vmatprep.subr.mxu0 0.0
    %1829 = vmatpush1.msra.mxu0 0.0
    %1830 = vmatprep.subr.mxu0 0.0
    %1831 = vmatpush1.msra.mxu0 0.0
    %1832 = vmatprep.subr.mxu0 0.0
    %1833 = vmatpush1.msra.mxu0 0.0
    %1834 = vmatprep.subr.mxu0 0.0
    %1835 = vmatpush1.msra.mxu0 0.0
    %1836 = vmatprep.subr.mxu0 0.0
    %1837 = vmatpush1.msra.mxu0 0.0
    %1838 = vmatprep.subr.mxu0 0.0
    %1839 = vmatpush1.msra.mxu0 0.0
    %1840 = vmatprep.subr.mxu0 0.0
    %1841 = vmatpush1.msra.mxu0 0.0
    %1842 = vmatprep.subr.mxu0 0.0
    %1843 = vmatpush1.msra.mxu0 0.0
    %1844 = vmatprep.subr.mxu0 0.0
    %1845 = vmatpush1.msra.mxu0 0.0
    %1846 = vmatprep.subr.mxu0 0.0
    %1847 = vmatpush1.msra.mxu0 0.0
    %1848 = vmatprep.subr.mxu0 0.0
    %1849 = vmatpush1.msra.mxu0 0.0
    %1850 = vmatprep.subr.mxu0 0.0
    %1851 = vmatpush1.msra.mxu0 %v1815
    %1852 = vmatprep.subr.mxu0 0.0
    %1853 = vmatpush2.msra.mxu0 0.0
    %1854 = vmatprep.subr.mxu0 0.0
    %1855 = vmatpush2.msra.mxu0 0.0
    %1856 = vmatprep.subr.mxu0 0.0
    %1857 = vmatpush2.msra.mxu0 0.0
    %1858 = vmatprep.subr.mxu0 0.0
    %1859 = vmatpush2.msra.mxu0 0.0
    %1860 = vmatprep.subr.mxu0 0.0
    %1861 = vmatpush2.msra.mxu0 0.0
    %1862 = vmatprep.subr.mxu0 0.0
    %1863 = vmatpush2.msra.mxu0 0.0
    %1864 = vmatprep.subr.mxu0 0.0
    %1865 = vmatpush2.msra.mxu0 0.0
    %1866 = vmatprep.subr.mxu0 0.0
    %1867 = vmatpush2.msra.mxu0 0.0
    %1868 = vmatprep.subr.mxu0 0.0
    %1869 = vmatpush2.msra.mxu0 0.0
    %1870 = vmatprep.subr.mxu0 0.0
    %1871 = vmatpush2.msra.mxu0 0.0
    %1872 = vmatprep.subr.mxu0 0.0
    %1873 = vmatpush2.msra.mxu0 0.0
    %1874 = vmatprep.subr.mxu0 0.0
    %1875 = vmatpush2.msra.mxu0 0.0
    %1876 = vmatprep.subr.mxu0 0.0
    %1877 = vmatpush2.msra.mxu0 0.0
    %1878 = vmatprep.subr.mxu0 0.0
    %1879 = vmatpush2.msra.mxu0 0.0
    %1880 = vmatprep.subr.mxu0 0.0
    %1881 = vmatpush2.msra.mxu0 0.0
    %1882 = vmatprep.subr.mxu0 0.0
    %1883 = vmatpush2.msra.mxu0 0.0
    %1884 = vmatprep.mubr.f32.mxu0 0.0
    %1885 = vmatmul.mubr.f32.gmra.mxu0 %v1818
    %v1886 = vpop.f32.mrf.mxu0
    %v1887 = vadd.f32 0.0, %v1886
    %v1888 = vpop.f32.mrf.mxu0
    %1889 = vdwg.mxu0
    %1890 = vrot.lane.b32.xlu0 %v1305, 80
    %v1891 = vpop.permute.xlu0 %1890
    %v1894 = vsel %vm456, %v1813, 0
    %1896 = vmatprep.subr.mxu0 0.0
    %1897 = vmatpush1.msra.mxu0 0.0
    %1898 = vmatprep.subr.mxu0 0.0
    %1899 = vmatpush1.msra.mxu0 0.0
    %1900 = vmatprep.subr.mxu0 0.0
    %1901 = vmatpush1.msra.mxu0 0.0
    %1902 = vmatprep.subr.mxu0 0.0
    %1903 = vmatpush1.msra.mxu0 0.0
    %1904 = vmatprep.subr.mxu0 0.0
    %1905 = vmatpush1.msra.mxu0 0.0
    %1906 = vmatprep.subr.mxu0 0.0
    %1907 = vmatpush1.msra.mxu0 0.0
    %1908 = vmatprep.subr.mxu0 0.0
    %1909 = vmatpush1.msra.mxu0 0.0
    %1910 = vmatprep.subr.mxu0 0.0
    %1911 = vmatpush1.msra.mxu0 0.0
    %1912 = vmatprep.subr.mxu0 0.0
    %1913 = vmatpush1.msra.mxu0 0.0
    %1914 = vmatprep.subr.mxu0 0.0
    %1915 = vmatpush1.msra.mxu0 0.0
    %1916 = vmatprep.subr.mxu0 0.0
    %1917 = vmatpush1.msra.mxu0 0.0
    %1918 = vmatprep.subr.mxu0 0.0
    %1919 = vmatpush1.msra.mxu0 0.0
    %1920 = vmatprep.subr.mxu0 0.0
    %1921 = vmatpush1.msra.mxu0 0.0
    %1922 = vmatprep.subr.mxu0 0.0
    %1923 = vmatpush1.msra.mxu0 0.0
    %1924 = vmatprep.subr.mxu0 0.0
    %1925 = vmatpush1.msra.mxu0 0.0
    %1926 = vmatprep.subr.mxu0 0.0
    %1927 = vmatpush1.msra.mxu0 %v1891
    %1928 = vmatprep.subr.mxu0 0.0
    %1929 = vmatpush2.msra.mxu0 0.0
    %1930 = vmatprep.subr.mxu0 0.0
    %1931 = vmatpush2.msra.mxu0 0.0
    %1932 = vmatprep.subr.mxu0 0.0
    %1933 = vmatpush2.msra.mxu0 0.0
    %1934 = vmatprep.subr.mxu0 0.0
    %1935 = vmatpush2.msra.mxu0 0.0
    %1936 = vmatprep.subr.mxu0 0.0
    %1937 = vmatpush2.msra.mxu0 0.0
    %1938 = vmatprep.subr.mxu0 0.0
    %1939 = vmatpush2.msra.mxu0 0.0
    %1940 = vmatprep.subr.mxu0 0.0
    %1941 = vmatpush2.msra.mxu0 0.0
    %1942 = vmatprep.subr.mxu0 0.0
    %1943 = vmatpush2.msra.mxu0 0.0
    %1944 = vmatprep.subr.mxu0 0.0
    %1945 = vmatpush2.msra.mxu0 0.0
    %1946 = vmatprep.subr.mxu0 0.0
    %1947 = vmatpush2.msra.mxu0 0.0
    %1948 = vmatprep.subr.mxu0 0.0
    %1949 = vmatpush2.msra.mxu0 0.0
    %1950 = vmatprep.subr.mxu0 0.0
    %1951 = vmatpush2.msra.mxu0 0.0
    %1952 = vmatprep.subr.mxu0 0.0
    %1953 = vmatpush2.msra.mxu0 0.0
    %1954 = vmatprep.subr.mxu0 0.0
    %1955 = vmatpush2.msra.mxu0 0.0
    %1956 = vmatprep.subr.mxu0 0.0
    %1957 = vmatpush2.msra.mxu0 0.0
    %1958 = vmatprep.subr.mxu0 0.0
    %1959 = vmatpush2.msra.mxu0 0.0
    %1960 = vmatprep.mubr.f32.mxu0 0.0
    %1961 = vmatmul.mubr.f32.gmra.mxu0 %v1894
    %v1962 = vpop.f32.mrf.mxu0
    %v1963 = vadd.f32 0.0, %v1962
    %v1964 = vpop.f32.mrf.mxu0
    %1965 = vdwg.mxu0
    %v1967 = vsel %vm36, %v1887, 0
    %v1970 = vsel %vm36, %v1963, 0
    %1972 = vmatprep.subr.mxu0 0.0
    %1973 = vmatpush1.msra.mxu0 0.0
    %1974 = vmatprep.subr.mxu0 0.0
    %1975 = vmatpush1.msra.mxu0 0.0
    %1976 = vmatprep.subr.mxu0 0.0
    %1977 = vmatpush1.msra.mxu0 0.0
    %1978 = vmatprep.subr.mxu0 0.0
    %1979 = vmatpush1.msra.mxu0 0.0
    %1980 = vmatprep.subr.mxu0 0.0
    %1981 = vmatpush1.msra.mxu0 0.0
    %1982 = vmatprep.subr.mxu0 0.0
    %1983 = vmatpush1.msra.mxu0 0.0
    %1984 = vmatprep.subr.mxu0 0.0
    %1985 = vmatpush1.msra.mxu0 0.0
    %1986 = vmatprep.subr.mxu0 0.0
    %1987 = vmatpush1.msra.mxu0 0.0
    %1988 = vmatprep.subr.mxu0 0.0
    %1989 = vmatpush1.msra.mxu0 0.0
    %1990 = vmatprep.subr.mxu0 0.0
    %1991 = vmatpush1.msra.mxu0 0.0
    %1992 = vmatprep.subr.mxu0 0.0
    %1993 = vmatpush1.msra.mxu0 0.0
    %1994 = vmatprep.subr.mxu0 0.0
    %1995 = vmatpush1.msra.mxu0 0.0
    %1996 = vmatprep.subr.mxu0 0.0
    %1997 = vmatpush1.msra.mxu0 0.0
    %1998 = vmatprep.subr.mxu0 0.0
    %1999 = vmatpush1.msra.mxu0 0.0
    %2000 = vmatprep.subr.mxu0 0.0
    %2001 = vmatpush1.msra.mxu0 %v1142
    %2002 = vmatprep.subr.mxu0 0.0
    %2003 = vmatpush1.msra.mxu0 %v1141
    %2004 = vmatprep.subr.mxu0 0.0
    %2005 = vmatpush2.msra.mxu0 0.0
    %2006 = vmatprep.subr.mxu0 0.0
    %2007 = vmatpush2.msra.mxu0 0.0
    %2008 = vmatprep.subr.mxu0 0.0
    %2009 = vmatpush2.msra.mxu0 0.0
    %2010 = vmatprep.subr.mxu0 0.0
    %2011 = vmatpush2.msra.mxu0 0.0
    %2012 = vmatprep.subr.mxu0 0.0
    %2013 = vmatpush2.msra.mxu0 0.0
    %2014 = vmatprep.subr.mxu0 0.0
    %2015 = vmatpush2.msra.mxu0 0.0
    %2016 = vmatprep.subr.mxu0 0.0
    %2017 = vmatpush2.msra.mxu0 0.0
    %2018 = vmatprep.subr.mxu0 0.0
    %2019 = vmatpush2.msra.mxu0 0.0
    %2020 = vmatprep.subr.mxu0 0.0
    %2021 = vmatpush2.msra.mxu0 0.0
    %2022 = vmatprep.subr.mxu0 0.0
    %2023 = vmatpush2.msra.mxu0 0.0
    %2024 = vmatprep.subr.mxu0 0.0
    %2025 = vmatpush2.msra.mxu0 0.0
    %2026 = vmatprep.subr.mxu0 0.0
    %2027 = vmatpush2.msra.mxu0 0.0
    %2028 = vmatprep.subr.mxu0 0.0
    %2029 = vmatpush2.msra.mxu0 0.0
    %2030 = vmatprep.subr.mxu0 0.0
    %2031 = vmatpush2.msra.mxu0 0.0
    %2032 = vmatprep.subr.mxu0 0.0
    %2033 = vmatpush2.msra.mxu0 0.0
    %2034 = vmatprep.subr.mxu0 0.0
    %2035 = vmatpush2.msra.mxu0 0.0
    %2036 = vmatprep.mubr.f32.mxu0 0.0
    %2037 = vmatmul.mubr.f32.gmra.mxu0 %v1967
    %v2038 = vpop.f32.mrf.mxu0
    %v2039 = vadd.f32 0.0, %v2038
    %v2040 = vpop.f32.mrf.mxu0
    %2041 = vmatprep.mubr.f32.mxu0 0.0
    %2042 = vmatmul.mubr.f32.gmra.mxu0 %v1970
    %v2043 = vpop.f32.mrf.mxu0
    %v2044 = vadd.f32 0.0, %v2043
    %v2045 = vpop.f32.mrf.mxu0
    %2046 = vdwg.mxu0
    %v2048 = vsel %vm36, %v1557, 0
    %v2051 = vsel %vm36, %v1633, 0
    %2053 = vmatprep.subr.mxu0 0.0
    %2054 = vmatpush1.msra.mxu0 0.0
    %2055 = vmatprep.subr.mxu0 0.0
    %2056 = vmatpush1.msra.mxu0 0.0
    %2057 = vmatprep.subr.mxu0 0.0
    %2058 = vmatpush1.msra.mxu0 0.0
    %2059 = vmatprep.subr.mxu0 0.0
    %2060 = vmatpush1.msra.mxu0 0.0
    %2061 = vmatprep.subr.mxu0 0.0
    %2062 = vmatpush1.msra.mxu0 0.0
    %2063 = vmatprep.subr.mxu0 0.0
    %2064 = vmatpush1.msra.mxu0 0.0
    %2065 = vmatprep.subr.mxu0 0.0
    %2066 = vmatpush1.msra.mxu0 0.0
    %2067 = vmatprep.subr.mxu0 0.0
    %2068 = vmatpush1.msra.mxu0 0.0
    %2069 = vmatprep.subr.mxu0 0.0
    %2070 = vmatpush1.msra.mxu0 0.0
    %2071 = vmatprep.subr.mxu0 0.0
    %2072 = vmatpush1.msra.mxu0 0.0
    %2073 = vmatprep.subr.mxu0 0.0
    %2074 = vmatpush1.msra.mxu0 0.0
    %2075 = vmatprep.subr.mxu0 0.0
    %2076 = vmatpush1.msra.mxu0 0.0
    %2077 = vmatprep.subr.mxu0 0.0
    %2078 = vmatpush1.msra.mxu0 0.0
    %2079 = vmatprep.subr.mxu0 0.0
    %2080 = vmatpush1.msra.mxu0 0.0
    %2081 = vmatprep.subr.mxu0 0.0
    %2082 = vmatpush1.msra.mxu0 %v1140
    %2083 = vmatprep.subr.mxu0 0.0
    %2084 = vmatpush1.msra.mxu0 %v1139
    %2085 = vmatprep.subr.mxu0 0.0
    %2086 = vmatpush2.msra.mxu0 0.0
    %2087 = vmatprep.subr.mxu0 0.0
    %2088 = vmatpush2.msra.mxu0 0.0
    %2089 = vmatprep.subr.mxu0 0.0
    %2090 = vmatpush2.msra.mxu0 0.0
    %2091 = vmatprep.subr.mxu0 0.0
    %2092 = vmatpush2.msra.mxu0 0.0
    %2093 = vmatprep.subr.mxu0 0.0
    %2094 = vmatpush2.msra.mxu0 0.0
    %2095 = vmatprep.subr.mxu0 0.0
    %2096 = vmatpush2.msra.mxu0 0.0
    %2097 = vmatprep.subr.mxu0 0.0
    %2098 = vmatpush2.msra.mxu0 0.0
    %2099 = vmatprep.subr.mxu0 0.0
    %2100 = vmatpush2.msra.mxu0 0.0
    %2101 = vmatprep.subr.mxu0 0.0
    %2102 = vmatpush2.msra.mxu0 0.0
    %2103 = vmatprep.subr.mxu0 0.0
    %2104 = vmatpush2.msra.mxu0 0.0
    %2105 = vmatprep.subr.mxu0 0.0
    %2106 = vmatpush2.msra.mxu0 0.0
    %2107 = vmatprep.subr.mxu0 0.0
    %2108 = vmatpush2.msra.mxu0 0.0
    %2109 = vmatprep.subr.mxu0 0.0
    %2110 = vmatpush2.msra.mxu0 0.0
    %2111 = vmatprep.subr.mxu0 0.0
    %2112 = vmatpush2.msra.mxu0 0.0
    %2113 = vmatprep.subr.mxu0 0.0
    %2114 = vmatpush2.msra.mxu0 0.0
    %2115 = vmatprep.subr.mxu0 0.0
    %2116 = vmatpush2.msra.mxu0 0.0
    %2117 = vmatprep.mubr.f32.mxu0 0.0
    %2118 = vmatmul.mubr.f32.gmra.mxu0 %v2048
    %v2119 = vpop.f32.mrf.mxu0
    %v2120 = vadd.f32 %v2039, %v2119
    %v2121 = vpop.f32.mrf.mxu0
    %2122 = vmatprep.mubr.f32.mxu0 0.0
    %2123 = vmatmul.mubr.f32.gmra.mxu0 %v2051
    %v2124 = vpop.f32.mrf.mxu0
    %v2125 = vadd.f32 %v2044, %v2124
    %v2126 = vpop.f32.mrf.mxu0
    %2127 = vdwg.mxu0
    %v2128 = vlaneseq
    %v2129 = vshrl.u32 %v2128, 7
    %v2130 = vsub.s32 0, %v2129
    %v2131 = vrot.slane %v1143, %v2130
    %v2132 = vadd.f32 %v2120, %v2131
    %v2133 = vadd.f32 %v2125, %v2131
    %v2134 = vld [vmem:[%s1 + $0xb8] sm:$0x1]
    %v2135 = vld [vmem:[%s1 + $0xc0] sm:$0x1]
    %v2136 = vadd.f32 %v110, %v2132
    %v2137 = vadd.f32 %v115, %v2133
    %v2138 = vsel %vm138, %v2136, 0.0
    %2139 = vadd.xlane.f32.xlu0 %v2138
    %v2140 = vpop.xlane.xlu0 %2139
    %v2141 = vsel %vm138, %v2137, 0.0
    %2142 = vadd.xlane.f32.xlu0 %v2141
    %v2143 = vpop.xlane.xlu0 %2142
    %v2144 = vrcp.pop 32.0
    %v2145 = vmul.f32 %v2140, %v2144
    %v2146 = vmul.f32 %v2143, %v2144
    %v2147 = vsub.f32 %v2136, %v2145
    %v2148 = vsub.f32 %v2137, %v2146
    %v2149 = vmul.f32 %v2147, %v2147
    %v2150 = vmul.f32 %v2148, %v2148
    %v2151 = vsel %vm138, %v2149, 0.0
    %2152 = vadd.xlane.f32.xlu0 %v2151
    %v2153 = vpop.xlane.xlu0 %2152
    %v2154 = vsel %vm138, %v2150, 0.0
    %2155 = vadd.xlane.f32.xlu0 %v2154
    %v2156 = vpop.xlane.xlu0 %2155
    %v2157 = vmul.f32 %v2153, %v2144
    %v2158 = vmul.f32 %v2156, %v2144
    %v2159 = vadd.f32 %v2157, 1e-05
    %v2160 = vadd.f32 %v2158, 1e-05
    %v2161 = vrsqrt.pop %v2159
    %v2162 = vrsqrt.pop %v2160
    %v2163 = vmul.f32 %v2147, %v2161
    %v2164 = vmul.f32 %v2148, %v2162
    %v2165 = vlaneseq
    %v2166 = vshrl.u32 %v2165, 7
    %v2167 = vsub.s32 0, %v2166
    %v2168 = vrot.slane %v2134, %v2167
    %v2169 = vmul.f32 %v2163, %v2168
    %v2170 = vmul.f32 %v2164, %v2168
    %v2171 = vlaneseq
    %v2172 = vshrl.u32 %v2171, 7
    %v2173 = vsub.s32 0, %v2172
    %v2174 = vrot.slane %v2135, %v2173
    %v2175 = vadd.f32 %v2169, %v2174
    %v2176 = vadd.f32 %v2170, %v2174
    %v2177 = vld [vmem:[%s1 + $0xc8] sm:$0x1]
    %v2178 = vld [vmem:[%s1 + $0xd0] sm:$0x1]
    %v2179 = vadd.f32 %v118, %v1127
    %v2180 = vadd.f32 %v118, %v1128
    %v2181 = vsel %vm138, %v2179, 0.0
    %2182 = vadd.xlane.f32.xlu0 %v2181
    %v2183 = vpop.xlane.xlu0 %2182
    %v2184 = vsel %vm138, %v2180, 0.0
    %2185 = vadd.xlane.f32.xlu0 %v2184
    %v2186 = vpop.xlane.xlu0 %2185
    %v2187 = vmul.f32 %v2183, %v2144
    %v2188 = vmul.f32 %v2186, %v2144
    %v2189 = vsub.f32 %v2179, %v2187
    %v2190 = vsub.f32 %v2180, %v2188
    %v2191 = vmul.f32 %v2189, %v2189
    %v2192 = vmul.f32 %v2190, %v2190
    %v2193 = vsel %vm138, %v2191, 0.0
    %2194 = vadd.xlane.f32.xlu0 %v2193
    %v2195 = vpop.xlane.xlu0 %2194
    %v2196 = vsel %vm138, %v2192, 0.0
    %2197 = vadd.xlane.f32.xlu0 %v2196
    %v2198 = vpop.xlane.xlu0 %2197
    %v2199 = vmul.f32 %v2195, %v2144
    %v2200 = vmul.f32 %v2198, %v2144
    %v2201 = vadd.f32 %v2199, 1e-05
    %v2202 = vadd.f32 %v2200, 1e-05
    %v2203 = vrsqrt.pop %v2201
    %v2204 = vrsqrt.pop %v2202
    %v2205 = vmul.f32 %v2189, %v2203
    %v2206 = vmul.f32 %v2190, %v2204
    %v2207 = vlaneseq
    %v2208 = vshrl.u32 %v2207, 7
    %v2209 = vsub.s32 0, %v2208
    %v2210 = vrot.slane %v2177, %v2209
    %v2211 = vmul.f32 %v2205, %v2210
    %v2212 = vmul.f32 %v2206, %v2210
    %v2213 = vlaneseq
    %v2214 = vshrl.u32 %v2213, 7
    %v2215 = vsub.s32 0, %v2214
    %v2216 = vrot.slane %v2178, %v2215
    %v2217 = vadd.f32 %v2211, %v2216
    %v2218 = vadd.f32 %v2212, %v2216
    %v2219 = vld [vmem:[%s3] sm:$0xff]
    %v2220 = vld [vmem:[%s3 + $0x8] sm:$0xff]
    %v2221 = vld [vmem:[%s3 + $0x10] sm:$0xff]
    %v2222 = vld [vmem:[%s3 + $0x18] sm:$0xff]
    %v2223 = vld [vmem:[%s3 + $0x20] sm:$0x1]
    %v2224 = vlaneseq
    %v2225 = vshrl.u32 %v2224, 7
    %v2226 = vsub.s32 0, %v2225
    %v2227 = vrot.slane %v2223, %v2226
    %v2229 = vsel %vm138, %v2175, 0
    %v2232 = vsel %vm138, %v2176, 0
    %2234 = vmatprep.subr.mxu0 0.0
    %2235 = vmatpush1.msra.mxu0 0.0
    %2236 = vmatprep.subr.mxu0 0.0
    %2237 = vmatpush1.msra.mxu0 0.0
    %2238 = vmatprep.subr.mxu0 0.0
    %2239 = vmatpush1.msra.mxu0 0.0
    %2240 = vmatprep.subr.mxu0 0.0
    %2241 = vmatpush1.msra.mxu0 0.0
    %2242 = vmatprep.subr.mxu0 0.0
    %2243 = vmatpush1.msra.mxu0 0.0
    %2244 = vmatprep.subr.mxu0 0.0
    %2245 = vmatpush1.msra.mxu0 0.0
    %2246 = vmatprep.subr.mxu0 0.0
    %2247 = vmatpush1.msra.mxu0 0.0
    %2248 = vmatprep.subr.mxu0 0.0
    %2249 = vmatpush1.msra.mxu0 0.0
    %2250 = vmatprep.subr.mxu0 0.0
    %2251 = vmatpush1.msra.mxu0 0.0
    %2252 = vmatprep.subr.mxu0 0.0
    %2253 = vmatpush1.msra.mxu0 0.0
    %2254 = vmatprep.subr.mxu0 0.0
    %2255 = vmatpush1.msra.mxu0 0.0
    %2256 = vmatprep.subr.mxu0 0.0
    %2257 = vmatpush1.msra.mxu0 0.0
    %2258 = vmatprep.subr.mxu0 0.0
    %2259 = vmatpush1.msra.mxu0 %v2222
    %2260 = vmatprep.subr.mxu0 0.0
    %2261 = vmatpush1.msra.mxu0 %v2221
    %2262 = vmatprep.subr.mxu0 0.0
    %2263 = vmatpush1.msra.mxu0 %v2220
    %2264 = vmatprep.subr.mxu0 0.0
    %2265 = vmatpush1.msra.mxu0 %v2219
    %2266 = vmatprep.subr.mxu0 0.0
    %2267 = vmatpush2.msra.mxu0 0.0
    %2268 = vmatprep.subr.mxu0 0.0
    %2269 = vmatpush2.msra.mxu0 0.0
    %2270 = vmatprep.subr.mxu0 0.0
    %2271 = vmatpush2.msra.mxu0 0.0
    %2272 = vmatprep.subr.mxu0 0.0
    %2273 = vmatpush2.msra.mxu0 0.0
    %2274 = vmatprep.subr.mxu0 0.0
    %2275 = vmatpush2.msra.mxu0 0.0
    %2276 = vmatprep.subr.mxu0 0.0
    %2277 = vmatpush2.msra.mxu0 0.0
    %2278 = vmatprep.subr.mxu0 0.0
    %2279 = vmatpush2.msra.mxu0 0.0
    %2280 = vmatprep.subr.mxu0 0.0
    %2281 = vmatpush2.msra.mxu0 0.0
    %2282 = vmatprep.subr.mxu0 0.0
    %2283 = vmatpush2.msra.mxu0 0.0
    %2284 = vmatprep.subr.mxu0 0.0
    %2285 = vmatpush2.msra.mxu0 0.0
    %2286 = vmatprep.subr.mxu0 0.0
    %2287 = vmatpush2.msra.mxu0 0.0
    %2288 = vmatprep.subr.mxu0 0.0
    %2289 = vmatpush2.msra.mxu0 0.0
    %2290 = vmatprep.subr.mxu0 0.0
    %2291 = vmatpush2.msra.mxu0 0.0
    %2292 = vmatprep.subr.mxu0 0.0
    %2293 = vmatpush2.msra.mxu0 0.0
    %2294 = vmatprep.subr.mxu0 0.0
    %2295 = vmatpush2.msra.mxu0 0.0
    %2296 = vmatprep.subr.mxu0 0.0
    %2297 = vmatpush2.msra.mxu0 0.0
    %2298 = vmatprep.mubr.f32.mxu0 0.0
    %2299 = vmatmul.mubr.f32.gmra.mxu0 %v2229
    %v2300 = vpop.f32.mrf.mxu0
    %v2301 = vadd.f32 %v2227, %v2300
    %v2302 = vpop.f32.mrf.mxu0
    %2303 = vmatprep.mubr.f32.mxu0 0.0
    %2304 = vmatmul.mubr.f32.gmra.mxu0 %v2232
    %v2305 = vpop.f32.mrf.mxu0
    %v2306 = vadd.f32 %v2227, %v2305
    %v2307 = vpop.f32.mrf.mxu0
    %2308 = vdwg.mxu0
    %v2309 = vmul.f32 %v2301, %v2301
    %v2310 = vmul.f32 %v2306, %v2306
    %v2311 = vmul.f32 %v2301, %v2309
    %v2312 = vmul.f32 %v2306, %v2310
    %v2313 = vmul.f32 %v2311, 0.044715
    %v2314 = vmul.f32 %v2312, 0.044715
    %v2315 = vadd.f32 %v2301, %v2313
    %v2316 = vadd.f32 %v2306, %v2314
    %v2317 = vmul.f32 %v2315, 0.7978846
    %v2318 = vmul.f32 %v2316, 0.7978846
    %v2319 = vtanh.pop %v2317
    %v2320 = vtanh.pop %v2318
    %v2321 = vadd.f32 %v2319, 1.0
    %v2322 = vadd.f32 %v2320, 1.0
    %v2323 = vmul.f32 %v2321, 0.5
    %v2324 = vmul.f32 %v2322, 0.5
    %v2325 = vmul.f32 %v2301, %v2323
    %v2326 = vmul.f32 %v2306, %v2324
    %v2327 = vld [vmem:[%s1 + $0xe8] sm:$0xff]
    %v2328 = vld [vmem:[%s1 + $0xf0] sm:$0xff]
    %v2329 = vld [vmem:[%s1 + $0xf8] sm:$0xff]
    %v2330 = vld [vmem:[%s1 + $0x100] sm:$0xff]
    %v2331 = vld [vmem:[%s1 + $0x108] sm:$0xff]
    %v2332 = vld [vmem:[%s1 + $0x110] sm:$0xff]
    %v2333 = vld [vmem:[%s1 + $0x118] sm:$0xff]
    %v2334 = vld [vmem:[%s1 + $0x120] sm:$0xff]
    %v2335 = vld [vmem:[%s1 + $0x128] sm:$0xff]
    %v2336 = vld [vmem:[%s1 + $0x130] sm:$0xff]
    %v2337 = vld [vmem:[%s1 + $0x138] sm:$0xff]
    %v2338 = vld [vmem:[%s1 + $0x140] sm:$0xff]
    %v2339 = vld [vmem:[%s1 + $0x148] sm:$0xff]
    %v2340 = vld [vmem:[%s1 + $0x150] sm:$0xff]
    %v2341 = vld [vmem:[%s1 + $0x158] sm:$0xff]
    %v2342 = vld [vmem:[%s1 + $0x160] sm:$0xff]
    %v2343 = vld [vmem:[%s1 + $0x168] sm:$0x1]
    %v2344 = vlaneseq
    %v2345 = vshrl.u32 %v2344, 7
    %v2346 = vsub.s32 0, %v2345
    %v2347 = vrot.slane %v2343, %v2346
    %2348 = vmatprep.subr.mxu0 0.0
    %2349 = vmatpush1.msra.mxu0 %v2342
    %2350 = vmatprep.subr.mxu0 0.0
    %2351 = vmatpush1.msra.mxu0 %v2341
    %2352 = vmatprep.subr.mxu0 0.0
    %2353 = vmatpush1.msra.mxu0 %v2340
    %2354 = vmatprep.subr.mxu0 0.0
    %2355 = vmatpush1.msra.mxu0 %v2339
    %2356 = vmatprep.subr.mxu0 0.0
    %2357 = vmatpush1.msra.mxu0 %v2338
    %2358 = vmatprep.subr.mxu0 0.0
    %2359 = vmatpush1.msra.mxu0 %v2337
    %2360 = vmatprep.subr.mxu0 0.0
    %2361 = vmatpush1.msra.mxu0 %v2336
    %2362 = vmatprep.subr.mxu0 0.0
    %2363 = vmatpush1.msra.mxu0 %v2335
    %2364 = vmatprep.subr.mxu0 0.0
    %2365 = vmatpush1.msra.mxu0 %v2334
    %2366 = vmatprep.subr.mxu0 0.0
    %2367 = vmatpush1.msra.mxu0 %v2333
    %2368 = vmatprep.subr.mxu0 0.0
    %2369 = vmatpush1.msra.mxu0 %v2332
    %2370 = vmatprep.subr.mxu0 0.0
    %2371 = vmatpush1.msra.mxu0 %v2331
    %2372 = vmatprep.subr.mxu0 0.0
    %2373 = vmatpush1.msra.mxu0 %v2330
    %2374 = vmatprep.subr.mxu0 0.0
    %2375 = vmatpush1.msra.mxu0 %v2329
    %2376 = vmatprep.subr.mxu0 0.0
    %2377 = vmatpush1.msra.mxu0 %v2328
    %2378 = vmatprep.subr.mxu0 0.0
    %2379 = vmatpush1.msra.mxu0 %v2327
    %2380 = vmatprep.subr.mxu0 0.0
    %2381 = vmatpush2.msra.mxu0 0.0
    %2382 = vmatprep.subr.mxu0 0.0
    %2383 = vmatpush2.msra.mxu0 0.0
    %2384 = vmatprep.subr.mxu0 0.0
    %2385 = vmatpush2.msra.mxu0 0.0
    %2386 = vmatprep.subr.mxu0 0.0
    %2387 = vmatpush2.msra.mxu0 0.0
    %2388 = vmatprep.subr.mxu0 0.0
    %2389 = vmatpush2.msra.mxu0 0.0
    %2390 = vmatprep.subr.mxu0 0.0
    %2391 = vmatpush2.msra.mxu0 0.0
    %2392 = vmatprep.subr.mxu0 0.0
    %2393 = vmatpush2.msra.mxu0 0.0
    %2394 = vmatprep.subr.mxu0 0.0
    %2395 = vmatpush2.msra.mxu0 0.0
    %2396 = vmatprep.subr.mxu0 0.0
    %2397 = vmatpush2.msra.mxu0 0.0
    %2398 = vmatprep.subr.mxu0 0.0
    %2399 = vmatpush2.msra.mxu0 0.0
    %2400 = vmatprep.subr.mxu0 0.0
    %2401 = vmatpush2.msra.mxu0 0.0
    %2402 = vmatprep.subr.mxu0 0.0
    %2403 = vmatpush2.msra.mxu0 0.0
    %2404 = vmatprep.subr.mxu0 0.0
    %2405 = vmatpush2.msra.mxu0 0.0
    %2406 = vmatprep.subr.mxu0 0.0
    %2407 = vmatpush2.msra.mxu0 0.0
    %2408 = vmatprep.subr.mxu0 0.0
    %2409 = vmatpush2.msra.mxu0 0.0
    %2410 = vmatprep.subr.mxu0 0.0
    %2411 = vmatpush2.msra.mxu0 0.0
    %2412 = vmatprep.mubr.f32.mxu0 0.0
    %2413 = vmatmul.mubr.f32.gmra.mxu0 %v2325
    %v2414 = vpop.f32.mrf.mxu0
    %v2415 = vadd.f32 %v2347, %v2414
    %v2416 = vpop.f32.mrf.mxu0
    %2417 = vmatprep.mubr.f32.mxu0 0.0
    %2418 = vmatmul.mubr.f32.gmra.mxu0 %v2326
    %v2419 = vpop.f32.mrf.mxu0
    %v2420 = vadd.f32 %v2347, %v2419
    %v2421 = vpop.f32.mrf.mxu0
    %2422 = vdwg.mxu0
    %v2423 = vld [vmem:[%s1 + $0xd8] sm:$0x1]
    %v2424 = vld [vmem:[%s1 + $0xe0] sm:$0x1]
    %v2425 = vadd.f32 %v2175, %v2415
    %v2426 = vadd.f32 %v2176, %v2420
    %v2427 = vsel %vm138, %v2425, 0.0
    %2428 = vadd.xlane.f32.xlu0 %v2427
    %v2429 = vpop.xlane.xlu0 %2428
    %v2430 = vsel %vm138, %v2426, 0.0
    %2431 = vadd.xlane.f32.xlu0 %v2430
    %v2432 = vpop.xlane.xlu0 %2431
    %v2433 = vmul.f32 %v2429, %v2144
    %v2434 = vmul.f32 %v2432, %v2144
    %v2435 = vsub.f32 %v2425, %v2433
    %v2436 = vsub.f32 %v2426, %v2434
    %v2437 = vmul.f32 %v2435, %v2435
    %v2438 = vmul.f32 %v2436, %v2436
    %v2439 = vsel %vm138, %v2437, 0.0
    %2440 = vadd.xlane.f32.xlu0 %v2439
    %v2441 = vpop.xlane.xlu0 %2440
    %v2442 = vsel %vm138, %v2438, 0.0
    %2443 = vadd.xlane.f32.xlu0 %v2442
    %v2444 = vpop.xlane.xlu0 %2443
    %v2445 = vmul.f32 %v2441, %v2144
    %v2446 = vmul.f32 %v2444, %v2144
    %v2447 = vadd.f32 %v2445, 1e-05
    %v2448 = vadd.f32 %v2446, 1e-05
    %v2449 = vrsqrt.pop %v2447
    %v2450 = vrsqrt.pop %v2448
    %v2451 = vmul.f32 %v2435, %v2449
    %v2452 = vmul.f32 %v2436, %v2450
    %v2453 = vlaneseq
    %v2454 = vshrl.u32 %v2453, 7
    %v2455 = vsub.s32 0, %v2454
    %v2456 = vrot.slane %v2423, %v2455
    %v2457 = vmul.f32 %v2451, %v2456
    %v2458 = vmul.f32 %v2452, %v2456
    %v2459 = vlaneseq
    %v2460 = vshrl.u32 %v2459, 7
    %v2461 = vsub.s32 0, %v2460
    %v2462 = vrot.slane %v2424, %v2461
    %v2463 = vadd.f32 %v2457, %v2462
    %v2464 = vadd.f32 %v2458, %v2462
    %v2465 = vld [vmem:[%s1 + $0x170] sm:$0xff]
    %v2466 = vld [vmem:[%s1 + $0x178] sm:$0xff]
    %v2467 = vld [vmem:[%s1 + $0x180] sm:$0xff]
    %v2468 = vld [vmem:[%s1 + $0x188] sm:$0xff]
    %v2469 = vld [vmem:[%s1 + $0x190] sm:$0x1]
    %v2470 = vld [vmem:[%s2 + $0x50] sm:$0xff]
    %v2471 = vld [vmem:[%s2 + $0x58] sm:$0xff]
    %v2472 = vld [vmem:[%s2 + $0x60] sm:$0xff]
    %v2473 = vld [vmem:[%s2 + $0x68] sm:$0xff]
    %v2474 = vld [vmem:[%s2 + $0x70] sm:$0x1]
    %v2475 = vld [vmem:[%s1 + $0x198] sm:$0xff]
    %v2476 = vld [vmem:[%s1 + $0x1a0] sm:$0xff]
    %v2477 = vld [vmem:[%s1 + $0x1a8] sm:$0xff]
    %v2478 = vld [vmem:[%s1 + $0x1b0] sm:$0xff]
    %v2479 = vld [vmem:[%s1 + $0x1b8] sm:$0x1]
    %v2480 = vlaneseq
    %v2481 = vshrl.u32 %v2480, 7
    %v2482 = vsub.s32 0, %v2481
    %v2483 = vrot.slane %v2469, %v2482
    %v2485 = vsel %vm138, %v2217, 0
    %v2488 = vsel %vm138, %v2218, 0
    %2490 = vmatprep.subr.mxu0 0.0
    %2491 = vmatpush1.msra.mxu0 0.0
    %2492 = vmatprep.subr.mxu0 0.0
    %2493 = vmatpush1.msra.mxu0 0.0
    %2494 = vmatprep.subr.mxu0 0.0
    %2495 = vmatpush1.msra.mxu0 0.0
    %2496 = vmatprep.subr.mxu0 0.0
    %2497 = vmatpush1.msra.mxu0 0.0
    %2498 = vmatprep.subr.mxu0 0.0
    %2499 = vmatpush1.msra.mxu0 0.0
    %2500 = vmatprep.subr.mxu0 0.0
    %2501 = vmatpush1.msra.mxu0 0.0
    %2502 = vmatprep.subr.mxu0 0.0
    %2503 = vmatpush1.msra.mxu0 0.0
    %2504 = vmatprep.subr.mxu0 0.0
    %2505 = vmatpush1.msra.mxu0 0.0
    %2506 = vmatprep.subr.mxu0 0.0
    %2507 = vmatpush1.msra.mxu0 0.0
    %2508 = vmatprep.subr.mxu0 0.0
    %2509 = vmatpush1.msra.mxu0 0.0
    %2510 = vmatprep.subr.mxu0 0.0
    %2511 = vmatpush1.msra.mxu0 0.0
    %2512 = vmatprep.subr.mxu0 0.0
    %2513 = vmatpush1.msra.mxu0 0.0
    %2514 = vmatprep.subr.mxu0 0.0
    %2515 = vmatpush1.msra.mxu0 %v2468
    %2516 = vmatprep.subr.mxu0 0.0
    %2517 = vmatpush1.msra.mxu0 %v2467
    %2518 = vmatprep.subr.mxu0 0.0
    %2519 = vmatpush1.msra.mxu0 %v2466
    %2520 = vmatprep.subr.mxu0 0.0
    %2521 = vmatpush1.msra.mxu0 %v2465
    %2522 = vmatprep.subr.mxu0 0.0
    %2523 = vmatpush2.msra.mxu0 0.0
    %2524 = vmatprep.subr.mxu0 0.0
    %2525 = vmatpush2.msra.mxu0 0.0
    %2526 = vmatprep.subr.mxu0 0.0
    %2527 = vmatpush2.msra.mxu0 0.0
    %2528 = vmatprep.subr.mxu0 0.0
    %2529 = vmatpush2.msra.mxu0 0.0
    %2530 = vmatprep.subr.mxu0 0.0
    %2531 = vmatpush2.msra.mxu0 0.0
    %2532 = vmatprep.subr.mxu0 0.0
    %2533 = vmatpush2.msra.mxu0 0.0
    %2534 = vmatprep.subr.mxu0 0.0
    %2535 = vmatpush2.msra.mxu0 0.0
    %2536 = vmatprep.subr.mxu0 0.0
    %2537 = vmatpush2.msra.mxu0 0.0
    %2538 = vmatprep.subr.mxu0 0.0
    %2539 = vmatpush2.msra.mxu0 0.0
    %2540 = vmatprep.subr.mxu0 0.0
    %2541 = vmatpush2.msra.mxu0 0.0
    %2542 = vmatprep.subr.mxu0 0.0
    %2543 = vmatpush2.msra.mxu0 0.0
    %2544 = vmatprep.subr.mxu0 0.0
    %2545 = vmatpush2.msra.mxu0 0.0
    %2546 = vmatprep.subr.mxu0 0.0
    %2547 = vmatpush2.msra.mxu0 0.0
    %2548 = vmatprep.subr.mxu0 0.0
    %2549 = vmatpush2.msra.mxu0 0.0
    %2550 = vmatprep.subr.mxu0 0.0
    %2551 = vmatpush2.msra.mxu0 0.0
    %2552 = vmatprep.subr.mxu0 0.0
    %2553 = vmatpush2.msra.mxu0 0.0
    %2554 = vmatprep.mubr.f32.mxu0 0.0
    %2555 = vmatmul.mubr.f32.gmra.mxu0 %v2485
    %v2556 = vpop.f32.mrf.mxu0
    %v2557 = vadd.f32 %v2483, %v2556
    %v2558 = vpop.f32.mrf.mxu0
    %2559 = vmatprep.mubr.f32.mxu0 0.0
    %2560 = vmatmul.mubr.f32.gmra.mxu0 %v2488
    %v2561 = vpop.f32.mrf.mxu0
    %v2562 = vadd.f32 %v2483, %v2561
    %v2563 = vpop.f32.mrf.mxu0
    %2564 = vdwg.mxu0
    %v2565 = vlaneseq
    %v2566 = vshrl.u32 %v2565, 7
    %v2567 = vsub.s32 0, %v2566
    %v2568 = vrot.slane %v2474, %v2567
    %v2570 = vsel %vm138, %v2463, 0
    %v2573 = vsel %vm138, %v2464, 0
    %2575 = vmatprep.subr.mxu0 0.0
    %2576 = vmatpush1.msra.mxu0 0.0
    %2577 = vmatprep.subr.mxu0 0.0
    %2578 = vmatpush1.msra.mxu0 0.0
    %2579 = vmatprep.subr.mxu0 0.0
    %2580 = vmatpush1.msra.mxu0 0.0
    %2581 = vmatprep.subr.mxu0 0.0
    %2582 = vmatpush1.msra.mxu0 0.0
    %2583 = vmatprep.subr.mxu0 0.0
    %2584 = vmatpush1.msra.mxu0 0.0
    %2585 = vmatprep.subr.mxu0 0.0
    %2586 = vmatpush1.msra.mxu0 0.0
    %2587 = vmatprep.subr.mxu0 0.0
    %2588 = vmatpush1.msra.mxu0 0.0
    %2589 = vmatprep.subr.mxu0 0.0
    %2590 = vmatpush1.msra.mxu0 0.0
    %2591 = vmatprep.subr.mxu0 0.0
    %2592 = vmatpush1.msra.mxu0 0.0
    %2593 = vmatprep.subr.mxu0 0.0
    %2594 = vmatpush1.msra.mxu0 0.0
    %2595 = vmatprep.subr.mxu0 0.0
    %2596 = vmatpush1.msra.mxu0 0.0
    %2597 = vmatprep.subr.mxu0 0.0
    %2598 = vmatpush1.msra.mxu0 0.0
    %2599 = vmatprep.subr.mxu0 0.0
    %2600 = vmatpush1.msra.mxu0 %v2473
    %2601 = vmatprep.subr.mxu0 0.0
    %2602 = vmatpush1.msra.mxu0 %v2472
    %2603 = vmatprep.subr.mxu0 0.0
    %2604 = vmatpush1.msra.mxu0 %v2471
    %2605 = vmatprep.subr.mxu0 0.0
    %2606 = vmatpush1.msra.mxu0 %v2470
    %2607 = vmatprep.subr.mxu0 0.0
    %2608 = vmatpush2.msra.mxu0 0.0
    %2609 = vmatprep.subr.mxu0 0.0
    %2610 = vmatpush2.msra.mxu0 0.0
    %2611 = vmatprep.subr.mxu0 0.0
    %2612 = vmatpush2.msra.mxu0 0.0
    %2613 = vmatprep.subr.mxu0 0.0
    %2614 = vmatpush2.msra.mxu0 0.0
    %2615 = vmatprep.subr.mxu0 0.0
    %2616 = vmatpush2.msra.mxu0 0.0
    %2617 = vmatprep.subr.mxu0 0.0
    %2618 = vmatpush2.msra.mxu0 0.0
    %2619 = vmatprep.subr.mxu0 0.0
    %2620 = vmatpush2.msra.mxu0 0.0
    %2621 = vmatprep.subr.mxu0 0.0
    %2622 = vmatpush2.msra.mxu0 0.0
    %2623 = vmatprep.subr.mxu0 0.0
    %2624 = vmatpush2.msra.mxu0 0.0
    %2625 = vmatprep.subr.mxu0 0.0
    %2626 = vmatpush2.msra.mxu0 0.0
    %2627 = vmatprep.subr.mxu0 0.0
    %2628 = vmatpush2.msra.mxu0 0.0
    %2629 = vmatprep.subr.mxu0 0.0
    %2630 = vmatpush2.msra.mxu0 0.0
    %2631 = vmatprep.subr.mxu0 0.0
    %2632 = vmatpush2.msra.mxu0 0.0
    %2633 = vmatprep.subr.mxu0 0.0
    %2634 = vmatpush2.msra.mxu0 0.0
    %2635 = vmatprep.subr.mxu0 0.0
    %2636 = vmatpush2.msra.mxu0 0.0
    %2637 = vmatprep.subr.mxu0 0.0
    %2638 = vmatpush2.msra.mxu0 0.0
    %2639 = vmatprep.mubr.f32.mxu0 0.0
    %2640 = vmatmul.mubr.f32.gmra.mxu0 %v2570
    %v2641 = vpop.f32.mrf.mxu0
    %v2642 = vadd.f32 %v2568, %v2641
    %v2643 = vpop.f32.mrf.mxu0
    %2644 = vmatprep.mubr.f32.mxu0 0.0
    %2645 = vmatmul.mubr.f32.gmra.mxu0 %v2573
    %v2646 = vpop.f32.mrf.mxu0
    %v2647 = vadd.f32 %v2568, %v2646
    %v2648 = vpop.f32.mrf.mxu0
    %2649 = vdwg.mxu0
    %v2650 = vmul.f32 %v2557, 0.25
    %v2651 = vmul.f32 %v2562, 0.25
    %v2653 = vsel %vm36, %v2650, 0
    %v2656 = vsel %vm36, %v2642, 0
    %2658 = vmatprep.subr.mxu0 0.0
    %2659 = vmatpush1.xpose.msra.mxu0 0.0
    %2660 = vmatprep.subr.mxu0 0.0
    %2661 = vmatpush1.xpose.msra.mxu0 0.0
    %2662 = vmatprep.subr.mxu0 0.0
    %2663 = vmatpush1.xpose.msra.mxu0 0.0
    %2664 = vmatprep.subr.mxu0 0.0
    %2665 = vmatpush1.xpose.msra.mxu0 0.0
    %2666 = vmatprep.subr.mxu0 0.0
    %2667 = vmatpush1.xpose.msra.mxu0 0.0
    %2668 = vmatprep.subr.mxu0 0.0
    %2669 = vmatpush1.xpose.msra.mxu0 0.0
    %2670 = vmatprep.subr.mxu0 0.0
    %2671 = vmatpush1.xpose.msra.mxu0 0.0
    %2672 = vmatprep.subr.mxu0 0.0
    %2673 = vmatpush1.xpose.msra.mxu0 0.0
    %2674 = vmatprep.subr.mxu0 0.0
    %2675 = vmatpush1.xpose.msra.mxu0 0.0
    %2676 = vmatprep.subr.mxu0 0.0
    %2677 = vmatpush1.xpose.msra.mxu0 0.0
    %2678 = vmatprep.subr.mxu0 0.0
    %2679 = vmatpush1.xpose.msra.mxu0 0.0
    %2680 = vmatprep.subr.mxu0 0.0
    %2681 = vmatpush1.xpose.msra.mxu0 0.0
    %2682 = vmatprep.subr.mxu0 0.0
    %2683 = vmatpush1.xpose.msra.mxu0 0.0
    %2684 = vmatprep.subr.mxu0 0.0
    %2685 = vmatpush1.xpose.msra.mxu0 0.0
    %2686 = vmatprep.subr.mxu0 0.0
    %2687 = vmatpush1.xpose.msra.mxu0 0.0
    %2688 = vmatprep.subr.mxu0 0.0
    %2689 = vmatpush1.xpose.msra.mxu0 %v2656
    %2690 = vmatprep.subr.mxu0 0.0
    %2691 = vmatpush2.xpose.msra.mxu0 0.0
    %2692 = vmatprep.subr.mxu0 0.0
    %2693 = vmatpush2.xpose.msra.mxu0 0.0
    %2694 = vmatprep.subr.mxu0 0.0
    %2695 = vmatpush2.xpose.msra.mxu0 0.0
    %2696 = vmatprep.subr.mxu0 0.0
    %2697 = vmatpush2.xpose.msra.mxu0 0.0
    %2698 = vmatprep.subr.mxu0 0.0
    %2699 = vmatpush2.xpose.msra.mxu0 0.0
    %2700 = vmatprep.subr.mxu0 0.0
    %2701 = vmatpush2.xpose.msra.mxu0 0.0
    %2702 = vmatprep.subr.mxu0 0.0
    %2703 = vmatpush2.xpose.msra.mxu0 0.0
    %2704 = vmatprep.subr.mxu0 0.0
    %2705 = vmatpush2.xpose.msra.mxu0 0.0
    %2706 = vmatprep.subr.mxu0 0.0
    %2707 = vmatpush2.xpose.msra.mxu0 0.0
    %2708 = vmatprep.subr.mxu0 0.0
    %2709 = vmatpush2.xpose.msra.mxu0 0.0
    %2710 = vmatprep.subr.mxu0 0.0
    %2711 = vmatpush2.xpose.msra.mxu0 0.0
    %2712 = vmatprep.subr.mxu0 0.0
    %2713 = vmatpush2.xpose.msra.mxu0 0.0
    %2714 = vmatprep.subr.mxu0 0.0
    %2715 = vmatpush2.xpose.msra.mxu0 0.0
    %2716 = vmatprep.subr.mxu0 0.0
    %2717 = vmatpush2.xpose.msra.mxu0 0.0
    %2718 = vmatprep.subr.mxu0 0.0
    %2719 = vmatpush2.xpose.msra.mxu0 0.0
    %2720 = vmatprep.subr.mxu0 0.0
    %2721 = vmatpush2.xpose.msra.mxu0 0.0
    %2722 = vmatprep.mubr.f32.mxu0 0.0
    %2723 = vmatmul.mubr.f32.gmra.mxu0 %v2653
    %v2724 = vpop.f32.mrf.mxu0
    %v2725 = vadd.f32 0.0, %v2724
    %v2726 = vpop.f32.mrf.mxu0
    %2727 = vdwg.mxu0
    %v2729 = vsel %vm36, %v2651, 0
    %v2732 = vsel %vm36, %v2647, 0
    %2734 = vmatprep.subr.mxu0 0.0
    %2735 = vmatpush1.xpose.msra.mxu0 0.0
    %2736 = vmatprep.subr.mxu0 0.0
    %2737 = vmatpush1.xpose.msra.mxu0 0.0
    %2738 = vmatprep.subr.mxu0 0.0
    %2739 = vmatpush1.xpose.msra.mxu0 0.0
    %2740 = vmatprep.subr.mxu0 0.0
    %2741 = vmatpush1.xpose.msra.mxu0 0.0
    %2742 = vmatprep.subr.mxu0 0.0
    %2743 = vmatpush1.xpose.msra.mxu0 0.0
    %2744 = vmatprep.subr.mxu0 0.0
    %2745 = vmatpush1.xpose.msra.mxu0 0.0
    %2746 = vmatprep.subr.mxu0 0.0
    %2747 = vmatpush1.xpose.msra.mxu0 0.0
    %2748 = vmatprep.subr.mxu0 0.0
    %2749 = vmatpush1.xpose.msra.mxu0 0.0
    %2750 = vmatprep.subr.mxu0 0.0
    %2751 = vmatpush1.xpose.msra.mxu0 0.0
    %2752 = vmatprep.subr.mxu0 0.0
    %2753 = vmatpush1.xpose.msra.mxu0 0.0
    %2754 = vmatprep.subr.mxu0 0.0
    %2755 = vmatpush1.xpose.msra.mxu0 0.0
    %2756 = vmatprep.subr.mxu0 0.0
    %2757 = vmatpush1.xpose.msra.mxu0 0.0
    %2758 = vmatprep.subr.mxu0 0.0
    %2759 = vmatpush1.xpose.msra.mxu0 0.0
    %2760 = vmatprep.subr.mxu0 0.0
    %2761 = vmatpush1.xpose.msra.mxu0 0.0
    %2762 = vmatprep.subr.mxu0 0.0
    %2763 = vmatpush1.xpose.msra.mxu0 0.0
    %2764 = vmatprep.subr.mxu0 0.0
    %2765 = vmatpush1.xpose.msra.mxu0 %v2732
    %2766 = vmatprep.subr.mxu0 0.0
    %2767 = vmatpush2.xpose.msra.mxu0 0.0
    %2768 = vmatprep.subr.mxu0 0.0
    %2769 = vmatpush2.xpose.msra.mxu0 0.0
    %2770 = vmatprep.subr.mxu0 0.0
    %2771 = vmatpush2.xpose.msra.mxu0 0.0
    %2772 = vmatprep.subr.mxu0 0.0
    %2773 = vmatpush2.xpose.msra.mxu0 0.0
    %2774 = vmatprep.subr.mxu0 0.0
    %2775 = vmatpush2.xpose.msra.mxu0 0.0
    %2776 = vmatprep.subr.mxu0 0.0
    %2777 = vmatpush2.xpose.msra.mxu0 0.0
    %2778 = vmatprep.subr.mxu0 0.0
    %2779 = vmatpush2.xpose.msra.mxu0 0.0
    %2780 = vmatprep.subr.mxu0 0.0
    %2781 = vmatpush2.xpose.msra.mxu0 0.0
    %2782 = vmatprep.subr.mxu0 0.0
    %2783 = vmatpush2.xpose.msra.mxu0 0.0
    %2784 = vmatprep.subr.mxu0 0.0
    %2785 = vmatpush2.xpose.msra.mxu0 0.0
    %2786 = vmatprep.subr.mxu0 0.0
    %2787 = vmatpush2.xpose.msra.mxu0 0.0
    %2788 = vmatprep.subr.mxu0 0.0
    %2789 = vmatpush2.xpose.msra.mxu0 0.0
    %2790 = vmatprep.subr.mxu0 0.0
    %2791 = vmatpush2.xpose.msra.mxu0 0.0
    %2792 = vmatprep.subr.mxu0 0.0
    %2793 = vmatpush2.xpose.msra.mxu0 0.0
    %2794 = vmatprep.subr.mxu0 0.0
    %2795 = vmatpush2.xpose.msra.mxu0 0.0
    %2796 = vmatprep.subr.mxu0 0.0
    %2797 = vmatpush2.xpose.msra.mxu0 0.0
    %2798 = vmatprep.mubr.f32.mxu0 0.0
    %2799 = vmatmul.mubr.f32.gmra.mxu0 %v2729
    %v2800 = vpop.f32.mrf.mxu0
    %v2801 = vadd.f32 0.0, %v2800
    %v2802 = vpop.f32.mrf.mxu0
    %2803 = vdwg.mxu0
    %v2804 = vsel %vm456, %v2725, -inf
    %2805 = vmax.xlane.f32.xlu0 %v2804
    %v2806 = vpop.xlane.xlu0 %2805
    %v2807 = vsel %vm456, %v2801, -inf
    %2808 = vmax.xlane.f32.xlu0 %v2807
    %v2809 = vpop.xlane.xlu0 %2808
    %v2810 = vsub.f32 %v2725, %v2806
    %v2811 = vsub.f32 %v2801, %v2809
    %v2812 = vmul.f32 %v2810, 1.442695
    %v2813 = vpow.pop %v2812
    %v2814 = vmul.f32 %v2811, 1.442695
    %v2815 = vpow.pop %v2814
    %v2816 = vsel %vm456, %v2813, 0.0
    %2817 = vadd.xlane.f32.xlu0 %v2816
    %v2818 = vpop.xlane.xlu0 %2817
    %v2819 = vsel %vm456, %v2815, 0.0
    %2820 = vadd.xlane.f32.xlu0 %v2819
    %v2821 = vpop.xlane.xlu0 %2820
    %v2822 = vrcp.pop %v2818
    %v2823 = vmul.f32 %v2813, %v2822
    %v2824 = vrcp.pop %v2821
    %v2825 = vmul.f32 %v2815, %v2824
    %2826 = vrot.lane.b32.xlu0 %v2642, 96
    %v2827 = vpop.permute.xlu0 %2826
    %v2830 = vsel %vm456, %v2823, 0
    %2832 = vmatprep.subr.mxu0 0.0
    %2833 = vmatpush1.msra.mxu0 0.0
    %2834 = vmatprep.subr.mxu0 0.0
    %2835 = vmatpush1.msra.mxu0 0.0
    %2836 = vmatprep.subr.mxu0 0.0
    %2837 = vmatpush1.msra.mxu0 0.0
    %2838 = vmatprep.subr.mxu0 0.0
    %2839 = vmatpush1.msra.mxu0 0.0
    %2840 = vmatprep.subr.mxu0 0.0
    %2841 = vmatpush1.msra.mxu0 0.0
    %2842 = vmatprep.subr.mxu0 0.0
    %2843 = vmatpush1.msra.mxu0 0.0
    %2844 = vmatprep.subr.mxu0 0.0
    %2845 = vmatpush1.msra.mxu0 0.0
    %2846 = vmatprep.subr.mxu0 0.0
    %2847 = vmatpush1.msra.mxu0 0.0
    %2848 = vmatprep.subr.mxu0 0.0
    %2849 = vmatpush1.msra.mxu0 0.0
    %2850 = vmatprep.subr.mxu0 0.0
    %2851 = vmatpush1.msra.mxu0 0.0
    %2852 = vmatprep.subr.mxu0 0.0
    %2853 = vmatpush1.msra.mxu0 0.0
    %2854 = vmatprep.subr.mxu0 0.0
    %2855 = vmatpush1.msra.mxu0 0.0
    %2856 = vmatprep.subr.mxu0 0.0
    %2857 = vmatpush1.msra.mxu0 0.0
    %2858 = vmatprep.subr.mxu0 0.0
    %2859 = vmatpush1.msra.mxu0 0.0
    %2860 = vmatprep.subr.mxu0 0.0
    %2861 = vmatpush1.msra.mxu0 0.0
    %2862 = vmatprep.subr.mxu0 0.0
    %2863 = vmatpush1.msra.mxu0 %v2827
    %2864 = vmatprep.subr.mxu0 0.0
    %2865 = vmatpush2.msra.mxu0 0.0
    %2866 = vmatprep.subr.mxu0 0.0
    %2867 = vmatpush2.msra.mxu0 0.0
    %2868 = vmatprep.subr.mxu0 0.0
    %2869 = vmatpush2.msra.mxu0 0.0
    %2870 = vmatprep.subr.mxu0 0.0
    %2871 = vmatpush2.msra.mxu0 0.0
    %2872 = vmatprep.subr.mxu0 0.0
    %2873 = vmatpush2.msra.mxu0 0.0
    %2874 = vmatprep.subr.mxu0 0.0
    %2875 = vmatpush2.msra.mxu0 0.0
    %2876 = vmatprep.subr.mxu0 0.0
    %2877 = vmatpush2.msra.mxu0 0.0
    %2878 = vmatprep.subr.mxu0 0.0
    %2879 = vmatpush2.msra.mxu0 0.0
    %2880 = vmatprep.subr.mxu0 0.0
    %2881 = vmatpush2.msra.mxu0 0.0
    %2882 = vmatprep.subr.mxu0 0.0
    %2883 = vmatpush2.msra.mxu0 0.0
    %2884 = vmatprep.subr.mxu0 0.0
    %2885 = vmatpush2.msra.mxu0 0.0
    %2886 = vmatprep.subr.mxu0 0.0
    %2887 = vmatpush2.msra.mxu0 0.0
    %2888 = vmatprep.subr.mxu0 0.0
    %2889 = vmatpush2.msra.mxu0 0.0
    %2890 = vmatprep.subr.mxu0 0.0
    %2891 = vmatpush2.msra.mxu0 0.0
    %2892 = vmatprep.subr.mxu0 0.0
    %2893 = vmatpush2.msra.mxu0 0.0
    %2894 = vmatprep.subr.mxu0 0.0
    %2895 = vmatpush2.msra.mxu0 0.0
    %2896 = vmatprep.mubr.f32.mxu0 0.0
    %2897 = vmatmul.mubr.f32.gmra.mxu0 %v2830
    %v2898 = vpop.f32.mrf.mxu0
    %v2899 = vadd.f32 0.0, %v2898
    %v2900 = vpop.f32.mrf.mxu0
    %2901 = vdwg.mxu0
    %2902 = vrot.lane.b32.xlu0 %v2647, 96
    %v2903 = vpop.permute.xlu0 %2902
    %v2906 = vsel %vm456, %v2825, 0
    %2908 = vmatprep.subr.mxu0 0.0
    %2909 = vmatpush1.msra.mxu0 0.0
    %2910 = vmatprep.subr.mxu0 0.0
    %2911 = vmatpush1.msra.mxu0 0.0
    %2912 = vmatprep.subr.mxu0 0.0
    %2913 = vmatpush1.msra.mxu0 0.0
    %2914 = vmatprep.subr.mxu0 0.0
    %2915 = vmatpush1.msra.mxu0 0.0
    %2916 = vmatprep.subr.mxu0 0.0
    %2917 = vmatpush1.msra.mxu0 0.0
    %2918 = vmatprep.subr.mxu0 0.0
    %2919 = vmatpush1.msra.mxu0 0.0
    %2920 = vmatprep.subr.mxu0 0.0
    %2921 = vmatpush1.msra.mxu0 0.0
    %2922 = vmatprep.subr.mxu0 0.0
    %2923 = vmatpush1.msra.mxu0 0.0
    %2924 = vmatprep.subr.mxu0 0.0
    %2925 = vmatpush1.msra.mxu0 0.0
    %2926 = vmatprep.subr.mxu0 0.0
    %2927 = vmatpush1.msra.mxu0 0.0
    %2928 = vmatprep.subr.mxu0 0.0
    %2929 = vmatpush1.msra.mxu0 0.0
    %2930 = vmatprep.subr.mxu0 0.0
    %2931 = vmatpush1.msra.mxu0 0.0
    %2932 = vmatprep.subr.mxu0 0.0
    %2933 = vmatpush1.msra.mxu0 0.0
    %2934 = vmatprep.subr.mxu0 0.0
    %2935 = vmatpush1.msra.mxu0 0.0
    %2936 = vmatprep.subr.mxu0 0.0
    %2937 = vmatpush1.msra.mxu0 0.0
    %2938 = vmatprep.subr.mxu0 0.0
    %2939 = vmatpush1.msra.mxu0 %v2903
    %2940 = vmatprep.subr.mxu0 0.0
    %2941 = vmatpush2.msra.mxu0 0.0
    %2942 = vmatprep.subr.mxu0 0.0
    %2943 = vmatpush2.msra.mxu0 0.0
    %2944 = vmatprep.subr.mxu0 0.0
    %2945 = vmatpush2.msra.mxu0 0.0
    %2946 = vmatprep.subr.mxu0 0.0
    %2947 = vmatpush2.msra.mxu0 0.0
    %2948 = vmatprep.subr.mxu0 0.0
    %2949 = vmatpush2.msra.mxu0 0.0
    %2950 = vmatprep.subr.mxu0 0.0
    %2951 = vmatpush2.msra.mxu0 0.0
    %2952 = vmatprep.subr.mxu0 0.0
    %2953 = vmatpush2.msra.mxu0 0.0
    %2954 = vmatprep.subr.mxu0 0.0
    %2955 = vmatpush2.msra.mxu0 0.0
    %2956 = vmatprep.subr.mxu0 0.0
    %2957 = vmatpush2.msra.mxu0 0.0
    %2958 = vmatprep.subr.mxu0 0.0
    %2959 = vmatpush2.msra.mxu0 0.0
    %2960 = vmatprep.subr.mxu0 0.0
    %2961 = vmatpush2.msra.mxu0 0.0
    %2962 = vmatprep.subr.mxu0 0.0
    %2963 = vmatpush2.msra.mxu0 0.0
    %2964 = vmatprep.subr.mxu0 0.0
    %2965 = vmatpush2.msra.mxu0 0.0
    %2966 = vmatprep.subr.mxu0 0.0
    %2967 = vmatpush2.msra.mxu0 0.0
    %2968 = vmatprep.subr.mxu0 0.0
    %2969 = vmatpush2.msra.mxu0 0.0
    %2970 = vmatprep.subr.mxu0 0.0
    %2971 = vmatpush2.msra.mxu0 0.0
    %2972 = vmatprep.mubr.f32.mxu0 0.0
    %2973 = vmatmul.mubr.f32.gmra.mxu0 %v2906
    %v2974 = vpop.f32.mrf.mxu0
    %v2975 = vadd.f32 0.0, %v2974
    %v2976 = vpop.f32.mrf.mxu0
    %2977 = vdwg.mxu0
    %2978 = vrot.lane.b32.xlu0 %v2650, 112
    %v2979 = vpop.permute.xlu0 %2978
    %2980 = vrot.lane.b32.xlu0 %v2642, 112
    %v2981 = vpop.permute.xlu0 %2980
    %v2982 = vsel %vm36, %v2979, 0
    %v2984 = vsel %vm36, %v2981, 0
    %2986 = vmatprep.subr.mxu0 0.0
    %2987 = vmatpush1.xpose.msra.mxu0 0.0
    %2988 = vmatprep.subr.mxu0 0.0
    %2989 = vmatpush1.xpose.msra.mxu0 0.0
    %2990 = vmatprep.subr.mxu0 0.0
    %2991 = vmatpush1.xpose.msra.mxu0 0.0
    %2992 = vmatprep.subr.mxu0 0.0
    %2993 = vmatpush1.xpose.msra.mxu0 0.0
    %2994 = vmatprep.subr.mxu0 0.0
    %2995 = vmatpush1.xpose.msra.mxu0 0.0
    %2996 = vmatprep.subr.mxu0 0.0
    %2997 = vmatpush1.xpose.msra.mxu0 0.0
    %2998 = vmatprep.subr.mxu0 0.0
    %2999 = vmatpush1.xpose.msra.mxu0 0.0
    %3000 = vmatprep.subr.mxu0 0.0
    %3001 = vmatpush1.xpose.msra.mxu0 0.0
    %3002 = vmatprep.subr.mxu0 0.0
    %3003 = vmatpush1.xpose.msra.mxu0 0.0
    %3004 = vmatprep.subr.mxu0 0.0
    %3005 = vmatpush1.xpose.msra.mxu0 0.0
    %3006 = vmatprep.subr.mxu0 0.0
    %3007 = vmatpush1.xpose.msra.mxu0 0.0
    %3008 = vmatprep.subr.mxu0 0.0
    %3009 = vmatpush1.xpose.msra.mxu0 0.0
    %3010 = vmatprep.subr.mxu0 0.0
    %3011 = vmatpush1.xpose.msra.mxu0 0.0
    %3012 = vmatprep.subr.mxu0 0.0
    %3013 = vmatpush1.xpose.msra.mxu0 0.0
    %3014 = vmatprep.subr.mxu0 0.0
    %3015 = vmatpush1.xpose.msra.mxu0 0.0
    %3016 = vmatprep.subr.mxu0 0.0
    %3017 = vmatpush1.xpose.msra.mxu0 %v2984
    %3018 = vmatprep.subr.mxu0 0.0
    %3019 = vmatpush2.xpose.msra.mxu0 0.0
    %3020 = vmatprep.subr.mxu0 0.0
    %3021 = vmatpush2.xpose.msra.mxu0 0.0
    %3022 = vmatprep.subr.mxu0 0.0
    %3023 = vmatpush2.xpose.msra.mxu0 0.0
    %3024 = vmatprep.subr.mxu0 0.0
    %3025 = vmatpush2.xpose.msra.mxu0 0.0
    %3026 = vmatprep.subr.mxu0 0.0
    %3027 = vmatpush2.xpose.msra.mxu0 0.0
    %3028 = vmatprep.subr.mxu0 0.0
    %3029 = vmatpush2.xpose.msra.mxu0 0.0
    %3030 = vmatprep.subr.mxu0 0.0
    %3031 = vmatpush2.xpose.msra.mxu0 0.0
    %3032 = vmatprep.subr.mxu0 0.0
    %3033 = vmatpush2.xpose.msra.mxu0 0.0
    %3034 = vmatprep.subr.mxu0 0.0
    %3035 = vmatpush2.xpose.msra.mxu0 0.0
    %3036 = vmatprep.subr.mxu0 0.0
    %3037 = vmatpush2.xpose.msra.mxu0 0.0
    %3038 = vmatprep.subr.mxu0 0.0
    %3039 = vmatpush2.xpose.msra.mxu0 0.0
    %3040 = vmatprep.subr.mxu0 0.0
    %3041 = vmatpush2.xpose.msra.mxu0 0.0
    %3042 = vmatprep.subr.mxu0 0.0
    %3043 = vmatpush2.xpose.msra.mxu0 0.0
    %3044 = vmatprep.subr.mxu0 0.0
    %3045 = vmatpush2.xpose.msra.mxu0 0.0
    %3046 = vmatprep.subr.mxu0 0.0
    %3047 = vmatpush2.xpose.msra.mxu0 0.0
    %3048 = vmatprep.subr.mxu0 0.0
    %3049 = vmatpush2.xpose.msra.mxu0 0.0
    %3050 = vmatprep.mubr.f32.mxu0 0.0
    %3051 = vmatmul.mubr.f32.gmra.mxu0 %v2982
    %v3052 = vpop.f32.mrf.mxu0
    %v3053 = vadd.f32 0.0, %v3052
    %v3054 = vpop.f32.mrf.mxu0
    %3055 = vdwg.mxu0
    %3056 = vrot.lane.b32.xlu0 %v2651, 112
    %v3057 = vpop.permute.xlu0 %3056
    %3058 = vrot.lane.b32.xlu0 %v2647, 112
    %v3059 = vpop.permute.xlu0 %3058
    %v3060 = vsel %vm36, %v3057, 0
    %v3062 = vsel %vm36, %v3059, 0
    %3064 = vmatprep.subr.mxu0 0.0
    %3065 = vmatpush1.xpose.msra.mxu0 0.0
    %3066 = vmatprep.subr.mxu0 0.0
    %3067 = vmatpush1.xpose.msra.mxu0 0.0
    %3068 = vmatprep.subr.mxu0 0.0
    %3069 = vmatpush1.xpose.msra.mxu0 0.0
    %3070 = vmatprep.subr.mxu0 0.0
    %3071 = vmatpush1.xpose.msra.mxu0 0.0
    %3072 = vmatprep.subr.mxu0 0.0
    %3073 = vmatpush1.xpose.msra.mxu0 0.0
    %3074 = vmatprep.subr.mxu0 0.0
    %3075 = vmatpush1.xpose.msra.mxu0 0.0
    %3076 = vmatprep.subr.mxu0 0.0
    %3077 = vmatpush1.xpose.msra.mxu0 0.0
    %3078 = vmatprep.subr.mxu0 0.0
    %3079 = vmatpush1.xpose.msra.mxu0 0.0
    %3080 = vmatprep.subr.mxu0 0.0
    %3081 = vmatpush1.xpose.msra.mxu0 0.0
    %3082 = vmatprep.subr.mxu0 0.0
    %3083 = vmatpush1.xpose.msra.mxu0 0.0
    %3084 = vmatprep.subr.mxu0 0.0
    %3085 = vmatpush1.xpose.msra.mxu0 0.0
    %3086 = vmatprep.subr.mxu0 0.0
    %3087 = vmatpush1.xpose.msra.mxu0 0.0
    %3088 = vmatprep.subr.mxu0 0.0
    %3089 = vmatpush1.xpose.msra.mxu0 0.0
    %3090 = vmatprep.subr.mxu0 0.0
    %3091 = vmatpush1.xpose.msra.mxu0 0.0
    %3092 = vmatprep.subr.mxu0 0.0
    %3093 = vmatpush1.xpose.msra.mxu0 0.0
    %3094 = vmatprep.subr.mxu0 0.0
    %3095 = vmatpush1.xpose.msra.mxu0 %v3062
    %3096 = vmatprep.subr.mxu0 0.0
    %3097 = vmatpush2.xpose.msra.mxu0 0.0
    %3098 = vmatprep.subr.mxu0 0.0
    %3099 = vmatpush2.xpose.msra.mxu0 0.0
    %3100 = vmatprep.subr.mxu0 0.0
    %3101 = vmatpush2.xpose.msra.mxu0 0.0
    %3102 = vmatprep.subr.mxu0 0.0
    %3103 = vmatpush2.xpose.msra.mxu0 0.0
    %3104 = vmatprep.subr.mxu0 0.0
    %3105 = vmatpush2.xpose.msra.mxu0 0.0
    %3106 = vmatprep.subr.mxu0 0.0
    %3107 = vmatpush2.xpose.msra.mxu0 0.0
    %3108 = vmatprep.subr.mxu0 0.0
    %3109 = vmatpush2.xpose.msra.mxu0 0.0
    %3110 = vmatprep.subr.mxu0 0.0
    %3111 = vmatpush2.xpose.msra.mxu0 0.0
    %3112 = vmatprep.subr.mxu0 0.0
    %3113 = vmatpush2.xpose.msra.mxu0 0.0
    %3114 = vmatprep.subr.mxu0 0.0
    %3115 = vmatpush2.xpose.msra.mxu0 0.0
    %3116 = vmatprep.subr.mxu0 0.0
    %3117 = vmatpush2.xpose.msra.mxu0 0.0
    %3118 = vmatprep.subr.mxu0 0.0
    %3119 = vmatpush2.xpose.msra.mxu0 0.0
    %3120 = vmatprep.subr.mxu0 0.0
    %3121 = vmatpush2.xpose.msra.mxu0 0.0
    %3122 = vmatprep.subr.mxu0 0.0
    %3123 = vmatpush2.xpose.msra.mxu0 0.0
    %3124 = vmatprep.subr.mxu0 0.0
    %3125 = vmatpush2.xpose.msra.mxu0 0.0
    %3126 = vmatprep.subr.mxu0 0.0
    %3127 = vmatpush2.xpose.msra.mxu0 0.0
    %3128 = vmatprep.mubr.f32.mxu0 0.0
    %3129 = vmatmul.mubr.f32.gmra.mxu0 %v3060
    %v3130 = vpop.f32.mrf.mxu0
    %v3131 = vadd.f32 0.0, %v3130
    %v3132 = vpop.f32.mrf.mxu0
    %3133 = vdwg.mxu0
    %v3134 = vsel %vm456, %v3053, -inf
    %3135 = vmax.xlane.f32.xlu0 %v3134
    %v3136 = vpop.xlane.xlu0 %3135
    %v3137 = vsel %vm456, %v3131, -inf
    %3138 = vmax.xlane.f32.xlu0 %v3137
    %v3139 = vpop.xlane.xlu0 %3138
    %v3140 = vsub.f32 %v3053, %v3136
    %v3141 = vsub.f32 %v3131, %v3139
    %v3142 = vmul.f32 %v3140, 1.442695
    %v3143 = vpow.pop %v3142
    %v3144 = vmul.f32 %v3141, 1.442695
    %v3145 = vpow.pop %v3144
    %v3146 = vsel %vm456, %v3143, 0.0
    %3147 = vadd.xlane.f32.xlu0 %v3146
    %v3148 = vpop.xlane.xlu0 %3147
    %v3149 = vsel %vm456, %v3145, 0.0
    %3150 = vadd.xlane.f32.xlu0 %v3149
    %v3151 = vpop.xlane.xlu0 %3150
    %v3152 = vrcp.pop %v3148
    %v3153 = vmul.f32 %v3143, %v3152
    %v3154 = vrcp.pop %v3151
    %v3155 = vmul.f32 %v3145, %v3154
    %3156 = vrot.lane.b32.xlu0 %v2642, 80
    %v3157 = vpop.permute.xlu0 %3156
    %v3160 = vsel %vm456, %v3153, 0
    %3162 = vmatprep.subr.mxu0 0.0
    %3163 = vmatpush1.msra.mxu0 0.0
    %3164 = vmatprep.subr.mxu0 0.0
    %3165 = vmatpush1.msra.mxu0 0.0
    %3166 = vmatprep.subr.mxu0 0.0
    %3167 = vmatpush1.msra.mxu0 0.0
    %3168 = vmatprep.subr.mxu0 0.0
    %3169 = vmatpush1.msra.mxu0 0.0
    %3170 = vmatprep.subr.mxu0 0.0
    %3171 = vmatpush1.msra.mxu0 0.0
    %3172 = vmatprep.subr.mxu0 0.0
    %3173 = vmatpush1.msra.mxu0 0.0
    %3174 = vmatprep.subr.mxu0 0.0
    %3175 = vmatpush1.msra.mxu0 0.0
    %3176 = vmatprep.subr.mxu0 0.0
    %3177 = vmatpush1.msra.mxu0 0.0
    %3178 = vmatprep.subr.mxu0 0.0
    %3179 = vmatpush1.msra.mxu0 0.0
    %3180 = vmatprep.subr.mxu0 0.0
    %3181 = vmatpush1.msra.mxu0 0.0
    %3182 = vmatprep.subr.mxu0 0.0
    %3183 = vmatpush1.msra.mxu0 0.0
    %3184 = vmatprep.subr.mxu0 0.0
    %3185 = vmatpush1.msra.mxu0 0.0
    %3186 = vmatprep.subr.mxu0 0.0
    %3187 = vmatpush1.msra.mxu0 0.0
    %3188 = vmatprep.subr.mxu0 0.0
    %3189 = vmatpush1.msra.mxu0 0.0
    %3190 = vmatprep.subr.mxu0 0.0
    %3191 = vmatpush1.msra.mxu0 0.0
    %3192 = vmatprep.subr.mxu0 0.0
    %3193 = vmatpush1.msra.mxu0 %v3157
    %3194 = vmatprep.subr.mxu0 0.0
    %3195 = vmatpush2.msra.mxu0 0.0
    %3196 = vmatprep.subr.mxu0 0.0
    %3197 = vmatpush2.msra.mxu0 0.0
    %3198 = vmatprep.subr.mxu0 0.0
    %3199 = vmatpush2.msra.mxu0 0.0
    %3200 = vmatprep.subr.mxu0 0.0
    %3201 = vmatpush2.msra.mxu0 0.0
    %3202 = vmatprep.subr.mxu0 0.0
    %3203 = vmatpush2.msra.mxu0 0.0
    %3204 = vmatprep.subr.mxu0 0.0
    %3205 = vmatpush2.msra.mxu0 0.0
    %3206 = vmatprep.subr.mxu0 0.0
    %3207 = vmatpush2.msra.mxu0 0.0
    %3208 = vmatprep.subr.mxu0 0.0
    %3209 = vmatpush2.msra.mxu0 0.0
    %3210 = vmatprep.subr.mxu0 0.0
    %3211 = vmatpush2.msra.mxu0 0.0
    %3212 = vmatprep.subr.mxu0 0.0
    %3213 = vmatpush2.msra.mxu0 0.0
    %3214 = vmatprep.subr.mxu0 0.0
    %3215 = vmatpush2.msra.mxu0 0.0
    %3216 = vmatprep.subr.mxu0 0.0
    %3217 = vmatpush2.msra.mxu0 0.0
    %3218 = vmatprep.subr.mxu0 0.0
    %3219 = vmatpush2.msra.mxu0 0.0
    %3220 = vmatprep.subr.mxu0 0.0
    %3221 = vmatpush2.msra.mxu0 0.0
    %3222 = vmatprep.subr.mxu0 0.0
    %3223 = vmatpush2.msra.mxu0 0.0
    %3224 = vmatprep.subr.mxu0 0.0
    %3225 = vmatpush2.msra.mxu0 0.0
    %3226 = vmatprep.mubr.f32.mxu0 0.0
    %3227 = vmatmul.mubr.f32.gmra.mxu0 %v3160
    %v3228 = vpop.f32.mrf.mxu0
    %v3229 = vadd.f32 0.0, %v3228
    %v3230 = vpop.f32.mrf.mxu0
    %3231 = vdwg.mxu0
    %3232 = vrot.lane.b32.xlu0 %v2647, 80
    %v3233 = vpop.permute.xlu0 %3232
    %v3236 = vsel %vm456, %v3155, 0
    %3238 = vmatprep.subr.mxu0 0.0
    %3239 = vmatpush1.msra.mxu0 0.0
    %3240 = vmatprep.subr.mxu0 0.0
    %3241 = vmatpush1.msra.mxu0 0.0
    %3242 = vmatprep.subr.mxu0 0.0
    %3243 = vmatpush1.msra.mxu0 0.0
    %3244 = vmatprep.subr.mxu0 0.0
    %3245 = vmatpush1.msra.mxu0 0.0
    %3246 = vmatprep.subr.mxu0 0.0
    %3247 = vmatpush1.msra.mxu0 0.0
    %3248 = vmatprep.subr.mxu0 0.0
    %3249 = vmatpush1.msra.mxu0 0.0
    %3250 = vmatprep.subr.mxu0 0.0
    %3251 = vmatpush1.msra.mxu0 0.0
    %3252 = vmatprep.subr.mxu0 0.0
    %3253 = vmatpush1.msra.mxu0 0.0
    %3254 = vmatprep.subr.mxu0 0.0
    %3255 = vmatpush1.msra.mxu0 0.0
    %3256 = vmatprep.subr.mxu0 0.0
    %3257 = vmatpush1.msra.mxu0 0.0
    %3258 = vmatprep.subr.mxu0 0.0
    %3259 = vmatpush1.msra.mxu0 0.0
    %3260 = vmatprep.subr.mxu0 0.0
    %3261 = vmatpush1.msra.mxu0 0.0
    %3262 = vmatprep.subr.mxu0 0.0
    %3263 = vmatpush1.msra.mxu0 0.0
    %3264 = vmatprep.subr.mxu0 0.0
    %3265 = vmatpush1.msra.mxu0 0.0
    %3266 = vmatprep.subr.mxu0 0.0
    %3267 = vmatpush1.msra.mxu0 0.0
    %3268 = vmatprep.subr.mxu0 0.0
    %3269 = vmatpush1.msra.mxu0 %v3233
    %3270 = vmatprep.subr.mxu0 0.0
    %3271 = vmatpush2.msra.mxu0 0.0
    %3272 = vmatprep.subr.mxu0 0.0
    %3273 = vmatpush2.msra.mxu0 0.0
    %3274 = vmatprep.subr.mxu0 0.0
    %3275 = vmatpush2.msra.mxu0 0.0
    %3276 = vmatprep.subr.mxu0 0.0
    %3277 = vmatpush2.msra.mxu0 0.0
    %3278 = vmatprep.subr.mxu0 0.0
    %3279 = vmatpush2.msra.mxu0 0.0
    %3280 = vmatprep.subr.mxu0 0.0
    %3281 = vmatpush2.msra.mxu0 0.0
    %3282 = vmatprep.subr.mxu0 0.0
    %3283 = vmatpush2.msra.mxu0 0.0
    %3284 = vmatprep.subr.mxu0 0.0
    %3285 = vmatpush2.msra.mxu0 0.0
    %3286 = vmatprep.subr.mxu0 0.0
    %3287 = vmatpush2.msra.mxu0 0.0
    %3288 = vmatprep.subr.mxu0 0.0
    %3289 = vmatpush2.msra.mxu0 0.0
    %3290 = vmatprep.subr.mxu0 0.0
    %3291 = vmatpush2.msra.mxu0 0.0
    %3292 = vmatprep.subr.mxu0 0.0
    %3293 = vmatpush2.msra.mxu0 0.0
    %3294 = vmatprep.subr.mxu0 0.0
    %3295 = vmatpush2.msra.mxu0 0.0
    %3296 = vmatprep.subr.mxu0 0.0
    %3297 = vmatpush2.msra.mxu0 0.0
    %3298 = vmatprep.subr.mxu0 0.0
    %3299 = vmatpush2.msra.mxu0 0.0
    %3300 = vmatprep.subr.mxu0 0.0
    %3301 = vmatpush2.msra.mxu0 0.0
    %3302 = vmatprep.mubr.f32.mxu0 0.0
    %3303 = vmatmul.mubr.f32.gmra.mxu0 %v3236
    %v3304 = vpop.f32.mrf.mxu0
    %v3305 = vadd.f32 0.0, %v3304
    %v3306 = vpop.f32.mrf.mxu0
    %3307 = vdwg.mxu0
    %v3309 = vsel %vm36, %v3229, 0
    %v3312 = vsel %vm36, %v3305, 0
    %3314 = vmatprep.subr.mxu0 0.0
    %3315 = vmatpush1.msra.mxu0 0.0
    %3316 = vmatprep.subr.mxu0 0.0
    %3317 = vmatpush1.msra.mxu0 0.0
    %3318 = vmatprep.subr.mxu0 0.0
    %3319 = vmatpush1.msra.mxu0 0.0
    %3320 = vmatprep.subr.mxu0 0.0
    %3321 = vmatpush1.msra.mxu0 0.0
    %3322 = vmatprep.subr.mxu0 0.0
    %3323 = vmatpush1.msra.mxu0 0.0
    %3324 = vmatprep.subr.mxu0 0.0
    %3325 = vmatpush1.msra.mxu0 0.0
    %3326 = vmatprep.subr.mxu0 0.0
    %3327 = vmatpush1.msra.mxu0 0.0
    %3328 = vmatprep.subr.mxu0 0.0
    %3329 = vmatpush1.msra.mxu0 0.0
    %3330 = vmatprep.subr.mxu0 0.0
    %3331 = vmatpush1.msra.mxu0 0.0
    %3332 = vmatprep.subr.mxu0 0.0
    %3333 = vmatpush1.msra.mxu0 0.0
    %3334 = vmatprep.subr.mxu0 0.0
    %3335 = vmatpush1.msra.mxu0 0.0
    %3336 = vmatprep.subr.mxu0 0.0
    %3337 = vmatpush1.msra.mxu0 0.0
    %3338 = vmatprep.subr.mxu0 0.0
    %3339 = vmatpush1.msra.mxu0 0.0
    %3340 = vmatprep.subr.mxu0 0.0
    %3341 = vmatpush1.msra.mxu0 0.0
    %3342 = vmatprep.subr.mxu0 0.0
    %3343 = vmatpush1.msra.mxu0 %v2478
    %3344 = vmatprep.subr.mxu0 0.0
    %3345 = vmatpush1.msra.mxu0 %v2477
    %3346 = vmatprep.subr.mxu0 0.0
    %3347 = vmatpush2.msra.mxu0 0.0
    %3348 = vmatprep.subr.mxu0 0.0
    %3349 = vmatpush2.msra.mxu0 0.0
    %3350 = vmatprep.subr.mxu0 0.0
    %3351 = vmatpush2.msra.mxu0 0.0
    %3352 = vmatprep.subr.mxu0 0.0
    %3353 = vmatpush2.msra.mxu0 0.0
    %3354 = vmatprep.subr.mxu0 0.0
    %3355 = vmatpush2.msra.mxu0 0.0
    %3356 = vmatprep.subr.mxu0 0.0
    %3357 = vmatpush2.msra.mxu0 0.0
    %3358 = vmatprep.subr.mxu0 0.0
    %3359 = vmatpush2.msra.mxu0 0.0
    %3360 = vmatprep.subr.mxu0 0.0
    %3361 = vmatpush2.msra.mxu0 0.0
    %3362 = vmatprep.subr.mxu0 0.0
    %3363 = vmatpush2.msra.mxu0 0.0
    %3364 = vmatprep.subr.mxu0 0.0
    %3365 = vmatpush2.msra.mxu0 0.0
    %3366 = vmatprep.subr.mxu0 0.0
    %3367 = vmatpush2.msra.mxu0 0.0
    %3368 = vmatprep.subr.mxu0 0.0
    %3369 = vmatpush2.msra.mxu0 0.0
    %3370 = vmatprep.subr.mxu0 0.0
    %3371 = vmatpush2.msra.mxu0 0.0
    %3372 = vmatprep.subr.mxu0 0.0
    %3373 = vmatpush2.msra.mxu0 0.0
    %3374 = vmatprep.subr.mxu0 0.0
    %3375 = vmatpush2.msra.mxu0 0.0
    %3376 = vmatprep.subr.mxu0 0.0
    %3377 = vmatpush2.msra.mxu0 0.0
    %3378 = vmatprep.mubr.f32.mxu0 0.0
    %3379 = vmatmul.mubr.f32.gmra.mxu0 %v3309
    %v3380 = vpop.f32.mrf.mxu0
    %v3381 = vadd.f32 0.0, %v3380
    %v3382 = vpop.f32.mrf.mxu0
    %3383 = vmatprep.mubr.f32.mxu0 0.0
    %3384 = vmatmul.mubr.f32.gmra.mxu0 %v3312
    %v3385 = vpop.f32.mrf.mxu0
    %v3386 = vadd.f32 0.0, %v3385
    %v3387 = vpop.f32.mrf.mxu0
    %3388 = vdwg.mxu0
    %v3390 = vsel %vm36, %v2899, 0
    %v3393 = vsel %vm36, %v2975, 0
    %3395 = vmatprep.subr.mxu0 0.0
    %3396 = vmatpush1.msra.mxu0 0.0
    %3397 = vmatprep.subr.mxu0 0.0
    %3398 = vmatpush1.msra.mxu0 0.0
    %3399 = vmatprep.subr.mxu0 0.0
    %3400 = vmatpush1.msra.mxu0 0.0
    %3401 = vmatprep.subr.mxu0 0.0
    %3402 = vmatpush1.msra.mxu0 0.0
    %3403 = vmatprep.subr.mxu0 0.0
    %3404 = vmatpush1.msra.mxu0 0.0
    %3405 = vmatprep.subr.mxu0 0.0
    %3406 = vmatpush1.msra.mxu0 0.0
    %3407 = vmatprep.subr.mxu0 0.0
    %3408 = vmatpush1.msra.mxu0 0.0
    %3409 = vmatprep.subr.mxu0 0.0
    %3410 = vmatpush1.msra.mxu0 0.0
    %3411 = vmatprep.subr.mxu0 0.0
    %3412 = vmatpush1.msra.mxu0 0.0
    %3413 = vmatprep.subr.mxu0 0.0
    %3414 = vmatpush1.msra.mxu0 0.0
    %3415 = vmatprep.subr.mxu0 0.0
    %3416 = vmatpush1.msra.mxu0 0.0
    %3417 = vmatprep.subr.mxu0 0.0
    %3418 = vmatpush1.msra.mxu0 0.0
    %3419 = vmatprep.subr.mxu0 0.0
    %3420 = vmatpush1.msra.mxu0 0.0
    %3421 = vmatprep.subr.mxu0 0.0
    %3422 = vmatpush1.msra.mxu0 0.0
    %3423 = vmatprep.subr.mxu0 0.0
    %3424 = vmatpush1.msra.mxu0 %v2476
    %3425 = vmatprep.subr.mxu0 0.0
    %3426 = vmatpush1.msra.mxu0 %v2475
    %3427 = vmatprep.subr.mxu0 0.0
    %3428 = vmatpush2.msra.mxu0 0.0
    %3429 = vmatprep.subr.mxu0 0.0
    %3430 = vmatpush2.msra.mxu0 0.0
    %3431 = vmatprep.subr.mxu0 0.0
    %3432 = vmatpush2.msra.mxu0 0.0
    %3433 = vmatprep.subr.mxu0 0.0
    %3434 = vmatpush2.msra.mxu0 0.0
    %3435 = vmatprep.subr.mxu0 0.0
    %3436 = vmatpush2.msra.mxu0 0.0
    %3437 = vmatprep.subr.mxu0 0.0
    %3438 = vmatpush2.msra.mxu0 0.0
    %3439 = vmatprep.subr.mxu0 0.0
    %3440 = vmatpush2.msra.mxu0 0.0
    %3441 = vmatprep.subr.mxu0 0.0
    %3442 = vmatpush2.msra.mxu0 0.0
    %3443 = vmatprep.subr.mxu0 0.0
    %3444 = vmatpush2.msra.mxu0 0.0
    %3445 = vmatprep.subr.mxu0 0.0
    %3446 = vmatpush2.msra.mxu0 0.0
    %3447 = vmatprep.subr.mxu0 0.0
    %3448 = vmatpush2.msra.mxu0 0.0
    %3449 = vmatprep.subr.mxu0 0.0
    %3450 = vmatpush2.msra.mxu0 0.0
    %3451 = vmatprep.subr.mxu0 0.0
    %3452 = vmatpush2.msra.mxu0 0.0
    %3453 = vmatprep.subr.mxu0 0.0
    %3454 = vmatpush2.msra.mxu0 0.0
    %3455 = vmatprep.subr.mxu0 0.0
    %3456 = vmatpush2.msra.mxu0 0.0
    %3457 = vmatprep.subr.mxu0 0.0
    %3458 = vmatpush2.msra.mxu0 0.0
    %3459 = vmatprep.mubr.f32.mxu0 0.0
    %3460 = vmatmul.mubr.f32.gmra.mxu0 %v3390
    %v3461 = vpop.f32.mrf.mxu0
    %v3462 = vadd.f32 %v3381, %v3461
    %v3463 = vpop.f32.mrf.mxu0
    %3464 = vmatprep.mubr.f32.mxu0 0.0
    %3465 = vmatmul.mubr.f32.gmra.mxu0 %v3393
    %v3466 = vpop.f32.mrf.mxu0
    %v3467 = vadd.f32 %v3386, %v3466
    %v3468 = vpop.f32.mrf.mxu0
    %3469 = vdwg.mxu0
    %v3470 = vlaneseq
    %v3471 = vshrl.u32 %v3470, 7
    %v3472 = vsub.s32 0, %v3471
    %v3473 = vrot.slane %v2479, %v3472
    %v3474 = vadd.f32 %v3462, %v3473
    %v3475 = vadd.f32 %v3467, %v3473
    %v3476 = vld [vmem:[%s1 + $0x1c0] sm:$0xff]
    %v3477 = vld [vmem:[%s1 + $0x1c8] sm:$0xff]
    %v3478 = vld [vmem:[%s1 + $0x1d0] sm:$0xff]
    %v3479 = vld [vmem:[%s1 + $0x1d8] sm:$0xff]
    %v3480 = vld [vmem:[%s1 + $0x1e0] sm:$0x1]
    %v3481 = vld [vmem:[%s2 + $0x78] sm:$0xff]
    %v3482 = vld [vmem:[%s2 + $0x80] sm:$0xff]
    %v3483 = vld [vmem:[%s2 + $0x88] sm:$0xff]
    %v3484 = vld [vmem:[%s2 + $0x90] sm:$0xff]
    %v3485 = vld [vmem:[%s2 + $0x98] sm:$0x1]
    %v3486 = vld [vmem:[%s1 + $0x1e8] sm:$0xff]
    %v3487 = vld [vmem:[%s1 + $0x1f0] sm:$0xff]
    %v3488 = vld [vmem:[%s1 + $0x1f8] sm:$0xff]
    %v3489 = vld [vmem:[%s1 + $0x200] sm:$0xff]
    %v3490 = vld [vmem:[%s1 + $0x208] sm:$0x1]
    %v3491 = vlaneseq
    %v3492 = vshrl.u32 %v3491, 7
    %v3493 = vsub.s32 0, %v3492
    %v3494 = vrot.slane %v3480, %v3493
    %3495 = vmatprep.subr.mxu0 0.0
    %3496 = vmatpush1.msra.mxu0 0.0
    %3497 = vmatprep.subr.mxu0 0.0
    %3498 = vmatpush1.msra.mxu0 0.0
    %3499 = vmatprep.subr.mxu0 0.0
    %3500 = vmatpush1.msra.mxu0 0.0
    %3501 = vmatprep.subr.mxu0 0.0
    %3502 = vmatpush1.msra.mxu0 0.0
    %3503 = vmatprep.subr.mxu0 0.0
    %3504 = vmatpush1.msra.mxu0 0.0
    %3505 = vmatprep.subr.mxu0 0.0
    %3506 = vmatpush1.msra.mxu0 0.0
    %3507 = vmatprep.subr.mxu0 0.0
    %3508 = vmatpush1.msra.mxu0 0.0
    %3509 = vmatprep.subr.mxu0 0.0
    %3510 = vmatpush1.msra.mxu0 0.0
    %3511 = vmatprep.subr.mxu0 0.0
    %3512 = vmatpush1.msra.mxu0 0.0
    %3513 = vmatprep.subr.mxu0 0.0
    %3514 = vmatpush1.msra.mxu0 0.0
    %3515 = vmatprep.subr.mxu0 0.0
    %3516 = vmatpush1.msra.mxu0 0.0
    %3517 = vmatprep.subr.mxu0 0.0
    %3518 = vmatpush1.msra.mxu0 0.0
    %3519 = vmatprep.subr.mxu0 0.0
    %3520 = vmatpush1.msra.mxu0 %v3479
    %3521 = vmatprep.subr.mxu0 0.0
    %3522 = vmatpush1.msra.mxu0 %v3478
    %3523 = vmatprep.subr.mxu0 0.0
    %3524 = vmatpush1.msra.mxu0 %v3477
    %3525 = vmatprep.subr.mxu0 0.0
    %3526 = vmatpush1.msra.mxu0 %v3476
    %3527 = vmatprep.subr.mxu0 0.0
    %3528 = vmatpush2.msra.mxu0 0.0
    %3529 = vmatprep.subr.mxu0 0.0
    %3530 = vmatpush2.msra.mxu0 0.0
    %3531 = vmatprep.subr.mxu0 0.0
    %3532 = vmatpush2.msra.mxu0 0.0
    %3533 = vmatprep.subr.mxu0 0.0
    %3534 = vmatpush2.msra.mxu0 0.0
    %3535 = vmatprep.subr.mxu0 0.0
    %3536 = vmatpush2.msra.mxu0 0.0
    %3537 = vmatprep.subr.mxu0 0.0
    %3538 = vmatpush2.msra.mxu0 0.0
    %3539 = vmatprep.subr.mxu0 0.0
    %3540 = vmatpush2.msra.mxu0 0.0
    %3541 = vmatprep.subr.mxu0 0.0
    %3542 = vmatpush2.msra.mxu0 0.0
    %3543 = vmatprep.subr.mxu0 0.0
    %3544 = vmatpush2.msra.mxu0 0.0
    %3545 = vmatprep.subr.mxu0 0.0
    %3546 = vmatpush2.msra.mxu0 0.0
    %3547 = vmatprep.subr.mxu0 0.0
    %3548 = vmatpush2.msra.mxu0 0.0
    %3549 = vmatprep.subr.mxu0 0.0
    %3550 = vmatpush2.msra.mxu0 0.0
    %3551 = vmatprep.subr.mxu0 0.0
    %3552 = vmatpush2.msra.mxu0 0.0
    %3553 = vmatprep.subr.mxu0 0.0
    %3554 = vmatpush2.msra.mxu0 0.0
    %3555 = vmatprep.subr.mxu0 0.0
    %3556 = vmatpush2.msra.mxu0 0.0
    %3557 = vmatprep.subr.mxu0 0.0
    %3558 = vmatpush2.msra.mxu0 0.0
    %3559 = vmatprep.mubr.f32.mxu0 0.0
    %3560 = vmatmul.mubr.f32.gmra.mxu0 %v2570
    %v3561 = vpop.f32.mrf.mxu0
    %v3562 = vadd.f32 %v3494, %v3561
    %v3563 = vpop.f32.mrf.mxu0
    %3564 = vmatprep.mubr.f32.mxu0 0.0
    %3565 = vmatmul.mubr.f32.gmra.mxu0 %v2573
    %v3566 = vpop.f32.mrf.mxu0
    %v3567 = vadd.f32 %v3494, %v3566
    %v3568 = vpop.f32.mrf.mxu0
    %3569 = vdwg.mxu0
    %v3570 = vlaneseq
    %v3571 = vshrl.u32 %v3570, 7
    %v3572 = vsub.s32 0, %v3571
    %v3573 = vrot.slane %v3485, %v3572
    %v3575 = vsel %vm138, %v3474, 0
    %v3578 = vsel %vm138, %v3475, 0
    %3580 = vmatprep.subr.mxu0 0.0
    %3581 = vmatpush1.msra.mxu0 0.0
    %3582 = vmatprep.subr.mxu0 0.0
    %3583 = vmatpush1.msra.mxu0 0.0
    %3584 = vmatprep.subr.mxu0 0.0
    %3585 = vmatpush1.msra.mxu0 0.0
    %3586 = vmatprep.subr.mxu0 0.0
    %3587 = vmatpush1.msra.mxu0 0.0
    %3588 = vmatprep.subr.mxu0 0.0
    %3589 = vmatpush1.msra.mxu0 0.0
    %3590 = vmatprep.subr.mxu0 0.0
    %3591 = vmatpush1.msra.mxu0 0.0
    %3592 = vmatprep.subr.mxu0 0.0
    %3593 = vmatpush1.msra.mxu0 0.0
    %3594 = vmatprep.subr.mxu0 0.0
    %3595 = vmatpush1.msra.mxu0 0.0
    %3596 = vmatprep.subr.mxu0 0.0
    %3597 = vmatpush1.msra.mxu0 0.0
    %3598 = vmatprep.subr.mxu0 0.0
    %3599 = vmatpush1.msra.mxu0 0.0
    %3600 = vmatprep.subr.mxu0 0.0
    %3601 = vmatpush1.msra.mxu0 0.0
    %3602 = vmatprep.subr.mxu0 0.0
    %3603 = vmatpush1.msra.mxu0 0.0
    %3604 = vmatprep.subr.mxu0 0.0
    %3605 = vmatpush1.msra.mxu0 %v3484
    %3606 = vmatprep.subr.mxu0 0.0
    %3607 = vmatpush1.msra.mxu0 %v3483
    %3608 = vmatprep.subr.mxu0 0.0
    %3609 = vmatpush1.msra.mxu0 %v3482
    %3610 = vmatprep.subr.mxu0 0.0
    %3611 = vmatpush1.msra.mxu0 %v3481
    %3612 = vmatprep.subr.mxu0 0.0
    %3613 = vmatpush2.msra.mxu0 0.0
    %3614 = vmatprep.subr.mxu0 0.0
    %3615 = vmatpush2.msra.mxu0 0.0
    %3616 = vmatprep.subr.mxu0 0.0
    %3617 = vmatpush2.msra.mxu0 0.0
    %3618 = vmatprep.subr.mxu0 0.0
    %3619 = vmatpush2.msra.mxu0 0.0
    %3620 = vmatprep.subr.mxu0 0.0
    %3621 = vmatpush2.msra.mxu0 0.0
    %3622 = vmatprep.subr.mxu0 0.0
    %3623 = vmatpush2.msra.mxu0 0.0
    %3624 = vmatprep.subr.mxu0 0.0
    %3625 = vmatpush2.msra.mxu0 0.0
    %3626 = vmatprep.subr.mxu0 0.0
    %3627 = vmatpush2.msra.mxu0 0.0
    %3628 = vmatprep.subr.mxu0 0.0
    %3629 = vmatpush2.msra.mxu0 0.0
    %3630 = vmatprep.subr.mxu0 0.0
    %3631 = vmatpush2.msra.mxu0 0.0
    %3632 = vmatprep.subr.mxu0 0.0
    %3633 = vmatpush2.msra.mxu0 0.0
    %3634 = vmatprep.subr.mxu0 0.0
    %3635 = vmatpush2.msra.mxu0 0.0
    %3636 = vmatprep.subr.mxu0 0.0
    %3637 = vmatpush2.msra.mxu0 0.0
    %3638 = vmatprep.subr.mxu0 0.0
    %3639 = vmatpush2.msra.mxu0 0.0
    %3640 = vmatprep.subr.mxu0 0.0
    %3641 = vmatpush2.msra.mxu0 0.0
    %3642 = vmatprep.subr.mxu0 0.0
    %3643 = vmatpush2.msra.mxu0 0.0
    %3644 = vmatprep.mubr.f32.mxu0 0.0
    %3645 = vmatmul.mubr.f32.gmra.mxu0 %v3575
    %v3646 = vpop.f32.mrf.mxu0
    %v3647 = vadd.f32 %v3573, %v3646
    %v3648 = vpop.f32.mrf.mxu0
    %3649 = vmatprep.mubr.f32.mxu0 0.0
    %3650 = vmatmul.mubr.f32.gmra.mxu0 %v3578
    %v3651 = vpop.f32.mrf.mxu0
    %v3652 = vadd.f32 %v3573, %v3651
    %v3653 = vpop.f32.mrf.mxu0
    %3654 = vdwg.mxu0
    %v3655 = vmul.f32 %v3562, 0.25
    %v3656 = vmul.f32 %v3567, 0.25
    %v3658 = vsel %vm36, %v3655, 0
    %v3661 = vsel %vm36, %v3647, 0
    %3663 = vmatprep.subr.mxu0 0.0
    %3664 = vmatpush1.xpose.msra.mxu0 0.0
    %3665 = vmatprep.subr.mxu0 0.0
    %3666 = vmatpush1.xpose.msra.mxu0 0.0
    %3667 = vmatprep.subr.mxu0 0.0
    %3668 = vmatpush1.xpose.msra.mxu0 0.0
    %3669 = vmatprep.subr.mxu0 0.0
    %3670 = vmatpush1.xpose.msra.mxu0 0.0
    %3671 = vmatprep.subr.mxu0 0.0
    %3672 = vmatpush1.xpose.msra.mxu0 0.0
    %3673 = vmatprep.subr.mxu0 0.0
    %3674 = vmatpush1.xpose.msra.mxu0 0.0
    %3675 = vmatprep.subr.mxu0 0.0
    %3676 = vmatpush1.xpose.msra.mxu0 0.0
    %3677 = vmatprep.subr.mxu0 0.0
    %3678 = vmatpush1.xpose.msra.mxu0 0.0
    %3679 = vmatprep.subr.mxu0 0.0
    %3680 = vmatpush1.xpose.msra.mxu0 0.0
    %3681 = vmatprep.subr.mxu0 0.0
    %3682 = vmatpush1.xpose.msra.mxu0 0.0
    %3683 = vmatprep.subr.mxu0 0.0
    %3684 = vmatpush1.xpose.msra.mxu0 0.0
    %3685 = vmatprep.subr.mxu0 0.0
    %3686 = vmatpush1.xpose.msra.mxu0 0.0
    %3687 = vmatprep.subr.mxu0 0.0
    %3688 = vmatpush1.xpose.msra.mxu0 0.0
    %3689 = vmatprep.subr.mxu0 0.0
    %3690 = vmatpush1.xpose.msra.mxu0 0.0
    %3691 = vmatprep.subr.mxu0 0.0
    %3692 = vmatpush1.xpose.msra.mxu0 0.0
    %3693 = vmatprep.subr.mxu0 0.0
    %3694 = vmatpush1.xpose.msra.mxu0 %v3661
    %3695 = vmatprep.subr.mxu0 0.0
    %3696 = vmatpush2.xpose.msra.mxu0 0.0
    %3697 = vmatprep.subr.mxu0 0.0
    %3698 = vmatpush2.xpose.msra.mxu0 0.0
    %3699 = vmatprep.subr.mxu0 0.0
    %3700 = vmatpush2.xpose.msra.mxu0 0.0
    %3701 = vmatprep.subr.mxu0 0.0
    %3702 = vmatpush2.xpose.msra.mxu0 0.0
    %3703 = vmatprep.subr.mxu0 0.0
    %3704 = vmatpush2.xpose.msra.mxu0 0.0
    %3705 = vmatprep.subr.mxu0 0.0
    %3706 = vmatpush2.xpose.msra.mxu0 0.0
    %3707 = vmatprep.subr.mxu0 0.0
    %3708 = vmatpush2.xpose.msra.mxu0 0.0
    %3709 = vmatprep.subr.mxu0 0.0
    %3710 = vmatpush2.xpose.msra.mxu0 0.0
    %3711 = vmatprep.subr.mxu0 0.0
    %3712 = vmatpush2.xpose.msra.mxu0 0.0
    %3713 = vmatprep.subr.mxu0 0.0
    %3714 = vmatpush2.xpose.msra.mxu0 0.0
    %3715 = vmatprep.subr.mxu0 0.0
    %3716 = vmatpush2.xpose.msra.mxu0 0.0
    %3717 = vmatprep.subr.mxu0 0.0
    %3718 = vmatpush2.xpose.msra.mxu0 0.0
    %3719 = vmatprep.subr.mxu0 0.0
    %3720 = vmatpush2.xpose.msra.mxu0 0.0
    %3721 = vmatprep.subr.mxu0 0.0
    %3722 = vmatpush2.xpose.msra.mxu0 0.0
    %3723 = vmatprep.subr.mxu0 0.0
    %3724 = vmatpush2.xpose.msra.mxu0 0.0
    %3725 = vmatprep.subr.mxu0 0.0
    %3726 = vmatpush2.xpose.msra.mxu0 0.0
    %3727 = vmatprep.mubr.f32.mxu0 0.0
    %3728 = vmatmul.mubr.f32.gmra.mxu0 %v3658
    %v3729 = vpop.f32.mrf.mxu0
    %v3730 = vadd.f32 0.0, %v3729
    %v3731 = vpop.f32.mrf.mxu0
    %3732 = vdwg.mxu0
    %v3734 = vsel %vm36, %v3656, 0
    %v3737 = vsel %vm36, %v3652, 0
    %3739 = vmatprep.subr.mxu0 0.0
    %3740 = vmatpush1.xpose.msra.mxu0 0.0
    %3741 = vmatprep.subr.mxu0 0.0
    %3742 = vmatpush1.xpose.msra.mxu0 0.0
    %3743 = vmatprep.subr.mxu0 0.0
    %3744 = vmatpush1.xpose.msra.mxu0 0.0
    %3745 = vmatprep.subr.mxu0 0.0
    %3746 = vmatpush1.xpose.msra.mxu0 0.0
    %3747 = vmatprep.subr.mxu0 0.0
    %3748 = vmatpush1.xpose.msra.mxu0 0.0
    %3749 = vmatprep.subr.mxu0 0.0
    %3750 = vmatpush1.xpose.msra.mxu0 0.0
    %3751 = vmatprep.subr.mxu0 0.0
    %3752 = vmatpush1.xpose.msra.mxu0 0.0
    %3753 = vmatprep.subr.mxu0 0.0
    %3754 = vmatpush1.xpose.msra.mxu0 0.0
    %3755 = vmatprep.subr.mxu0 0.0
    %3756 = vmatpush1.xpose.msra.mxu0 0.0
    %3757 = vmatprep.subr.mxu0 0.0
    %3758 = vmatpush1.xpose.msra.mxu0 0.0
    %3759 = vmatprep.subr.mxu0 0.0
    %3760 = vmatpush1.xpose.msra.mxu0 0.0
    %3761 = vmatprep.subr.mxu0 0.0
    %3762 = vmatpush1.xpose.msra.mxu0 0.0
    %3763 = vmatprep.subr.mxu0 0.0
    %3764 = vmatpush1.xpose.msra.mxu0 0.0
    %3765 = vmatprep.subr.mxu0 0.0
    %3766 = vmatpush1.xpose.msra.mxu0 0.0
    %3767 = vmatprep.subr.mxu0 0.0
    %3768 = vmatpush1.xpose.msra.mxu0 0.0
    %3769 = vmatprep.subr.mxu0 0.0
    %3770 = vmatpush1.xpose.msra.mxu0 %v3737
    %3771 = vmatprep.subr.mxu0 0.0
    %3772 = vmatpush2.xpose.msra.mxu0 0.0
    %3773 = vmatprep.subr.mxu0 0.0
    %3774 = vmatpush2.xpose.msra.mxu0 0.0
    %3775 = vmatprep.subr.mxu0 0.0
    %3776 = vmatpush2.xpose.msra.mxu0 0.0
    %3777 = vmatprep.subr.mxu0 0.0
    %3778 = vmatpush2.xpose.msra.mxu0 0.0
    %3779 = vmatprep.subr.mxu0 0.0
    %3780 = vmatpush2.xpose.msra.mxu0 0.0
    %3781 = vmatprep.subr.mxu0 0.0
    %3782 = vmatpush2.xpose.msra.mxu0 0.0
    %3783 = vmatprep.subr.mxu0 0.0
    %3784 = vmatpush2.xpose.msra.mxu0 0.0
    %3785 = vmatprep.subr.mxu0 0.0
    %3786 = vmatpush2.xpose.msra.mxu0 0.0
    %3787 = vmatprep.subr.mxu0 0.0
    %3788 = vmatpush2.xpose.msra.mxu0 0.0
    %3789 = vmatprep.subr.mxu0 0.0
    %3790 = vmatpush2.xpose.msra.mxu0 0.0
    %3791 = vmatprep.subr.mxu0 0.0
    %3792 = vmatpush2.xpose.msra.mxu0 0.0
    %3793 = vmatprep.subr.mxu0 0.0
    %3794 = vmatpush2.xpose.msra.mxu0 0.0
    %3795 = vmatprep.subr.mxu0 0.0
    %3796 = vmatpush2.xpose.msra.mxu0 0.0
    %3797 = vmatprep.subr.mxu0 0.0
    %3798 = vmatpush2.xpose.msra.mxu0 0.0
    %3799 = vmatprep.subr.mxu0 0.0
    %3800 = vmatpush2.xpose.msra.mxu0 0.0
    %3801 = vmatprep.subr.mxu0 0.0
    %3802 = vmatpush2.xpose.msra.mxu0 0.0
    %3803 = vmatprep.mubr.f32.mxu0 0.0
    %3804 = vmatmul.mubr.f32.gmra.mxu0 %v3734
    %v3805 = vpop.f32.mrf.mxu0
    %v3806 = vadd.f32 0.0, %v3805
    %v3807 = vpop.f32.mrf.mxu0
    %3808 = vdwg.mxu0
    %v3809 = vsel %vm456, %v3730, -inf
    %3810 = vmax.xlane.f32.xlu0 %v3809
    %v3811 = vpop.xlane.xlu0 %3810
    %v3812 = vsel %vm456, %v3806, -inf
    %3813 = vmax.xlane.f32.xlu0 %v3812
    %v3814 = vpop.xlane.xlu0 %3813
    %v3815 = vsub.f32 %v3730, %v3811
    %v3816 = vsub.f32 %v3806, %v3814
    %v3817 = vmul.f32 %v3815, 1.442695
    %v3818 = vpow.pop %v3817
    %v3819 = vmul.f32 %v3816, 1.442695
    %v3820 = vpow.pop %v3819
    %v3821 = vsel %vm456, %v3818, 0.0
    %3822 = vadd.xlane.f32.xlu0 %v3821
    %v3823 = vpop.xlane.xlu0 %3822
    %v3824 = vsel %vm456, %v3820, 0.0
    %3825 = vadd.xlane.f32.xlu0 %v3824
    %v3826 = vpop.xlane.xlu0 %3825
    %v3827 = vrcp.pop %v3823
    %v3828 = vmul.f32 %v3818, %v3827
    %v3829 = vrcp.pop %v3826
    %v3830 = vmul.f32 %v3820, %v3829
    %3831 = vrot.lane.b32.xlu0 %v3647, 96
    %v3832 = vpop.permute.xlu0 %3831
    %v3835 = vsel %vm456, %v3828, 0
    %3837 = vmatprep.subr.mxu0 0.0
    %3838 = vmatpush1.msra.mxu0 0.0
    %3839 = vmatprep.subr.mxu0 0.0
    %3840 = vmatpush1.msra.mxu0 0.0
    %3841 = vmatprep.subr.mxu0 0.0
    %3842 = vmatpush1.msra.mxu0 0.0
    %3843 = vmatprep.subr.mxu0 0.0
    %3844 = vmatpush1.msra.mxu0 0.0
    %3845 = vmatprep.subr.mxu0 0.0
    %3846 = vmatpush1.msra.mxu0 0.0
    %3847 = vmatprep.subr.mxu0 0.0
    %3848 = vmatpush1.msra.mxu0 0.0
    %3849 = vmatprep.subr.mxu0 0.0
    %3850 = vmatpush1.msra.mxu0 0.0
    %3851 = vmatprep.subr.mxu0 0.0
    %3852 = vmatpush1.msra.mxu0 0.0
    %3853 = vmatprep.subr.mxu0 0.0
    %3854 = vmatpush1.msra.mxu0 0.0
    %3855 = vmatprep.subr.mxu0 0.0
    %3856 = vmatpush1.msra.mxu0 0.0
    %3857 = vmatprep.subr.mxu0 0.0
    %3858 = vmatpush1.msra.mxu0 0.0
    %3859 = vmatprep.subr.mxu0 0.0
    %3860 = vmatpush1.msra.mxu0 0.0
    %3861 = vmatprep.subr.mxu0 0.0
    %3862 = vmatpush1.msra.mxu0 0.0
    %3863 = vmatprep.subr.mxu0 0.0
    %3864 = vmatpush1.msra.mxu0 0.0
    %3865 = vmatprep.subr.mxu0 0.0
    %3866 = vmatpush1.msra.mxu0 0.0
    %3867 = vmatprep.subr.mxu0 0.0
    %3868 = vmatpush1.msra.mxu0 %v3832
    %3869 = vmatprep.subr.mxu0 0.0
    %3870 = vmatpush2.msra.mxu0 0.0
    %3871 = vmatprep.subr.mxu0 0.0
    %3872 = vmatpush2.msra.mxu0 0.0
    %3873 = vmatprep.subr.mxu0 0.0
    %3874 = vmatpush2.msra.mxu0 0.0
    %3875 = vmatprep.subr.mxu0 0.0
    %3876 = vmatpush2.msra.mxu0 0.0
    %3877 = vmatprep.subr.mxu0 0.0
    %3878 = vmatpush2.msra.mxu0 0.0
    %3879 = vmatprep.subr.mxu0 0.0
    %3880 = vmatpush2.msra.mxu0 0.0
    %3881 = vmatprep.subr.mxu0 0.0
    %3882 = vmatpush2.msra.mxu0 0.0
    %3883 = vmatprep.subr.mxu0 0.0
    %3884 = vmatpush2.msra.mxu0 0.0
    %3885 = vmatprep.subr.mxu0 0.0
    %3886 = vmatpush2.msra.mxu0 0.0
    %3887 = vmatprep.subr.mxu0 0.0
    %3888 = vmatpush2.msra.mxu0 0.0
    %3889 = vmatprep.subr.mxu0 0.0
    %3890 = vmatpush2.msra.mxu0 0.0
    %3891 = vmatprep.subr.mxu0 0.0
    %3892 = vmatpush2.msra.mxu0 0.0
    %3893 = vmatprep.subr.mxu0 0.0
    %3894 = vmatpush2.msra.mxu0 0.0
    %3895 = vmatprep.subr.mxu0 0.0
    %3896 = vmatpush2.msra.mxu0 0.0
    %3897 = vmatprep.subr.mxu0 0.0
    %3898 = vmatpush2.msra.mxu0 0.0
    %3899 = vmatprep.subr.mxu0 0.0
    %3900 = vmatpush2.msra.mxu0 0.0
    %3901 = vmatprep.mubr.f32.mxu0 0.0
    %3902 = vmatmul.mubr.f32.gmra.mxu0 %v3835
    %v3903 = vpop.f32.mrf.mxu0
    %v3904 = vadd.f32 0.0, %v3903
    %v3905 = vpop.f32.mrf.mxu0
    %3906 = vdwg.mxu0
    %3907 = vrot.lane.b32.xlu0 %v3652, 96
    %v3908 = vpop.permute.xlu0 %3907
    %v3911 = vsel %vm456, %v3830, 0
    %3913 = vmatprep.subr.mxu0 0.0
    %3914 = vmatpush1.msra.mxu0 0.0
    %3915 = vmatprep.subr.mxu0 0.0
    %3916 = vmatpush1.msra.mxu0 0.0
    %3917 = vmatprep.subr.mxu0 0.0
    %3918 = vmatpush1.msra.mxu0 0.0
    %3919 = vmatprep.subr.mxu0 0.0
    %3920 = vmatpush1.msra.mxu0 0.0
    %3921 = vmatprep.subr.mxu0 0.0
    %3922 = vmatpush1.msra.mxu0 0.0
    %3923 = vmatprep.subr.mxu0 0.0
    %3924 = vmatpush1.msra.mxu0 0.0
    %3925 = vmatprep.subr.mxu0 0.0
    %3926 = vmatpush1.msra.mxu0 0.0
    %3927 = vmatprep.subr.mxu0 0.0
    %3928 = vmatpush1.msra.mxu0 0.0
    %3929 = vmatprep.subr.mxu0 0.0
    %3930 = vmatpush1.msra.mxu0 0.0
    %3931 = vmatprep.subr.mxu0 0.0
    %3932 = vmatpush1.msra.mxu0 0.0
    %3933 = vmatprep.subr.mxu0 0.0
    %3934 = vmatpush1.msra.mxu0 0.0
    %3935 = vmatprep.subr.mxu0 0.0
    %3936 = vmatpush1.msra.mxu0 0.0
    %3937 = vmatprep.subr.mxu0 0.0
    %3938 = vmatpush1.msra.mxu0 0.0
    %3939 = vmatprep.subr.mxu0 0.0
    %3940 = vmatpush1.msra.mxu0 0.0
    %3941 = vmatprep.subr.mxu0 0.0
    %3942 = vmatpush1.msra.mxu0 0.0
    %3943 = vmatprep.subr.mxu0 0.0
    %3944 = vmatpush1.msra.mxu0 %v3908
    %3945 = vmatprep.subr.mxu0 0.0
    %3946 = vmatpush2.msra.mxu0 0.0
    %3947 = vmatprep.subr.mxu0 0.0
    %3948 = vmatpush2.msra.mxu0 0.0
    %3949 = vmatprep.subr.mxu0 0.0
    %3950 = vmatpush2.msra.mxu0 0.0
    %3951 = vmatprep.subr.mxu0 0.0
    %3952 = vmatpush2.msra.mxu0 0.0
    %3953 = vmatprep.subr.mxu0 0.0
    %3954 = vmatpush2.msra.mxu0 0.0
    %3955 = vmatprep.subr.mxu0 0.0
    %3956 = vmatpush2.msra.mxu0 0.0
    %3957 = vmatprep.subr.mxu0 0.0
    %3958 = vmatpush2.msra.mxu0 0.0
    %3959 = vmatprep.subr.mxu0 0.0
    %3960 = vmatpush2.msra.mxu0 0.0
    %3961 = vmatprep.subr.mxu0 0.0
    %3962 = vmatpush2.msra.mxu0 0.0
    %3963 = vmatprep.subr.mxu0 0.0
    %3964 = vmatpush2.msra.mxu0 0.0
    %3965 = vmatprep.subr.mxu0 0.0
    %3966 = vmatpush2.msra.mxu0 0.0
    %3967 = vmatprep.subr.mxu0 0.0
    %3968 = vmatpush2.msra.mxu0 0.0
    %3969 = vmatprep.subr.mxu0 0.0
    %3970 = vmatpush2.msra.mxu0 0.0
    %3971 = vmatprep.subr.mxu0 0.0
    %3972 = vmatpush2.msra.mxu0 0.0
    %3973 = vmatprep.subr.mxu0 0.0
    %3974 = vmatpush2.msra.mxu0 0.0
    %3975 = vmatprep.subr.mxu0 0.0
    %3976 = vmatpush2.msra.mxu0 0.0
    %3977 = vmatprep.mubr.f32.mxu0 0.0
    %3978 = vmatmul.mubr.f32.gmra.mxu0 %v3911
    %v3979 = vpop.f32.mrf.mxu0
    %v3980 = vadd.f32 0.0, %v3979
    %v3981 = vpop.f32.mrf.mxu0
    %3982 = vdwg.mxu0
    %3983 = vrot.lane.b32.xlu0 %v3655, 112
    %v3984 = vpop.permute.xlu0 %3983
    %3985 = vrot.lane.b32.xlu0 %v3647, 112
    %v3986 = vpop.permute.xlu0 %3985
    %v3987 = vsel %vm36, %v3984, 0
    %v3989 = vsel %vm36, %v3986, 0
    %3991 = vmatprep.subr.mxu0 0.0
    %3992 = vmatpush1.xpose.msra.mxu0 0.0
    %3993 = vmatprep.subr.mxu0 0.0
    %3994 = vmatpush1.xpose.msra.mxu0 0.0
    %3995 = vmatprep.subr.mxu0 0.0
    %3996 = vmatpush1.xpose.msra.mxu0 0.0
    %3997 = vmatprep.subr.mxu0 0.0
    %3998 = vmatpush1.xpose.msra.mxu0 0.0
    %3999 = vmatprep.subr.mxu0 0.0
    %4000 = vmatpush1.xpose.msra.mxu0 0.0
    %4001 = vmatprep.subr.mxu0 0.0
    %4002 = vmatpush1.xpose.msra.mxu0 0.0
    %4003 = vmatprep.subr.mxu0 0.0
    %4004 = vmatpush1.xpose.msra.mxu0 0.0
    %4005 = vmatprep.subr.mxu0 0.0
    %4006 = vmatpush1.xpose.msra.mxu0 0.0
    %4007 = vmatprep.subr.mxu0 0.0
    %4008 = vmatpush1.xpose.msra.mxu0 0.0
    %4009 = vmatprep.subr.mxu0 0.0
    %4010 = vmatpush1.xpose.msra.mxu0 0.0
    %4011 = vmatprep.subr.mxu0 0.0
    %4012 = vmatpush1.xpose.msra.mxu0 0.0
    %4013 = vmatprep.subr.mxu0 0.0
    %4014 = vmatpush1.xpose.msra.mxu0 0.0
    %4015 = vmatprep.subr.mxu0 0.0
    %4016 = vmatpush1.xpose.msra.mxu0 0.0
    %4017 = vmatprep.subr.mxu0 0.0
    %4018 = vmatpush1.xpose.msra.mxu0 0.0
    %4019 = vmatprep.subr.mxu0 0.0
    %4020 = vmatpush1.xpose.msra.mxu0 0.0
    %4021 = vmatprep.subr.mxu0 0.0
    %4022 = vmatpush1.xpose.msra.mxu0 %v3989
    %4023 = vmatprep.subr.mxu0 0.0
    %4024 = vmatpush2.xpose.msra.mxu0 0.0
    %4025 = vmatprep.subr.mxu0 0.0
    %4026 = vmatpush2.xpose.msra.mxu0 0.0
    %4027 = vmatprep.subr.mxu0 0.0
    %4028 = vmatpush2.xpose.msra.mxu0 0.0
    %4029 = vmatprep.subr.mxu0 0.0
    %4030 = vmatpush2.xpose.msra.mxu0 0.0
    %4031 = vmatprep.subr.mxu0 0.0
    %4032 = vmatpush2.xpose.msra.mxu0 0.0
    %4033 = vmatprep.subr.mxu0 0.0
    %4034 = vmatpush2.xpose.msra.mxu0 0.0
    %4035 = vmatprep.subr.mxu0 0.0
    %4036 = vmatpush2.xpose.msra.mxu0 0.0
    %4037 = vmatprep.subr.mxu0 0.0
    %4038 = vmatpush2.xpose.msra.mxu0 0.0
    %4039 = vmatprep.subr.mxu0 0.0
    %4040 = vmatpush2.xpose.msra.mxu0 0.0
    %4041 = vmatprep.subr.mxu0 0.0
    %4042 = vmatpush2.xpose.msra.mxu0 0.0
    %4043 = vmatprep.subr.mxu0 0.0
    %4044 = vmatpush2.xpose.msra.mxu0 0.0
    %4045 = vmatprep.subr.mxu0 0.0
    %4046 = vmatpush2.xpose.msra.mxu0 0.0
    %4047 = vmatprep.subr.mxu0 0.0
    %4048 = vmatpush2.xpose.msra.mxu0 0.0
    %4049 = vmatprep.subr.mxu0 0.0
    %4050 = vmatpush2.xpose.msra.mxu0 0.0
    %4051 = vmatprep.subr.mxu0 0.0
    %4052 = vmatpush2.xpose.msra.mxu0 0.0
    %4053 = vmatprep.subr.mxu0 0.0
    %4054 = vmatpush2.xpose.msra.mxu0 0.0
    %4055 = vmatprep.mubr.f32.mxu0 0.0
    %4056 = vmatmul.mubr.f32.gmra.mxu0 %v3987
    %v4057 = vpop.f32.mrf.mxu0
    %v4058 = vadd.f32 0.0, %v4057
    %v4059 = vpop.f32.mrf.mxu0
    %4060 = vdwg.mxu0
    %4061 = vrot.lane.b32.xlu0 %v3656, 112
    %v4062 = vpop.permute.xlu0 %4061
    %4063 = vrot.lane.b32.xlu0 %v3652, 112
    %v4064 = vpop.permute.xlu0 %4063
    %v4065 = vsel %vm36, %v4062, 0
    %v4067 = vsel %vm36, %v4064, 0
    %4069 = vmatprep.subr.mxu0 0.0
    %4070 = vmatpush1.xpose.msra.mxu0 0.0
    %4071 = vmatprep.subr.mxu0 0.0
    %4072 = vmatpush1.xpose.msra.mxu0 0.0
    %4073 = vmatprep.subr.mxu0 0.0
    %4074 = vmatpush1.xpose.msra.mxu0 0.0
    %4075 = vmatprep.subr.mxu0 0.0
    %4076 = vmatpush1.xpose.msra.mxu0 0.0
    %4077 = vmatprep.subr.mxu0 0.0
    %4078 = vmatpush1.xpose.msra.mxu0 0.0
    %4079 = vmatprep.subr.mxu0 0.0
    %4080 = vmatpush1.xpose.msra.mxu0 0.0
    %4081 = vmatprep.subr.mxu0 0.0
    %4082 = vmatpush1.xpose.msra.mxu0 0.0
    %4083 = vmatprep.subr.mxu0 0.0
    %4084 = vmatpush1.xpose.msra.mxu0 0.0
    %4085 = vmatprep.subr.mxu0 0.0
    %4086 = vmatpush1.xpose.msra.mxu0 0.0
    %4087 = vmatprep.subr.mxu0 0.0
    %4088 = vmatpush1.xpose.msra.mxu0 0.0
    %4089 = vmatprep.subr.mxu0 0.0
    %4090 = vmatpush1.xpose.msra.mxu0 0.0
    %4091 = vmatprep.subr.mxu0 0.0
    %4092 = vmatpush1.xpose.msra.mxu0 0.0
    %4093 = vmatprep.subr.mxu0 0.0
    %4094 = vmatpush1.xpose.msra.mxu0 0.0
    %4095 = vmatprep.subr.mxu0 0.0
    %4096 = vmatpush1.xpose.msra.mxu0 0.0
    %4097 = vmatprep.subr.mxu0 0.0
    %4098 = vmatpush1.xpose.msra.mxu0 0.0
    %4099 = vmatprep.subr.mxu0 0.0
    %4100 = vmatpush1.xpose.msra.mxu0 %v4067
    %4101 = vmatprep.subr.mxu0 0.0
    %4102 = vmatpush2.xpose.msra.mxu0 0.0
    %4103 = vmatprep.subr.mxu0 0.0
    %4104 = vmatpush2.xpose.msra.mxu0 0.0
    %4105 = vmatprep.subr.mxu0 0.0
    %4106 = vmatpush2.xpose.msra.mxu0 0.0
    %4107 = vmatprep.subr.mxu0 0.0
    %4108 = vmatpush2.xpose.msra.mxu0 0.0
    %4109 = vmatprep.subr.mxu0 0.0
    %4110 = vmatpush2.xpose.msra.mxu0 0.0
    %4111 = vmatprep.subr.mxu0 0.0
    %4112 = vmatpush2.xpose.msra.mxu0 0.0
    %4113 = vmatprep.subr.mxu0 0.0
    %4114 = vmatpush2.xpose.msra.mxu0 0.0
    %4115 = vmatprep.subr.mxu0 0.0
    %4116 = vmatpush2.xpose.msra.mxu0 0.0
    %4117 = vmatprep.subr.mxu0 0.0
    %4118 = vmatpush2.xpose.msra.mxu0 0.0
    %4119 = vmatprep.subr.mxu0 0.0
    %4120 = vmatpush2.xpose.msra.mxu0 0.0
    %4121 = vmatprep.subr.mxu0 0.0
    %4122 = vmatpush2.xpose.msra.mxu0 0.0
    %4123 = vmatprep.subr.mxu0 0.0
    %4124 = vmatpush2.xpose.msra.mxu0 0.0
    %4125 = vmatprep.subr.mxu0 0.0
    %4126 = vmatpush2.xpose.msra.mxu0 0.0
    %4127 = vmatprep.subr.mxu0 0.0
    %4128 = vmatpush2.xpose.msra.mxu0 0.0
    %4129 = vmatprep.subr.mxu0 0.0
    %4130 = vmatpush2.xpose.msra.mxu0 0.0
    %4131 = vmatprep.subr.mxu0 0.0
    %4132 = vmatpush2.xpose.msra.mxu0 0.0
    %4133 = vmatprep.mubr.f32.mxu0 0.0
    %4134 = vmatmul.mubr.f32.gmra.mxu0 %v4065
    %v4135 = vpop.f32.mrf.mxu0
    %v4136 = vadd.f32 0.0, %v4135
    %v4137 = vpop.f32.mrf.mxu0
    %4138 = vdwg.mxu0
    %v4139 = vsel %vm456, %v4058, -inf
    %4140 = vmax.xlane.f32.xlu0 %v4139
    %v4141 = vpop.xlane.xlu0 %4140
    %v4142 = vsel %vm456, %v4136, -inf
    %4143 = vmax.xlane.f32.xlu0 %v4142
    %v4144 = vpop.xlane.xlu0 %4143
    %v4145 = vsub.f32 %v4058, %v4141
    %v4146 = vsub.f32 %v4136, %v4144
    %v4147 = vmul.f32 %v4145, 1.442695
    %v4148 = vpow.pop %v4147
    %v4149 = vmul.f32 %v4146, 1.442695
    %v4150 = vpow.pop %v4149
    %v4151 = vsel %vm456, %v4148, 0.0
    %4152 = vadd.xlane.f32.xlu0 %v4151
    %v4153 = vpop.xlane.xlu0 %4152
    %v4154 = vsel %vm456, %v4150, 0.0
    %4155 = vadd.xlane.f32.xlu0 %v4154
    %v4156 = vpop.xlane.xlu0 %4155
    %v4157 = vrcp.pop %v4153
    %v4158 = vmul.f32 %v4148, %v4157
    %v4159 = vrcp.pop %v4156
    %v4160 = vmul.f32 %v4150, %v4159
    %4161 = vrot.lane.b32.xlu0 %v3647, 80
    %v4162 = vpop.permute.xlu0 %4161
    %v4165 = vsel %vm456, %v4158, 0
    %4167 = vmatprep.subr.mxu0 0.0
    %4168 = vmatpush1.msra.mxu0 0.0
    %4169 = vmatprep.subr.mxu0 0.0
    %4170 = vmatpush1.msra.mxu0 0.0
    %4171 = vmatprep.subr.mxu0 0.0
    %4172 = vmatpush1.msra.mxu0 0.0
    %4173 = vmatprep.subr.mxu0 0.0
    %4174 = vmatpush1.msra.mxu0 0.0
    %4175 = vmatprep.subr.mxu0 0.0
    %4176 = vmatpush1.msra.mxu0 0.0
    %4177 = vmatprep.subr.mxu0 0.0
    %4178 = vmatpush1.msra.mxu0 0.0
    %4179 = vmatprep.subr.mxu0 0.0
    %4180 = vmatpush1.msra.mxu0 0.0
    %4181 = vmatprep.subr.mxu0 0.0
    %4182 = vmatpush1.msra.mxu0 0.0
    %4183 = vmatprep.subr.mxu0 0.0
    %4184 = vmatpush1.msra.mxu0 0.0
    %4185 = vmatprep.subr.mxu0 0.0
    %4186 = vmatpush1.msra.mxu0 0.0
    %4187 = vmatprep.subr.mxu0 0.0
    %4188 = vmatpush1.msra.mxu0 0.0
    %4189 = vmatprep.subr.mxu0 0.0
    %4190 = vmatpush1.msra.mxu0 0.0
    %4191 = vmatprep.subr.mxu0 0.0
    %4192 = vmatpush1.msra.mxu0 0.0
    %4193 = vmatprep.subr.mxu0 0.0
    %4194 = vmatpush1.msra.mxu0 0.0
    %4195 = vmatprep.subr.mxu0 0.0
    %4196 = vmatpush1.msra.mxu0 0.0
    %4197 = vmatprep.subr.mxu0 0.0
    %4198 = vmatpush1.msra.mxu0 %v4162
    %4199 = vmatprep.subr.mxu0 0.0
    %4200 = vmatpush2.msra.mxu0 0.0
    %4201 = vmatprep.subr.mxu0 0.0
    %4202 = vmatpush2.msra.mxu0 0.0
    %4203 = vmatprep.subr.mxu0 0.0
    %4204 = vmatpush2.msra.mxu0 0.0
    %4205 = vmatprep.subr.mxu0 0.0
    %4206 = vmatpush2.msra.mxu0 0.0
    %4207 = vmatprep.subr.mxu0 0.0
    %4208 = vmatpush2.msra.mxu0 0.0
    %4209 = vmatprep.subr.mxu0 0.0
    %4210 = vmatpush2.msra.mxu0 0.0
    %4211 = vmatprep.subr.mxu0 0.0
    %4212 = vmatpush2.msra.mxu0 0.0
    %4213 = vmatprep.subr.mxu0 0.0
    %4214 = vmatpush2.msra.mxu0 0.0
    %4215 = vmatprep.subr.mxu0 0.0
    %4216 = vmatpush2.msra.mxu0 0.0
    %4217 = vmatprep.subr.mxu0 0.0
    %4218 = vmatpush2.msra.mxu0 0.0
    %4219 = vmatprep.subr.mxu0 0.0
    %4220 = vmatpush2.msra.mxu0 0.0
    %4221 = vmatprep.subr.mxu0 0.0
    %4222 = vmatpush2.msra.mxu0 0.0
    %4223 = vmatprep.subr.mxu0 0.0
    %4224 = vmatpush2.msra.mxu0 0.0
    %4225 = vmatprep.subr.mxu0 0.0
    %4226 = vmatpush2.msra.mxu0 0.0
    %4227 = vmatprep.subr.mxu0 0.0
    %4228 = vmatpush2.msra.mxu0 0.0
    %4229 = vmatprep.subr.mxu0 0.0
    %4230 = vmatpush2.msra.mxu0 0.0
    %4231 = vmatprep.mubr.f32.mxu0 0.0
    %4232 = vmatmul.mubr.f32.gmra.mxu0 %v4165
    %v4233 = vpop.f32.mrf.mxu0
    %v4234 = vadd.f32 0.0, %v4233
    %v4235 = vpop.f32.mrf.mxu0
    %4236 = vdwg.mxu0
    %4237 = vrot.lane.b32.xlu0 %v3652, 80
    %v4238 = vpop.permute.xlu0 %4237
    %v4241 = vsel %vm456, %v4160, 0
    %4243 = vmatprep.subr.mxu0 0.0
    %4244 = vmatpush1.msra.mxu0 0.0
    %4245 = vmatprep.subr.mxu0 0.0
    %4246 = vmatpush1.msra.mxu0 0.0
    %4247 = vmatprep.subr.mxu0 0.0
    %4248 = vmatpush1.msra.mxu0 0.0
    %4249 = vmatprep.subr.mxu0 0.0
    %4250 = vmatpush1.msra.mxu0 0.0
    %4251 = vmatprep.subr.mxu0 0.0
    %4252 = vmatpush1.msra.mxu0 0.0
    %4253 = vmatprep.subr.mxu0 0.0
    %4254 = vmatpush1.msra.mxu0 0.0
    %4255 = vmatprep.subr.mxu0 0.0
    %4256 = vmatpush1.msra.mxu0 0.0
    %4257 = vmatprep.subr.mxu0 0.0
    %4258 = vmatpush1.msra.mxu0 0.0
    %4259 = vmatprep.subr.mxu0 0.0
    %4260 = vmatpush1.msra.mxu0 0.0
    %4261 = vmatprep.subr.mxu0 0.0
    %4262 = vmatpush1.msra.mxu0 0.0
    %4263 = vmatprep.subr.mxu0 0.0
    %4264 = vmatpush1.msra.mxu0 0.0
    %4265 = vmatprep.subr.mxu0 0.0
    %4266 = vmatpush1.msra.mxu0 0.0
    %4267 = vmatprep.subr.mxu0 0.0
    %4268 = vmatpush1.msra.mxu0 0.0
    %4269 = vmatprep.subr.mxu0 0.0
    %4270 = vmatpush1.msra.mxu0 0.0
    %4271 = vmatprep.subr.mxu0 0.0
    %4272 = vmatpush1.msra.mxu0 0.0
    %4273 = vmatprep.subr.mxu0 0.0
    %4274 = vmatpush1.msra.mxu0 %v4238
    %4275 = vmatprep.subr.mxu0 0.0
    %4276 = vmatpush2.msra.mxu0 0.0
    %4277 = vmatprep.subr.mxu0 0.0
    %4278 = vmatpush2.msra.mxu0 0.0
    %4279 = vmatprep.subr.mxu0 0.0
    %4280 = vmatpush2.msra.mxu0 0.0
    %4281 = vmatprep.subr.mxu0 0.0
    %4282 = vmatpush2.msra.mxu0 0.0
    %4283 = vmatprep.subr.mxu0 0.0
    %4284 = vmatpush2.msra.mxu0 0.0
    %4285 = vmatprep.subr.mxu0 0.0
    %4286 = vmatpush2.msra.mxu0 0.0
    %4287 = vmatprep.subr.mxu0 0.0
    %4288 = vmatpush2.msra.mxu0 0.0
    %4289 = vmatprep.subr.mxu0 0.0
    %4290 = vmatpush2.msra.mxu0 0.0
    %4291 = vmatprep.subr.mxu0 0.0
    %4292 = vmatpush2.msra.mxu0 0.0
    %4293 = vmatprep.subr.mxu0 0.0
    %4294 = vmatpush2.msra.mxu0 0.0
    %4295 = vmatprep.subr.mxu0 0.0
    %4296 = vmatpush2.msra.mxu0 0.0
    %4297 = vmatprep.subr.mxu0 0.0
    %4298 = vmatpush2.msra.mxu0 0.0
    %4299 = vmatprep.subr.mxu0 0.0
    %4300 = vmatpush2.msra.mxu0 0.0
    %4301 = vmatprep.subr.mxu0 0.0
    %4302 = vmatpush2.msra.mxu0 0.0
    %4303 = vmatprep.subr.mxu0 0.0
    %4304 = vmatpush2.msra.mxu0 0.0
    %4305 = vmatprep.subr.mxu0 0.0
    %4306 = vmatpush2.msra.mxu0 0.0
    %4307 = vmatprep.mubr.f32.mxu0 0.0
    %4308 = vmatmul.mubr.f32.gmra.mxu0 %v4241
    %v4309 = vpop.f32.mrf.mxu0
    %v4310 = vadd.f32 0.0, %v4309
    %v4311 = vpop.f32.mrf.mxu0
    %4312 = vdwg.mxu0
    %v4314 = vsel %vm36, %v4234, 0
    %v4317 = vsel %vm36, %v4310, 0
    %4319 = vmatprep.subr.mxu0 0.0
    %4320 = vmatpush1.msra.mxu0 0.0
    %4321 = vmatprep.subr.mxu0 0.0
    %4322 = vmatpush1.msra.mxu0 0.0
    %4323 = vmatprep.subr.mxu0 0.0
    %4324 = vmatpush1.msra.mxu0 0.0
    %4325 = vmatprep.subr.mxu0 0.0
    %4326 = vmatpush1.msra.mxu0 0.0
    %4327 = vmatprep.subr.mxu0 0.0
    %4328 = vmatpush1.msra.mxu0 0.0
    %4329 = vmatprep.subr.mxu0 0.0
    %4330 = vmatpush1.msra.mxu0 0.0
    %4331 = vmatprep.subr.mxu0 0.0
    %4332 = vmatpush1.msra.mxu0 0.0
    %4333 = vmatprep.subr.mxu0 0.0
    %4334 = vmatpush1.msra.mxu0 0.0
    %4335 = vmatprep.subr.mxu0 0.0
    %4336 = vmatpush1.msra.mxu0 0.0
    %4337 = vmatprep.subr.mxu0 0.0
    %4338 = vmatpush1.msra.mxu0 0.0
    %4339 = vmatprep.subr.mxu0 0.0
    %4340 = vmatpush1.msra.mxu0 0.0
    %4341 = vmatprep.subr.mxu0 0.0
    %4342 = vmatpush1.msra.mxu0 0.0
    %4343 = vmatprep.subr.mxu0 0.0
    %4344 = vmatpush1.msra.mxu0 0.0
    %4345 = vmatprep.subr.mxu0 0.0
    %4346 = vmatpush1.msra.mxu0 0.0
    %4347 = vmatprep.subr.mxu0 0.0
    %4348 = vmatpush1.msra.mxu0 %v3489
    %4349 = vmatprep.subr.mxu0 0.0
    %4350 = vmatpush1.msra.mxu0 %v3488
    %4351 = vmatprep.subr.mxu0 0.0
    %4352 = vmatpush2.msra.mxu0 0.0
    %4353 = vmatprep.subr.mxu0 0.0
    %4354 = vmatpush2.msra.mxu0 0.0
    %4355 = vmatprep.subr.mxu0 0.0
    %4356 = vmatpush2.msra.mxu0 0.0
    %4357 = vmatprep.subr.mxu0 0.0
    %4358 = vmatpush2.msra.mxu0 0.0
    %4359 = vmatprep.subr.mxu0 0.0
    %4360 = vmatpush2.msra.mxu0 0.0
    %4361 = vmatprep.subr.mxu0 0.0
    %4362 = vmatpush2.msra.mxu0 0.0
    %4363 = vmatprep.subr.mxu0 0.0
    %4364 = vmatpush2.msra.mxu0 0.0
    %4365 = vmatprep.subr.mxu0 0.0
    %4366 = vmatpush2.msra.mxu0 0.0
    %4367 = vmatprep.subr.mxu0 0.0
    %4368 = vmatpush2.msra.mxu0 0.0
    %4369 = vmatprep.subr.mxu0 0.0
    %4370 = vmatpush2.msra.mxu0 0.0
    %4371 = vmatprep.subr.mxu0 0.0
    %4372 = vmatpush2.msra.mxu0 0.0
    %4373 = vmatprep.subr.mxu0 0.0
    %4374 = vmatpush2.msra.mxu0 0.0
    %4375 = vmatprep.subr.mxu0 0.0
    %4376 = vmatpush2.msra.mxu0 0.0
    %4377 = vmatprep.subr.mxu0 0.0
    %4378 = vmatpush2.msra.mxu0 0.0
    %4379 = vmatprep.subr.mxu0 0.0
    %4380 = vmatpush2.msra.mxu0 0.0
    %4381 = vmatprep.subr.mxu0 0.0
    %4382 = vmatpush2.msra.mxu0 0.0
    %4383 = vmatprep.mubr.f32.mxu0 0.0
    %4384 = vmatmul.mubr.f32.gmra.mxu0 %v4314
    %v4385 = vpop.f32.mrf.mxu0
    %v4386 = vadd.f32 0.0, %v4385
    %v4387 = vpop.f32.mrf.mxu0
    %4388 = vmatprep.mubr.f32.mxu0 0.0
    %4389 = vmatmul.mubr.f32.gmra.mxu0 %v4317
    %v4390 = vpop.f32.mrf.mxu0
    %v4391 = vadd.f32 0.0, %v4390
    %v4392 = vpop.f32.mrf.mxu0
    %4393 = vdwg.mxu0
    %v4395 = vsel %vm36, %v3904, 0
    %v4398 = vsel %vm36, %v3980, 0
    %4400 = vmatprep.subr.mxu0 0.0
    %4401 = vmatpush1.msra.mxu0 0.0
    %4402 = vmatprep.subr.mxu0 0.0
    %4403 = vmatpush1.msra.mxu0 0.0
    %4404 = vmatprep.subr.mxu0 0.0
    %4405 = vmatpush1.msra.mxu0 0.0
    %4406 = vmatprep.subr.mxu0 0.0
    %4407 = vmatpush1.msra.mxu0 0.0
    %4408 = vmatprep.subr.mxu0 0.0
    %4409 = vmatpush1.msra.mxu0 0.0
    %4410 = vmatprep.subr.mxu0 0.0
    %4411 = vmatpush1.msra.mxu0 0.0
    %4412 = vmatprep.subr.mxu0 0.0
    %4413 = vmatpush1.msra.mxu0 0.0
    %4414 = vmatprep.subr.mxu0 0.0
    %4415 = vmatpush1.msra.mxu0 0.0
    %4416 = vmatprep.subr.mxu0 0.0
    %4417 = vmatpush1.msra.mxu0 0.0
    %4418 = vmatprep.subr.mxu0 0.0
    %4419 = vmatpush1.msra.mxu0 0.0
    %4420 = vmatprep.subr.mxu0 0.0
    %4421 = vmatpush1.msra.mxu0 0.0
    %4422 = vmatprep.subr.mxu0 0.0
    %4423 = vmatpush1.msra.mxu0 0.0
    %4424 = vmatprep.subr.mxu0 0.0
    %4425 = vmatpush1.msra.mxu0 0.0
    %4426 = vmatprep.subr.mxu0 0.0
    %4427 = vmatpush1.msra.mxu0 0.0
    %4428 = vmatprep.subr.mxu0 0.0
    %4429 = vmatpush1.msra.mxu0 %v3487
    %4430 = vmatprep.subr.mxu0 0.0
    %4431 = vmatpush1.msra.mxu0 %v3486
    %4432 = vmatprep.subr.mxu0 0.0
    %4433 = vmatpush2.msra.mxu0 0.0
    %4434 = vmatprep.subr.mxu0 0.0
    %4435 = vmatpush2.msra.mxu0 0.0
    %4436 = vmatprep.subr.mxu0 0.0
    %4437 = vmatpush2.msra.mxu0 0.0
    %4438 = vmatprep.subr.mxu0 0.0
    %4439 = vmatpush2.msra.mxu0 0.0
    %4440 = vmatprep.subr.mxu0 0.0
    %4441 = vmatpush2.msra.mxu0 0.0
    %4442 = vmatprep.subr.mxu0 0.0
    %4443 = vmatpush2.msra.mxu0 0.0
    %4444 = vmatprep.subr.mxu0 0.0
    %4445 = vmatpush2.msra.mxu0 0.0
    %4446 = vmatprep.subr.mxu0 0.0
    %4447 = vmatpush2.msra.mxu0 0.0
    %4448 = vmatprep.subr.mxu0 0.0
    %4449 = vmatpush2.msra.mxu0 0.0
    %4450 = vmatprep.subr.mxu0 0.0
    %4451 = vmatpush2.msra.mxu0 0.0
    %4452 = vmatprep.subr.mxu0 0.0
    %4453 = vmatpush2.msra.mxu0 0.0
    %4454 = vmatprep.subr.mxu0 0.0
    %4455 = vmatpush2.msra.mxu0 0.0
    %4456 = vmatprep.subr.mxu0 0.0
    %4457 = vmatpush2.msra.mxu0 0.0
    %4458 = vmatprep.subr.mxu0 0.0
    %4459 = vmatpush2.msra.mxu0 0.0
    %4460 = vmatprep.subr.mxu0 0.0
    %4461 = vmatpush2.msra.mxu0 0.0
    %4462 = vmatprep.subr.mxu0 0.0
    %4463 = vmatpush2.msra.mxu0 0.0
    %4464 = vmatprep.mubr.f32.mxu0 0.0
    %4465 = vmatmul.mubr.f32.gmra.mxu0 %v4395
    %v4466 = vpop.f32.mrf.mxu0
    %v4467 = vadd.f32 %v4386, %v4466
    %v4468 = vpop.f32.mrf.mxu0
    %4469 = vmatprep.mubr.f32.mxu0 0.0
    %4470 = vmatmul.mubr.f32.gmra.mxu0 %v4398
    %v4471 = vpop.f32.mrf.mxu0
    %v4472 = vadd.f32 %v4391, %v4471
    %v4473 = vpop.f32.mrf.mxu0
    %4474 = vdwg.mxu0
    %v4475 = vlaneseq
    %v4476 = vshrl.u32 %v4475, 7
    %v4477 = vsub.s32 0, %v4476
    %v4478 = vrot.slane %v3490, %v4477
    %v4479 = vadd.f32 %v4467, %v4478
    %v4480 = vadd.f32 %v4472, %v4478
    %v4481 = vld [vmem:[%s1 + $0x210] sm:$0x1]
    %v4482 = vld [vmem:[%s1 + $0x218] sm:$0x1]
    %v4483 = vadd.f32 %v2463, %v4479
    %v4484 = vadd.f32 %v2464, %v4480
    %v4485 = vsel %vm138, %v4483, 0.0
    %4486 = vadd.xlane.f32.xlu0 %v4485
    %v4487 = vpop.xlane.xlu0 %4486
    %v4488 = vsel %vm138, %v4484, 0.0
    %4489 = vadd.xlane.f32.xlu0 %v4488
    %v4490 = vpop.xlane.xlu0 %4489
    %v4491 = vmul.f32 %v4487, %v2144
    %v4492 = vmul.f32 %v4490, %v2144
    %v4493 = vsub.f32 %v4483, %v4491
    %v4494 = vsub.f32 %v4484, %v4492
    %v4495 = vmul.f32 %v4493, %v4493
    %v4496 = vmul.f32 %v4494, %v4494
    %v4497 = vsel %vm138, %v4495, 0.0
    %4498 = vadd.xlane.f32.xlu0 %v4497
    %v4499 = vpop.xlane.xlu0 %4498
    %v4500 = vsel %vm138, %v4496, 0.0
    %4501 = vadd.xlane.f32.xlu0 %v4500
    %v4502 = vpop.xlane.xlu0 %4501
    %v4503 = vmul.f32 %v4499, %v2144
    %v4504 = vmul.f32 %v4502, %v2144
    %v4505 = vadd.f32 %v4503, 1e-05
    %v4506 = vadd.f32 %v4504, 1e-05
    %v4507 = vrsqrt.pop %v4505
    %v4508 = vrsqrt.pop %v4506
    %v4509 = vmul.f32 %v4493, %v4507
    %v4510 = vmul.f32 %v4494, %v4508
    %v4511 = vlaneseq
    %v4512 = vshrl.u32 %v4511, 7
    %v4513 = vsub.s32 0, %v4512
    %v4514 = vrot.slane %v4481, %v4513
    %v4515 = vmul.f32 %v4509, %v4514
    %v4516 = vmul.f32 %v4510, %v4514
    %v4517 = vlaneseq
    %v4518 = vshrl.u32 %v4517, 7
    %v4519 = vsub.s32 0, %v4518
    %v4520 = vrot.slane %v4482, %v4519
    %v4521 = vadd.f32 %v4515, %v4520
    %v4522 = vadd.f32 %v4516, %v4520
    %v4523 = vld [vmem:[%s3 + $0x28] sm:$0xff]
    %v4524 = vld [vmem:[%s3 + $0x30] sm:$0xff]
    %v4525 = vld [vmem:[%s3 + $0x38] sm:$0xff]
    %v4526 = vld [vmem:[%s3 + $0x40] sm:$0xff]
    %v4527 = vld [vmem:[%s3 + $0x48] sm:$0x1]
    %v4528 = vlaneseq
    %v4529 = vshrl.u32 %v4528, 7
    %v4530 = vsub.s32 0, %v4529
    %v4531 = vrot.slane %v4527, %v4530
    %v4533 = vsel %vm138, %v4521, 0
    %v4536 = vsel %vm138, %v4522, 0
    %4538 = vmatprep.subr.mxu0 0.0
    %4539 = vmatpush1.msra.mxu0 0.0
    %4540 = vmatprep.subr.mxu0 0.0
    %4541 = vmatpush1.msra.mxu0 0.0
    %4542 = vmatprep.subr.mxu0 0.0
    %4543 = vmatpush1.msra.mxu0 0.0
    %4544 = vmatprep.subr.mxu0 0.0
    %4545 = vmatpush1.msra.mxu0 0.0
    %4546 = vmatprep.subr.mxu0 0.0
    %4547 = vmatpush1.msra.mxu0 0.0
    %4548 = vmatprep.subr.mxu0 0.0
    %4549 = vmatpush1.msra.mxu0 0.0
    %4550 = vmatprep.subr.mxu0 0.0
    %4551 = vmatpush1.msra.mxu0 0.0
    %4552 = vmatprep.subr.mxu0 0.0
    %4553 = vmatpush1.msra.mxu0 0.0
    %4554 = vmatprep.subr.mxu0 0.0
    %4555 = vmatpush1.msra.mxu0 0.0
    %4556 = vmatprep.subr.mxu0 0.0
    %4557 = vmatpush1.msra.mxu0 0.0
    %4558 = vmatprep.subr.mxu0 0.0
    %4559 = vmatpush1.msra.mxu0 0.0
    %4560 = vmatprep.subr.mxu0 0.0
    %4561 = vmatpush1.msra.mxu0 0.0
    %4562 = vmatprep.subr.mxu0 0.0
    %4563 = vmatpush1.msra.mxu0 %v4526
    %4564 = vmatprep.subr.mxu0 0.0
    %4565 = vmatpush1.msra.mxu0 %v4525
    %4566 = vmatprep.subr.mxu0 0.0
    %4567 = vmatpush1.msra.mxu0 %v4524
    %4568 = vmatprep.subr.mxu0 0.0
    %4569 = vmatpush1.msra.mxu0 %v4523
    %4570 = vmatprep.subr.mxu0 0.0
    %4571 = vmatpush2.msra.mxu0 0.0
    %4572 = vmatprep.subr.mxu0 0.0
    %4573 = vmatpush2.msra.mxu0 0.0
    %4574 = vmatprep.subr.mxu0 0.0
    %4575 = vmatpush2.msra.mxu0 0.0
    %4576 = vmatprep.subr.mxu0 0.0
    %4577 = vmatpush2.msra.mxu0 0.0
    %4578 = vmatprep.subr.mxu0 0.0
    %4579 = vmatpush2.msra.mxu0 0.0
    %4580 = vmatprep.subr.mxu0 0.0
    %4581 = vmatpush2.msra.mxu0 0.0
    %4582 = vmatprep.subr.mxu0 0.0
    %4583 = vmatpush2.msra.mxu0 0.0
    %4584 = vmatprep.subr.mxu0 0.0
    %4585 = vmatpush2.msra.mxu0 0.0
    %4586 = vmatprep.subr.mxu0 0.0
    %4587 = vmatpush2.msra.mxu0 0.0
    %4588 = vmatprep.subr.mxu0 0.0
    %4589 = vmatpush2.msra.mxu0 0.0
    %4590 = vmatprep.subr.mxu0 0.0
    %4591 = vmatpush2.msra.mxu0 0.0
    %4592 = vmatprep.subr.mxu0 0.0
    %4593 = vmatpush2.msra.mxu0 0.0
    %4594 = vmatprep.subr.mxu0 0.0
    %4595 = vmatpush2.msra.mxu0 0.0
    %4596 = vmatprep.subr.mxu0 0.0
    %4597 = vmatpush2.msra.mxu0 0.0
    %4598 = vmatprep.subr.mxu0 0.0
    %4599 = vmatpush2.msra.mxu0 0.0
    %4600 = vmatprep.subr.mxu0 0.0
    %4601 = vmatpush2.msra.mxu0 0.0
    %4602 = vmatprep.mubr.f32.mxu0 0.0
    %4603 = vmatmul.mubr.f32.gmra.mxu0 %v4533
    %v4604 = vpop.f32.mrf.mxu0
    %v4605 = vadd.f32 %v4531, %v4604
    %v4606 = vpop.f32.mrf.mxu0
    %4607 = vmatprep.mubr.f32.mxu0 0.0
    %4608 = vmatmul.mubr.f32.gmra.mxu0 %v4536
    %v4609 = vpop.f32.mrf.mxu0
    %v4610 = vadd.f32 %v4531, %v4609
    %v4611 = vpop.f32.mrf.mxu0
    %4612 = vdwg.mxu0
    %v4613 = vmul.f32 %v4605, %v4605
    %v4614 = vmul.f32 %v4610, %v4610
    %v4615 = vmul.f32 %v4605, %v4613
    %v4616 = vmul.f32 %v4610, %v4614
    %v4617 = vmul.f32 %v4615, 0.044715
    %v4618 = vmul.f32 %v4616, 0.044715
    %v4619 = vadd.f32 %v4605, %v4617
    %v4620 = vadd.f32 %v4610, %v4618
    %v4621 = vmul.f32 %v4619, 0.7978846
    %v4622 = vmul.f32 %v4620, 0.7978846
    %v4623 = vtanh.pop %v4621
    %v4624 = vtanh.pop %v4622
    %v4625 = vadd.f32 %v4623, 1.0
    %v4626 = vadd.f32 %v4624, 1.0
    %v4627 = vmul.f32 %v4625, 0.5
    %v4628 = vmul.f32 %v4626, 0.5
    %v4629 = vmul.f32 %v4605, %v4627
    %v4630 = vmul.f32 %v4610, %v4628
    %v4631 = vld [vmem:[%s1 + $0x240] sm:$0xff]
    %v4632 = vld [vmem:[%s1 + $0x248] sm:$0xff]
    %v4633 = vld [vmem:[%s1 + $0x250] sm:$0xff]
    %v4634 = vld [vmem:[%s1 + $0x258] sm:$0xff]
    %v4635 = vld [vmem:[%s1 + $0x260] sm:$0xff]
    %v4636 = vld [vmem:[%s1 + $0x268] sm:$0xff]
    %v4637 = vld [vmem:[%s1 + $0x270] sm:$0xff]
    %v4638 = vld [vmem:[%s1 + $0x278] sm:$0xff]
    %v4639 = vld [vmem:[%s1 + $0x280] sm:$0xff]
    %v4640 = vld [vmem:[%s1 + $0x288] sm:$0xff]
    %v4641 = vld [vmem:[%s1 + $0x290] sm:$0xff]
    %v4642 = vld [vmem:[%s1 + $0x298] sm:$0xff]
    %v4643 = vld [vmem:[%s1 + $0x2a0] sm:$0xff]
    %v4644 = vld [vmem:[%s1 + $0x2a8] sm:$0xff]
    %v4645 = vld [vmem:[%s1 + $0x2b0] sm:$0xff]
    %v4646 = vld [vmem:[%s1 + $0x2b8] sm:$0xff]
    %v4647 = vld [vmem:[%s1 + $0x2c0] sm:$0x1]
    %v4648 = vlaneseq
    %v4649 = vshrl.u32 %v4648, 7
    %v4650 = vsub.s32 0, %v4649
    %v4651 = vrot.slane %v4647, %v4650
    %4652 = vmatprep.subr.mxu0 0.0
    %4653 = vmatpush1.msra.mxu0 %v4646
    %4654 = vmatprep.subr.mxu0 0.0
    %4655 = vmatpush1.msra.mxu0 %v4645
    %4656 = vmatprep.subr.mxu0 0.0
    %4657 = vmatpush1.msra.mxu0 %v4644
    %4658 = vmatprep.subr.mxu0 0.0
    %4659 = vmatpush1.msra.mxu0 %v4643
    %4660 = vmatprep.subr.mxu0 0.0
    %4661 = vmatpush1.msra.mxu0 %v4642
    %4662 = vmatprep.subr.mxu0 0.0
    %4663 = vmatpush1.msra.mxu0 %v4641
    %4664 = vmatprep.subr.mxu0 0.0
    %4665 = vmatpush1.msra.mxu0 %v4640
    %4666 = vmatprep.subr.mxu0 0.0
    %4667 = vmatpush1.msra.mxu0 %v4639
    %4668 = vmatprep.subr.mxu0 0.0
    %4669 = vmatpush1.msra.mxu0 %v4638
    %4670 = vmatprep.subr.mxu0 0.0
    %4671 = vmatpush1.msra.mxu0 %v4637
    %4672 = vmatprep.subr.mxu0 0.0
    %4673 = vmatpush1.msra.mxu0 %v4636
    %4674 = vmatprep.subr.mxu0 0.0
    %4675 = vmatpush1.msra.mxu0 %v4635
    %4676 = vmatprep.subr.mxu0 0.0
    %4677 = vmatpush1.msra.mxu0 %v4634
    %4678 = vmatprep.subr.mxu0 0.0
    %4679 = vmatpush1.msra.mxu0 %v4633
    %4680 = vmatprep.subr.mxu0 0.0
    %4681 = vmatpush1.msra.mxu0 %v4632
    %4682 = vmatprep.subr.mxu0 0.0
    %4683 = vmatpush1.msra.mxu0 %v4631
    %4684 = vmatprep.subr.mxu0 0.0
    %4685 = vmatpush2.msra.mxu0 0.0
    %4686 = vmatprep.subr.mxu0 0.0
    %4687 = vmatpush2.msra.mxu0 0.0
    %4688 = vmatprep.subr.mxu0 0.0
    %4689 = vmatpush2.msra.mxu0 0.0
    %4690 = vmatprep.subr.mxu0 0.0
    %4691 = vmatpush2.msra.mxu0 0.0
    %4692 = vmatprep.subr.mxu0 0.0
    %4693 = vmatpush2.msra.mxu0 0.0
    %4694 = vmatprep.subr.mxu0 0.0
    %4695 = vmatpush2.msra.mxu0 0.0
    %4696 = vmatprep.subr.mxu0 0.0
    %4697 = vmatpush2.msra.mxu0 0.0
    %4698 = vmatprep.subr.mxu0 0.0
    %4699 = vmatpush2.msra.mxu0 0.0
    %4700 = vmatprep.subr.mxu0 0.0
    %4701 = vmatpush2.msra.mxu0 0.0
    %4702 = vmatprep.subr.mxu0 0.0
    %4703 = vmatpush2.msra.mxu0 0.0
    %4704 = vmatprep.subr.mxu0 0.0
    %4705 = vmatpush2.msra.mxu0 0.0
    %4706 = vmatprep.subr.mxu0 0.0
    %4707 = vmatpush2.msra.mxu0 0.0
    %4708 = vmatprep.subr.mxu0 0.0
    %4709 = vmatpush2.msra.mxu0 0.0
    %4710 = vmatprep.subr.mxu0 0.0
    %4711 = vmatpush2.msra.mxu0 0.0
    %4712 = vmatprep.subr.mxu0 0.0
    %4713 = vmatpush2.msra.mxu0 0.0
    %4714 = vmatprep.subr.mxu0 0.0
    %4715 = vmatpush2.msra.mxu0 0.0
    %4716 = vmatprep.mubr.f32.mxu0 0.0
    %4717 = vmatmul.mubr.f32.gmra.mxu0 %v4629
    %v4718 = vpop.f32.mrf.mxu0
    %v4719 = vadd.f32 %v4651, %v4718
    %v4720 = vpop.f32.mrf.mxu0
    %4721 = vmatprep.mubr.f32.mxu0 0.0
    %4722 = vmatmul.mubr.f32.gmra.mxu0 %v4630
    %v4723 = vpop.f32.mrf.mxu0
    %v4724 = vadd.f32 %v4651, %v4723
    %v4725 = vpop.f32.mrf.mxu0
    %4726 = vdwg.mxu0
    %v4727 = vld [vmem:[%s1 + $0x230] sm:$0x1]
    %v4728 = vld [vmem:[%s1 + $0x238] sm:$0x1]
    %v4729 = vadd.f32 %v4521, %v4719
    %v4730 = vadd.f32 %v4522, %v4724
    %v4731 = vsel %vm138, %v4729, 0.0
    %4732 = vadd.xlane.f32.xlu0 %v4731
    %v4733 = vpop.xlane.xlu0 %4732
    %v4734 = vsel %vm138, %v4730, 0.0
    %4735 = vadd.xlane.f32.xlu0 %v4734
    %v4736 = vpop.xlane.xlu0 %4735
    %v4737 = vmul.f32 %v4733, %v2144
    %v4738 = vmul.f32 %v4736, %v2144
    %v4739 = vsub.f32 %v4729, %v4737
    %v4740 = vsub.f32 %v4730, %v4738
    %v4741 = vmul.f32 %v4739, %v4739
    %v4742 = vmul.f32 %v4740, %v4740
    %v4743 = vsel %vm138, %v4741, 0.0
    %4744 = vadd.xlane.f32.xlu0 %v4743
    %v4745 = vpop.xlane.xlu0 %4744
    %v4746 = vsel %vm138, %v4742, 0.0
    %4747 = vadd.xlane.f32.xlu0 %v4746
    %v4748 = vpop.xlane.xlu0 %4747
    %v4749 = vmul.f32 %v4745, %v2144
    %v4750 = vmul.f32 %v4748, %v2144
    %v4751 = vadd.f32 %v4749, 1e-05
    %v4752 = vadd.f32 %v4750, 1e-05
    %v4753 = vrsqrt.pop %v4751
    %v4754 = vrsqrt.pop %v4752
    %v4755 = vmul.f32 %v4739, %v4753
    %v4756 = vmul.f32 %v4740, %v4754
    %v4757 = vlaneseq
    %v4758 = vshrl.u32 %v4757, 7
    %v4759 = vsub.s32 0, %v4758
    %v4760 = vrot.slane %v4727, %v4759
    %v4761 = vmul.f32 %v4755, %v4760
    %v4762 = vmul.f32 %v4756, %v4760
    %v4763 = vlaneseq
    %v4764 = vshrl.u32 %v4763, 7
    %v4765 = vsub.s32 0, %v4764
    %v4766 = vrot.slane %v4728, %v4765
    %v4767 = vadd.f32 %v4761, %v4766
    %v4768 = vadd.f32 %v4762, %v4766
    %v4769 = vsel %vm138, %v4767, 0.0
    %v4770 = vrot.slane %v4769, 4
    %v4771 = vadd.f32 %v4769, %v4770
    %v4772 = vrot.slane %v4771, 2
    %v4773 = vadd.f32 %v4771, %v4772
    %v4774 = vrot.slane %v4773, 1
    %v4775 = vadd.f32 %v4773, %v4774
    %v4776 = vsel %vm138, %v4768, 0.0
    %v4777 = vrot.slane %v4776, 4
    %v4778 = vadd.f32 %v4776, %v4777
    %v4779 = vrot.slane %v4778, 2
    %v4780 = vadd.f32 %v4778, %v4779
    %v4781 = vrot.slane %v4780, 1
    %v4782 = vadd.f32 %v4780, %v4781
    %v4783 = vld [vmem:[%s1 + $0x2c8] sm:$0xff]
    %v4784 = vld [vmem:[%s1 + $0x2d0] sm:$0xff]
    %v4785 = vld [vmem:[%s1 + $0x2d8] sm:$0xff]
    %v4786 = vld [vmem:[%s1 + $0x2e0] sm:$0xff]
    %v4787 = vld [vmem:[%s1 + $0x2e8] sm:$0x1]
    %v4788 = vlaneseq
    %v4789 = vshrl.u32 %v4788, 7
    %v4790 = vsub.s32 0, %v4789
    %v4791 = vrot.slane %v4787, %v4790
    %vm4794 = vcmask 1041409
    %v4795 = vsel %vm4794, %v4782, %v4775
    %v4796 = vsel %vm138, %v4795, 0
    %4798 = vmatprep.subr.mxu0 0.0
    %4799 = vmatpush1.msra.mxu0 0.0
    %4800 = vmatprep.subr.mxu0 0.0
    %4801 = vmatpush1.msra.mxu0 0.0
    %4802 = vmatprep.subr.mxu0 0.0
    %4803 = vmatpush1.msra.mxu0 0.0
    %4804 = vmatprep.subr.mxu0 0.0
    %4805 = vmatpush1.msra.mxu0 0.0
    %4806 = vmatprep.subr.mxu0 0.0
    %4807 = vmatpush1.msra.mxu0 0.0
    %4808 = vmatprep.subr.mxu0 0.0
    %4809 = vmatpush1.msra.mxu0 0.0
    %4810 = vmatprep.subr.mxu0 0.0
    %4811 = vmatpush1.msra.mxu0 0.0
    %4812 = vmatprep.subr.mxu0 0.0
    %4813 = vmatpush1.msra.mxu0 0.0
    %4814 = vmatprep.subr.mxu0 0.0
    %4815 = vmatpush1.msra.mxu0 0.0
    %4816 = vmatprep.subr.mxu0 0.0
    %4817 = vmatpush1.msra.mxu0 0.0
    %4818 = vmatprep.subr.mxu0 0.0
    %4819 = vmatpush1.msra.mxu0 0.0
    %4820 = vmatprep.subr.mxu0 0.0
    %4821 = vmatpush1.msra.mxu0 0.0
    %4822 = vmatprep.subr.mxu0 0.0
    %4823 = vmatpush1.msra.mxu0 %v4786
    %4824 = vmatprep.subr.mxu0 0.0
    %4825 = vmatpush1.msra.mxu0 %v4785
    %4826 = vmatprep.subr.mxu0 0.0
    %4827 = vmatpush1.msra.mxu0 %v4784
    %4828 = vmatprep.subr.mxu0 0.0
    %4829 = vmatpush1.msra.mxu0 %v4783
    %4830 = vmatprep.subr.mxu0 0.0
    %4831 = vmatpush2.msra.mxu0 0.0
    %4832 = vmatprep.subr.mxu0 0.0
    %4833 = vmatpush2.msra.mxu0 0.0
    %4834 = vmatprep.subr.mxu0 0.0
    %4835 = vmatpush2.msra.mxu0 0.0
    %4836 = vmatprep.subr.mxu0 0.0
    %4837 = vmatpush2.msra.mxu0 0.0
    %4838 = vmatprep.subr.mxu0 0.0
    %4839 = vmatpush2.msra.mxu0 0.0
    %4840 = vmatprep.subr.mxu0 0.0
    %4841 = vmatpush2.msra.mxu0 0.0
    %4842 = vmatprep.subr.mxu0 0.0
    %4843 = vmatpush2.msra.mxu0 0.0
    %4844 = vmatprep.subr.mxu0 0.0
    %4845 = vmatpush2.msra.mxu0 0.0
    %4846 = vmatprep.subr.mxu0 0.0
    %4847 = vmatpush2.msra.mxu0 0.0
    %4848 = vmatprep.subr.mxu0 0.0
    %4849 = vmatpush2.msra.mxu0 0.0
    %4850 = vmatprep.subr.mxu0 0.0
    %4851 = vmatpush2.msra.mxu0 0.0
    %4852 = vmatprep.subr.mxu0 0.0
    %4853 = vmatpush2.msra.mxu0 0.0
    %4854 = vmatprep.subr.mxu0 0.0
    %4855 = vmatpush2.msra.mxu0 0.0
    %4856 = vmatprep.subr.mxu0 0.0
    %4857 = vmatpush2.msra.mxu0 0.0
    %4858 = vmatprep.subr.mxu0 0.0
    %4859 = vmatpush2.msra.mxu0 0.0
    %4860 = vmatprep.subr.mxu0 0.0
    %4861 = vmatpush2.msra.mxu0 0.0
    %4862 = vmatprep.mubr.f32.mxu0 0.0
    %4863 = vmatmul.mubr.f32.gmra.mxu0 %v4796
    %v4864 = vpop.f32.mrf.mxu0
    %v4865 = vadd.f32 %v4791, %v4864
    %v4866 = vpop.f32.mrf.mxu0
    %4867 = vdwg.mxu0
    %vm4868 = vcmask 25600
    %4869 = vst.msk [vmem:[#allocation2] sm:$0x3] %vm4868, %v4865
    // Predicated region
    $region18: #{luna_model_forward.1} parent=1 // pred_check
      _
    $region19: #{luna_model_forward.1} parent=1 // pred_check_branch
      %4871 = sbr.rel (0) target = $region21
    $region20: #{luna_model_forward.1} parent=1 // pred_region
      %s4873 = ssub.s32 32, 32
      %4874 = vsyncadd [#allocation3], %s4873
      %s4876 = sshll.u32 [#allocation2], 4
      %s4877 = int_to_ptr.vmem [resolvable:$true] %s4876
      %4879 = dma.vmem_to_hbm [thread:$0]  %s4877, 32, %s4, [#allocation3]
    $region21: #{luna_model_forward.1} parent=1 // pred_fallthru
      _
    // Predicated region
    $region22: #{luna_model_forward.1} parent=1 // pred_check
      _
    $region23: #{luna_model_forward.1} parent=1 // pred_check_branch
      %4881 = sbr.rel (0) target = $region25
    $region24: #{luna_model_forward.1} parent=1 // pred_region
      %4882 = dma.done [#allocation3], 32
    $region25: #{luna_model_forward.1} parent=1 // pred_fallthru
      _
    %4883 = vsyncpa [#allocation3], 1

</llo_original>
